<compile_context>
chip_gen: v6e
topology: v6e:2x2x1
jax: 0.10.0
libtpu: 0.0.40
codegen_flags: <defaults>
</compile_context>

<pallas_src>
import functools
import math

import numpy as np
import jax
import jax.numpy as jnp
from jax.experimental import pallas as pl
from jax.experimental.pallas import tpu as pltpu


def _infini_mha_kernel(
    x_ref, wqkv_ref, wout_ref, gate_ref, mask_ref, o_ref,
    *, num_heads, dim_k, dim_v, dim_input, segment_len, segs_per_block,
    exp_dtype,
):
    B = x_ref.shape[0]
    L = segment_len
    H = num_heads
    S_blk = segs_per_block * L            # tokens handled in this grid step
    R = B * S_blk                         # rows fed to the projection GEMMs
    NB = B * segs_per_block * H           # number of (batch, segment, head) blocks
    N = NB * L                            # packed attention rows
    P = mask_ref.shape[0]                 # lane-packing width (multiple of L)
    G = N // P                            # packed groups per step
    dqk = H * dim_k

    # ---- fused Q|K|V projection: one wide bf16 MXU GEMM over the whole block
    x2d = x_ref[...].reshape(R, dim_input).astype(jnp.bfloat16)
    qkv = jnp.dot(x2d, wqkv_ref[...], preferred_element_type=jnp.float32)

    # PyTorch's `.unsqueeze(1).view(B, H, L, d)` is a raw row-major reshape, so
    # the (R, H*d) -> (G, P, d) raw reshape reproduces it exactly (rows end up
    # ordered (batch, segment, head, position)).  Cast to bf16 BEFORE the
    # lane-splitting reshape so the relayout moves half the bytes.
    q = qkv[:, :dqk].astype(jnp.bfloat16).reshape(G, P, dim_k)        # scale folded into wq
    k = qkv[:, dqk:2 * dqk].astype(jnp.bfloat16).reshape(G, P, dim_k)
    v = qkv[:, 2 * dqk:].astype(jnp.bfloat16).reshape(G, P, dim_v)

    # ---- packed causal attention: lane-dense GEMMs + additive static mask ----
    scores = jnp.einsum("gnd,gmd->gnm", q, k, preferred_element_type=jnp.float32)
    scores = scores + mask_ref[...][None]          # 0 where allowed, -1e30 elsewhere
    m = jnp.max(scores, axis=-1, keepdims=True)
    p = jnp.exp((scores - m).astype(exp_dtype))    # bf16 EUP on v6e/v7x, f32 on v5e
    denom = jnp.sum(p.astype(jnp.float32), axis=-1, keepdims=True)
    inv = pl.reciprocal(denom, approx=True).astype(p.dtype)
    p = (p * inv).astype(jnp.bfloat16)
    # TODO(synk): dropout on attention weights / output omitted (eval-mode identity).
    att = jnp.einsum("gnm,gmv->gnv", p, v, preferred_element_type=jnp.float32)  # (G, P, dv)

    # ---- gating: the memory-retrieval branch is exactly zero (memory stays
    #      zero in the reference), so att = (1 - sigmoid(beta)) * att_dot.
    #      Broadcast gate over a (B*segs, H, L, dv) view (no tile materialized).
    att = att.reshape(B * segs_per_block, H, L, dim_v)
    att = att * gate_ref[...][None, :, None, :]

    # ---- output projection; `.view(B, L, H*dv)` is again a raw reshape.
    #      Cast to bf16 before the lane-merging reshape (relayout in bf16).
    att2d = att.astype(jnp.bfloat16).reshape(R, H * dim_v)
    out2d = jnp.dot(att2d, wout_ref[...], preferred_element_type=jnp.float32)
    o_ref[...] = out2d.reshape(B, S_blk, dim_input).astype(o_ref.dtype)


def _packing_width(num_blocks, segment_len):
    # Smallest multiple of segment_len dividing num_blocks*segment_len that
    # reaches the 128-lane width.  Kept at the minimum: only L/P of the
    # scores/PV FLOPs are useful, so widening P just multiplies masked work.
    target = -(-128 // segment_len)     # ceil(128 / L)
    for m in range(1, num_blocks + 1):
        if num_blocks % m == 0 and m >= target:
            return m * segment_len
    return num_blocks * segment_len


def _choose_segs_per_block(n_seq, batch, num_heads, dim_k, dim_v, dim_input,
                           segment_len, *, max_rows=8192,
                           vmem_budget=40 * 1024 * 1024):
    """Segments per grid step.

    Targets thousands of projection rows (R = B*segs*L) per step so the MXU
    work dwarfs the ~0.35us fixed per-step cost, capped by an in-kernel VMEM
    estimate.  Among feasible choices it prefers an even grid length >= 2 so
    v7x's two TensorCores both get segments, then maximizes work per step.
    (R lands on a multiple of the MXU width whenever B*L allows it.)"""
    L = segment_len

    def vmem_bytes(segs):
        rows = batch * segs * L                                 # projection rows
        n = rows * num_heads                                    # packed attention rows
        p = _packing_width(batch * segs * num_heads, L)
        io = 2 * 2 * rows * dim_input * 4                       # x/out blocks, 2x buffered, f32
        proj = rows * num_heads * (2 * dim_k + dim_v) * (4 + 2)  # f32 acc + bf16 copies
        attn = 2 * n * p * 4 + n * dim_v * (4 + 2)              # scores/probs + att
        return io + proj + attn

    candidates = []
    for d in range(1, n_seq + 1):
        if n_seq % d:
            continue
        rows = batch * d * L
        if d > 1 and (rows > max_rows or vmem_bytes(d) > vmem_budget):
            continue
        candidates.append(d)

    def rank(d):
        grid = n_seq // d
        rows = batch * d * L
        even_grid = grid >= 2 and grid % 2 == 0
        return (even_grid, min(rows, max_rows))

    return max(candidates, key=rank)


def _bf16_eup_supported():
    # v5e and older have no bf16 VPU/EUP path; keep the softmax exp in f32 there.
    try:
        kind = jax.devices()[0].device_kind.lower()
    except Exception:
        return True
    return not any(tag in kind for tag in ("v2", "v3", "v4", "v5"))


def infini_mha_forward(x, params, *, num_heads, dim_k, dim_v, segment_len,
                       out_dtype=jnp.float32):
    # out_dtype can be set to bfloat16 to halve output HBM writeback if the
    # downstream consumer accepts it; default keeps the module's f32 contract.
    B, S, dim_input = x.shape
    # The PyTorch reference silently drops trailing tokens; be explicit here.
    assert S % segment_len == 0, "seq_len must be a multiple of segment_len"
    n_seq = S // segment_len

    segs = _choose_segs_per_block(n_seq, B, num_heads, dim_k, dim_v, dim_input,
                                  segment_len)
    blk_tokens = segs * segment_len
    num_blocks = B * segs * num_heads             # (batch, segment, head) blocks per step
    P = _packing_width(num_blocks, segment_len)

    # One-time parameter preprocessing: fused bf16 Q|K|V weight with the
    # softmax scale folded into the Q columns; gate = 1 - sigmoid(betas).
    # (The memory retrieval contributes exactly 0 because the reference never
    # actually updates `memory`.)
    wq_scaled = params["wq"] * (1.0 / math.sqrt(dim_k))
    wqkv = jnp.concatenate([wq_scaled, params["wk"], params["wv"]],
                           axis=1).astype(jnp.bfloat16)
    wout = params["wout"].astype(jnp.bfloat16)
    gate = (1.0 - jax.nn.sigmoid(params["betas"])).astype(jnp.float32)

    # Additive block-diagonal causal mask over one lane-packed group
    # (trace-time constant; single VMEM-resident copy).
    ids = np.arange(P)
    blk_id, pos = ids // segment_len, ids % segment_len
    allow = (blk_id[:, None] == blk_id[None, :]) & (pos[None, :] <= pos[:, None])
    mask = jnp.asarray(np.where(allow, 0.0, -1e30), dtype=jnp.float32)

    exp_dtype = jnp.bfloat16 if _bf16_eup_supported() else jnp.float32

    kernel = functools.partial(
        _infini_mha_kernel,
        num_heads=num_heads, dim_k=dim_k, dim_v=dim_v, dim_input=dim_input,
        segment_len=segment_len, segs_per_block=segs, exp_dtype=exp_dtype)

    # Constant operands (fused weights / out projection / gate / mask): whole
    # arrays resident in VMEM, single copy (no per-step double-buffering).
    # TODO(synk): at model scale these should be K-tiled over a reduction grid
    # axis with an f32 accumulator to bound VMEM on v7x (64 MiB).
    const_spec = pl.BlockSpec(memory_space=pltpu.MemorySpace.VMEM)

    return pl.pallas_call(
        kernel,
        out_shape=jax.ShapeDtypeStruct((B, S, dim_input), out_dtype),
        grid_spec=pltpu.PrefetchScalarGridSpec(
            num_scalar_prefetch=0,
            grid=(n_seq // segs,),
            in_specs=[
                pl.BlockSpec((B, blk_tokens, dim_input), lambda i: (0, i, 0)),
                const_spec,   # wqkv
                const_spec,   # wout
                const_spec,   # gate
                const_spec,   # mask
            ],
            out_specs=pl.BlockSpec((B, blk_tokens, dim_input), lambda i: (0, i, 0)),
        ),
        compiler_params=pltpu.CompilerParams(
            # Segment blocks are fully independent (memory/z never carried),
            # so the grid axis can shard across v7x's two TensorCores.
            dimension_semantics=("parallel",),
            vmem_limit_bytes=64 * 1024 * 1024),
    )(x, wqkv, wout, gate, mask)


def infini_mha_reference(x, params, *, num_heads, dim_k, dim_v, segment_len):
    """Pure-JAX f32 mirror of the PyTorch forward (eval mode), for verification."""
    B, S, _ = x.shape
    H, L = num_heads, segment_len
    n_seq = S // L
    mask = jnp.triu(jnp.ones((L, L), dtype=bool), k=1)
    memory = jnp.zeros((1, H, dim_k, dim_v), jnp.float32)  # never updated (reference quirk)
    z = params["z"][None, :, None, :]
    betas = params["betas"][None, :, None, :]
    outs = []
    for i in range(n_seq):
        xs = x[:, i * L:(i + 1) * L, :]
        k = (xs @ params["wk"]).reshape(B, H, L, dim_k)
        q = (xs @ params["wq"]).reshape(B, H, L, dim_k)
        v = (xs @ params["wv"]).reshape(B, H, L, dim_v)
        scores = q @ jnp.swapaxes(k, -1, -2) / jnp.sqrt(jnp.float32(dim_k))
        scores = jnp.where(mask, -jnp.inf, scores)
        scores = jax.nn.softmax(scores, axis=-1)
        att_dot = scores @ v
        sigma_q = jax.nn.elu(q) + 1.0
        att_mem = (sigma_q @ memory) / (sigma_q @ jnp.swapaxes(z, -1, -2) + 1e-6)
        g = jax.nn.sigmoid(betas)
        att = g * att_mem + (1.0 - g) * att_dot
        att = att.reshape(B, L, H * dim_v)
        outs.append(att @ params["wout"])
    return jnp.concatenate(outs, axis=1)


if __name__ == "__main__":
    num_heads, dim_k, dim_v, dim_input, segment_len = 2, 128, 128, 128, 16
    batch, n_seq = 2, 16
    seq_len = n_seq * segment_len

    key = jax.random.PRNGKey(0)
    ks = jax.random.split(key, 7)

    def linear_weight(k, fan_in, fan_out):
        bound = 1.0 / math.sqrt(fan_in)
        return jax.random.uniform(k, (fan_in, fan_out), jnp.float32, -bound, bound)

    params = dict(
        wq=linear_weight(ks[0], dim_input, num_heads * dim_k),
        wk=linear_weight(ks[1], dim_input, num_heads * dim_k),
        wv=linear_weight(ks[2], dim_input, num_heads * dim_v),
        wout=linear_weight(ks[3], num_heads * dim_v, dim_input),
        betas=jax.random.normal(ks[4], (num_heads, dim_v), jnp.float32),
        # In PyTorch z is `randn(...) * 1e-10` drawn at forward time; made
        # deterministic here (its value is irrelevant since memory stays zero).
        z=jax.random.normal(ks[5], (num_heads, dim_k), jnp.float32) * 1e-10,
    )

    x = jax.random.normal(ks[6], (batch, seq_len, dim_input), jnp.float32)

    out = infini_mha_forward(
        x, params, num_heads=num_heads, dim_k=dim_k, dim_v=dim_v,
        segment_len=segment_len)
    out = jax.block_until_ready(out)

    ref = infini_mha_reference(
        x, params, num_heads=num_heads, dim_k=dim_k, dim_v=dim_v,
        segment_len=segment_len)

    assert out.shape == (batch, seq_len, dim_input)
    assert bool(jnp.all(jnp.isfinite(out)))
    max_err = float(jnp.max(jnp.abs(out - ref)))
    # bf16 MXU operands / bf16 exp vs. the pure-f32 reference stay well below this.
    assert max_err < 5e-2, f"mismatch vs reference: {max_err}"
    print("KERNEL_OK")
</pallas_src>

<mosaic_0001>
module attributes {stable_mosaic.version = 11 : i64} {
  func.func @_infini_mha_kernel(%arg0: i32, %arg1: memref<2x128x128xf32, #tpu.memory_space<vmem>>, %arg2: memref<128x768xbf16, #tpu.memory_space<vmem>>, %arg3: memref<256x128xbf16, #tpu.memory_space<vmem>>, %arg4: memref<2x128xf32, #tpu.memory_space<vmem>>, %arg5: memref<128x128xf32, #tpu.memory_space<vmem>>, %arg6: memref<2x128x128xf32, #tpu.memory_space<vmem>>) attributes {dimension_semantics = [#tpu.dimension_semantics<parallel>], iteration_bounds = array<i64: 2>, scalar_prefetch = 0 : i64, scratch_operands = 0 : i64, tpu.core_type = #tpu.core_type<tc>, window_params = [{transform_indices = @transform_0, window_bounds = array<i64: 2, 128, 128>}, {pipeline_mode = #tpu.pipeline_mode<synchronous>, transform_indices = @transform_1, window_bounds = array<i64: 128, 768>}, {pipeline_mode = #tpu.pipeline_mode<synchronous>, transform_indices = @transform_2, window_bounds = array<i64: 256, 128>}, {pipeline_mode = #tpu.pipeline_mode<synchronous>, transform_indices = @transform_3, window_bounds = array<i64: 2, 128>}, {pipeline_mode = #tpu.pipeline_mode<synchronous>, transform_indices = @transform_4, window_bounds = array<i64: 128, 128>}, {transform_indices = @transform_5, window_bounds = array<i64: 2, 128, 128>}]} {
    %c0 = arith.constant 0 : index
    %c0_0 = arith.constant 0 : index
    %c0_1 = arith.constant 0 : index
    %0 = vector.load %arg1[%c0, %c0_0, %c0_1] : memref<2x128x128xf32, #tpu.memory_space<vmem>>, vector<2x128x128xf32>
    %1 = vector.shape_cast %0 : vector<2x128x128xf32> to vector<256x128xf32>
    %2 = arith.truncf %1 : vector<256x128xf32> to vector<256x128xbf16>
    %c0_2 = arith.constant 0 : index
    %c0_3 = arith.constant 0 : index
    %3 = vector.load %arg2[%c0_2, %c0_3] : memref<128x768xbf16, #tpu.memory_space<vmem>>, vector<128x768xbf16>
    %cst = arith.constant dense<0.000000e+00> : vector<256x768xf32>
    %4 = tpu.matmul %2, %3, %cst {dimension_numbers = #tpu.dot_dimension_numbers<[1], [0], [0], [1], [0, 0, 1, 1], [], []>} : vector<256x128xbf16>, vector<128x768xbf16>, vector<256x768xf32> -> vector<256x768xf32>
    %5 = vector.extract_strided_slice %4 {offsets = [0, 0], sizes = [256, 256], strides = [1, 1]} : vector<256x768xf32> to vector<256x256xf32>
    %6 = arith.truncf %5 : vector<256x256xf32> to vector<256x256xbf16>
    %7 = vector.shape_cast %6 : vector<256x256xbf16> to vector<4x128x128xbf16>
    %8 = vector.extract_strided_slice %4 {offsets = [0, 256], sizes = [256, 256], strides = [1, 1]} : vector<256x768xf32> to vector<256x256xf32>
    %9 = arith.truncf %8 : vector<256x256xf32> to vector<256x256xbf16>
    %10 = vector.shape_cast %9 : vector<256x256xbf16> to vector<4x128x128xbf16>
    %11 = vector.extract_strided_slice %4 {offsets = [0, 512], sizes = [256, 256], strides = [1, 1]} : vector<256x768xf32> to vector<256x256xf32>
    %12 = arith.truncf %11 : vector<256x256xf32> to vector<256x256xbf16>
    %13 = vector.shape_cast %12 : vector<256x256xbf16> to vector<4x128x128xbf16>
    "tpu.trace_start"() <{level = 10 : i32, message = "gnd,gmd->gnm"}> : () -> ()
    %cst_4 = arith.constant dense<0.000000e+00> : vector<4x128x128xf32>
    %14 = tpu.matmul %7, %10, %cst_4 {dimension_numbers = #tpu.dot_dimension_numbers<[2], [2], [1], [1], [0, 0, 0, 1, 1, 1], [0], [0]>} : vector<4x128x128xbf16>, vector<4x128x128xbf16>, vector<4x128x128xf32> -> vector<4x128x128xf32>
    "tpu.trace_stop"() : () -> ()
    %c0_5 = arith.constant 0 : index
    %c0_6 = arith.constant 0 : index
    %15 = vector.load %arg5[%c0_5, %c0_6] : memref<128x128xf32, #tpu.memory_space<vmem>>, vector<128x128xf32>
    %16 = vector.shape_cast %15 : vector<128x128xf32> to vector<1x128x128xf32>
    %17 = vector.broadcast %16 : vector<1x128x128xf32> to vector<4x128x128xf32>
    %18 = arith.addf %14, %17 : vector<4x128x128xf32>
    %cst_7 = arith.constant dense<0xFF800000> : vector<4x128xf32>
    %19 = vector.multi_reduction <maximumf>, %18, %cst_7 [2] : vector<4x128x128xf32> to vector<4x128xf32>
    %20 = vector.shape_cast %19 : vector<4x128xf32> to vector<4x128x1xf32>
    %21 = vector.broadcast %20 : vector<4x128x1xf32> to vector<4x128x128xf32>
    %22 = arith.subf %18, %21 : vector<4x128x128xf32>
    %23 = arith.truncf %22 : vector<4x128x128xf32> to vector<4x128x128xbf16>
    %24 = math.exp %23 : vector<4x128x128xbf16>
    %25 = arith.extf %24 : vector<4x128x128xbf16> to vector<4x128x128xf32>
    %cst_8 = arith.constant dense<0.000000e+00> : vector<4x128xf32>
    %26 = vector.multi_reduction <add>, %25, %cst_8 [2] : vector<4x128x128xf32> to vector<4x128xf32>
    %27 = vector.shape_cast %26 : vector<4x128xf32> to vector<4x128x1xf32>
    %28 = tpu.reciprocal %27 {approx = true} : vector<4x128x1xf32> -> vector<4x128x1xf32>
    %29 = arith.truncf %28 : vector<4x128x1xf32> to vector<4x128x1xbf16>
    %30 = vector.broadcast %29 : vector<4x128x1xbf16> to vector<4x128x128xbf16>
    %31 = arith.mulf %24, %30 : vector<4x128x128xbf16>
    "tpu.trace_start"() <{level = 10 : i32, message = "gnm,gmv->gnv"}> : () -> ()
    %cst_9 = arith.constant dense<0.000000e+00> : vector<4x128x128xf32>
    %32 = tpu.matmul %31, %13, %cst_9 {dimension_numbers = #tpu.dot_dimension_numbers<[2], [1], [1], [2], [0, 0, 0, 1, 1, 2], [0], [0]>} : vector<4x128x128xbf16>, vector<4x128x128xbf16>, vector<4x128x128xf32> -> vector<4x128x128xf32>
    "tpu.trace_stop"() : () -> ()
    %33 = vector.shape_cast %32 : vector<4x128x128xf32> to vector<16x2x16x128xf32>
    %c0_10 = arith.constant 0 : index
    %c0_11 = arith.constant 0 : index
    %34 = vector.load %arg4[%c0_10, %c0_11] : memref<2x128xf32, #tpu.memory_space<vmem>>, vector<2x128xf32>
    %35 = vector.shape_cast %34 : vector<2x128xf32> to vector<1x2x1x128xf32>
    %36 = vector.broadcast %35 : vector<1x2x1x128xf32> to vector<16x2x16x128xf32>
    %37 = arith.mulf %33, %36 : vector<16x2x16x128xf32>
    %38 = arith.truncf %37 : vector<16x2x16x128xf32> to vector<16x2x16x128xbf16>
    %39 = vector.shape_cast %38 : vector<16x2x16x128xbf16> to vector<256x256xbf16>
    %c0_12 = arith.constant 0 : index
    %c0_13 = arith.constant 0 : index
    %40 = vector.load %arg3[%c0_12, %c0_13] : memref<256x128xbf16, #tpu.memory_space<vmem>>, vector<256x128xbf16>
    %cst_14 = arith.constant dense<0.000000e+00> : vector<256x128xf32>
    %41 = tpu.matmul %39, %40, %cst_14 {dimension_numbers = #tpu.dot_dimension_numbers<[1], [0], [0], [1], [0, 0, 1, 1], [], []>} : vector<256x256xbf16>, vector<256x128xbf16>, vector<256x128xf32> -> vector<256x128xf32>
    %42 = vector.shape_cast %41 : vector<256x128xf32> to vector<2x128x128xf32>
    %c0_15 = arith.constant 0 : index
    %c0_16 = arith.constant 0 : index
    %c0_17 = arith.constant 0 : index
    %43 = vector.load %arg6[%c0_15, %c0_16, %c0_17] : memref<2x128x128xf32, #tpu.memory_space<vmem>>, vector<2x128x128xf32>
    tpu.vector_store %arg6[%c0_15, %c0_16, %c0_17], %42 {strides = array<i32>} : memref<2x128x128xf32, #tpu.memory_space<vmem>>, vector<2x128x128xf32>,
    return
  }
  func.func @transform_0(%arg0: i32) -> (i32, i32, i32) {
    %c0_i32 = arith.constant 0 : i32
    %c0_i32_0 = arith.constant 0 : i32
    %c0_i32_1 = arith.constant 0 : i32
    return %c0_i32, %arg0, %c0_i32_0 : i32, i32, i32
  }
  func.func @transform_1(%arg0: i32) -> (i32, i32) {
    %c0_i32 = arith.constant 0 : i32
    %c0_i32_0 = arith.constant 0 : i32
    %c0_i32_1 = arith.constant 0 : i32
    return %c0_i32, %c0_i32_0 : i32, i32
  }
  func.func @transform_2(%arg0: i32) -> (i32, i32) {
    %c0_i32 = arith.constant 0 : i32
    %c0_i32_0 = arith.constant 0 : i32
    %c0_i32_1 = arith.constant 0 : i32
    return %c0_i32, %c0_i32_0 : i32, i32
  }
  func.func @transform_3(%arg0: i32) -> (i32, i32) {
    %c0_i32 = arith.constant 0 : i32
    %c0_i32_0 = arith.constant 0 : i32
    %c0_i32_1 = arith.constant 0 : i32
    return %c0_i32, %c0_i32_0 : i32, i32
  }
  func.func @transform_4(%arg0: i32) -> (i32, i32) {
    %c0_i32 = arith.constant 0 : i32
    %c0_i32_0 = arith.constant 0 : i32
    %c0_i32_1 = arith.constant 0 : i32
    return %c0_i32, %c0_i32_0 : i32, i32
  }
  func.func @transform_5(%arg0: i32) -> (i32, i32, i32) {
    %c0_i32 = arith.constant 0 : i32
    %c0_i32_0 = arith.constant 0 : i32
    %c0_i32_1 = arith.constant 0 : i32
    return %c0_i32, %arg0, %c0_i32_0 : i32, i32, i32
  }
}

</mosaic_0001>

<llo_original>
// kernel: tpu_custom_call.1
$region0: #{tpu_custom_call.1}
  #allocation0 [shape = 'u32[]', space=smem, size = 0x4, offset = 0x4, fixed_abs, tag = 'smem constant byte address 0x4 - core index']
  #allocation1 [shape = 'u32[144,128]{1,0:T(1,128)}', space=vmem, size = 0x12000, scoped, tag = 'internal scratch']
  #allocation11 [shape = 's32[]', space=sflag, size = 0x4, offset = 0, fixed_abs, tag = 'sflag constant byte address 0x0 - dummy sync flag']
  #allocation13 [shape = 's32[]', space=sflag, size = 0x4, offset = 0, fixed_abs, tag = 'sflag constant byte address 0x0 - dummy sync flag']
  %s0 = inlined_call_operand.hbm [shape: f32[2,256,128], index: 0, kind: input, shape index: {}]
  %s1 = inlined_call_operand.hbm [shape: bf16[128,768], index: 1, kind: input, shape index: {}]
  %s2 = inlined_call_operand.hbm [shape: bf16[256,128], index: 2, kind: input, shape index: {}]
  %s3 = inlined_call_operand.vmem [shape: f32[2,128], index: 3, kind: input, shape index: {}]
  %s4 = inlined_call_operand.hbm [shape: f32[128,128], index: 4, kind: input, shape index: {}]
  %s5 = inlined_call_operand.hbm [shape: f32[2,256,128], index: 5, kind: output, shape index: {}]
  %s6 = sld [smem:[#allocation0]]
  $region69: #{tpu_custom_call.1} parent=0
    _
  %s8 = ssub.s32 1, %s6
  %s9 = scalar_select 0, %s8, %s6
  $region1: #{tpu_custom_call.1} parent=0
    #allocation2 [shape = 'u8[262144]{0}', space=vmem, size = 0x40000, scoped, tag = 'input window, operand 0']
    #allocation3 [shape = 's32[2]{0}', space=sflag, size = 0x8, scoped, tag = 'scoped memory for tpu_custom_call.1']
    #allocation4 [shape = 's32[2]{0}', space=sflag, size = 0x8, scoped, tag = 'scoped memory for tpu_custom_call.1']
    #allocation5 [shape = 'u8[196608]{0}', space=vmem, size = 0x30000, scoped, tag = 'input window, operand 1, single buffered']
    #allocation6 [shape = 's32[1]{0}', space=sflag, size = 0x4, scoped, tag = 'scoped memory for tpu_custom_call.1']
    #allocation7 [shape = 'u8[65536]{0}', space=vmem, size = 0x10000, scoped, tag = 'input window, operand 2, single buffered']
    #allocation8 [shape = 'u8[65536]{0}', space=vmem, size = 0x10000, scoped, tag = 'input window, operand 4, single buffered']
    #allocation9 [shape = 's32[1]{0}', space=sflag, size = 0x4, scoped, tag = 'scoped memory for tpu_custom_call.1']
    #allocation10 [shape = 'u8[262144]{0}', space=vmem, size = 0x40000, scoped, tag = 'output window, operand 0']
    %10 = vsyncpa [#allocation3], 0
    %s11 = scalar_lea.sflag [#allocation3], 1
    %12 = vsyncpa %s11, 0
    %13 = vsyncpa [#allocation6], 0
    %14 = vsyncpa [#allocation9], 0
    %15 = vsyncpa [#allocation4], 0
    %s16 = scalar_lea.sflag [#allocation4], 1
    %17 = vsyncpa %s16, 0
    loop: start=0, step=1, limit=4
    $region2: #{tpu_custom_call.1} parent=1 // loop_pre_header
      _
    $region3: #{tpu_custom_call.1} parent=1 // loop_header
      %s19 = sphi 0, %s23
      %p20 = scmp.ge.s32.totalorder %s19, 4
      %s29 = sphi 0, %s31
      %s32 = sphi 0, %s29
      %s33 = sphi 0, %s32
      %s49 = sphi 0, %s33
      %s53 = sphi 0, %s53
      %s55 = sphi 0, %s53
      %s56 = sphi 0, %s55
      %s70 = sphi 0, %s56
      %s74 = sphi 0, %s74
      %s76 = sphi 0, %s74
      %s77 = sphi 0, %s76
      %s91 = sphi 0, %s77
      %s95 = sphi 0, %s95
      %s97 = sphi 0, %s95
      %s98 = sphi 0, %s97
      %s112 = sphi 0, %s98
      %s116 = sphi 0, %s116
      %s118 = sphi 0, %s116
      %s119 = sphi 0, %s118
      %s133 = sphi 0, %s119
      %s139 = sphi 0, %s141
      %s142 = sphi 0, %s139
      %s143 = sphi 0, %s142
      %s159 = sphi 0, %s143
    $region4: #{tpu_custom_call.1} parent=1 // loop_header_branch
      %22 = sbr.rel (%p20) target = $region8
    $region5: #{tpu_custom_call.1} parent=1 // loop_body
      %s24 = ssub.s32 %s19, 1
      %s25 = ssub.s32 %s19, 2
      %s26 = sadd.s32 %s19, 1
      %s27 = ssub.s32 %s19, %s26
      %p28 = scmp.eq.s32.totalorder %s27, 0
      %s30 = sadd.s32 %s29, 1
      %s31 = scalar_select %p28, %s29, %s30
      %p34 = pneg %p28
      %p35 = scmp.eq.s32.totalorder %s19, 1
      %p36 = por %p34, %p35
      %p37 = scmp.ne.s32.totalorder %s29, %s32
      %p38 = scmp.eq.s32.totalorder %s19, 0
      %p39 = por %p37, %p38
      %p40 = scmp.ne.s32.totalorder %s29, %s32
      %p41 = scmp.eq.s32.totalorder %s24, 1
      %p42 = por %p40, %p41
      %p43 = scmp.ne.s32.totalorder %s32, %s33
      %p44 = scmp.eq.s32.totalorder %s24, 0
      %p45 = por %p43, %p44
      %p46 = scmp.ne.s32.totalorder %s32, %s33
      %p47 = scmp.eq.s32.totalorder %s25, 1
      %p48 = por %p46, %p47
      %p50 = scmp.ne.s32.totalorder %s33, %s49
      %p51 = scmp.eq.s32.totalorder %s25, 0
      %p52 = por %p50, %p51
      %s54 = sadd.s32 %s53, 1
      %p57 = scmp.eq.s32.totalorder %s19, 1
      %p58 = scmp.ne.s32.totalorder %s53, %s55
      %p59 = scmp.eq.s32.totalorder %s19, 0
      %p60 = por %p58, %p59
      %p61 = scmp.ne.s32.totalorder %s53, %s55
      %p62 = scmp.eq.s32.totalorder %s24, 1
      %p63 = por %p61, %p62
      %p64 = scmp.ne.s32.totalorder %s55, %s56
      %p65 = scmp.eq.s32.totalorder %s24, 0
      %p66 = por %p64, %p65
      %p67 = scmp.ne.s32.totalorder %s55, %s56
      %p68 = scmp.eq.s32.totalorder %s25, 1
      %p69 = por %p67, %p68
      %p71 = scmp.ne.s32.totalorder %s56, %s70
      %p72 = scmp.eq.s32.totalorder %s25, 0
      %p73 = por %p71, %p72
      %s75 = sadd.s32 %s74, 1
      %p78 = scmp.eq.s32.totalorder %s19, 1
      %p79 = scmp.ne.s32.totalorder %s74, %s76
      %p80 = scmp.eq.s32.totalorder %s19, 0
      %p81 = por %p79, %p80
      %p82 = scmp.ne.s32.totalorder %s74, %s76
      %p83 = scmp.eq.s32.totalorder %s24, 1
      %p84 = por %p82, %p83
      %p85 = scmp.ne.s32.totalorder %s76, %s77
      %p86 = scmp.eq.s32.totalorder %s24, 0
      %p87 = por %p85, %p86
      %p88 = scmp.ne.s32.totalorder %s76, %s77
      %p89 = scmp.eq.s32.totalorder %s25, 1
      %p90 = por %p88, %p89
      %p92 = scmp.ne.s32.totalorder %s77, %s91
      %p93 = scmp.eq.s32.totalorder %s25, 0
      %p94 = por %p92, %p93
      %s96 = sadd.s32 %s95, 1
      %p99 = scmp.eq.s32.totalorder %s19, 1
      %p100 = scmp.ne.s32.totalorder %s95, %s97
      %p101 = scmp.eq.s32.totalorder %s19, 0
      %p102 = por %p100, %p101
      %p103 = scmp.ne.s32.totalorder %s95, %s97
      %p104 = scmp.eq.s32.totalorder %s24, 1
      %p105 = por %p103, %p104
      %p106 = scmp.ne.s32.totalorder %s97, %s98
      %p107 = scmp.eq.s32.totalorder %s24, 0
      %p108 = por %p106, %p107
      %p109 = scmp.ne.s32.totalorder %s97, %s98
      %p110 = scmp.eq.s32.totalorder %s25, 1
      %p111 = por %p109, %p110
      %p113 = scmp.ne.s32.totalorder %s98, %s112
      %p114 = scmp.eq.s32.totalorder %s25, 0
      %p115 = por %p113, %p114
      %s117 = sadd.s32 %s116, 1
      %p120 = scmp.eq.s32.totalorder %s19, 1
      %p121 = scmp.ne.s32.totalorder %s116, %s118
      %p122 = scmp.eq.s32.totalorder %s19, 0
      %p123 = por %p121, %p122
      %p124 = scmp.ne.s32.totalorder %s116, %s118
      %p125 = scmp.eq.s32.totalorder %s24, 1
      %p126 = por %p124, %p125
      %p127 = scmp.ne.s32.totalorder %s118, %s119
      %p128 = scmp.eq.s32.totalorder %s24, 0
      %p129 = por %p127, %p128
      %p130 = scmp.ne.s32.totalorder %s118, %s119
      %p131 = scmp.eq.s32.totalorder %s25, 1
      %p132 = por %p130, %p131
      %p134 = scmp.ne.s32.totalorder %s119, %s133
      %p135 = scmp.eq.s32.totalorder %s25, 0
      %p136 = por %p134, %p135
      %s137 = ssub.s32 %s19, %s26
      %p138 = scmp.eq.s32.totalorder %s137, 0
      %s140 = sadd.s32 %s139, 1
      %s141 = scalar_select %p138, %s139, %s140
      %p144 = pneg %p138
      %p145 = scmp.eq.s32.totalorder %s19, 1
      %p146 = por %p144, %p145
      %p147 = scmp.ne.s32.totalorder %s139, %s142
      %p148 = scmp.eq.s32.totalorder %s19, 0
      %p149 = por %p147, %p148
      %p150 = scmp.ne.s32.totalorder %s139, %s142
      %p151 = scmp.eq.s32.totalorder %s24, 1
      %p152 = por %p150, %p151
      %p153 = scmp.ne.s32.totalorder %s142, %s143
      %p154 = scmp.eq.s32.totalorder %s24, 0
      %p155 = por %p153, %p154
      %p156 = scmp.ne.s32.totalorder %s142, %s143
      %p157 = scmp.eq.s32.totalorder %s25, 1
      %p158 = por %p156, %p157
      %p160 = scmp.ne.s32.totalorder %s143, %s159
      %p161 = scmp.eq.s32.totalorder %s25, 0
      %p162 = por %p160, %p161
      %p163 = scmp.le.s32.totalorder 1, %s19
      %p164 = scmp.lt.s32.totalorder %s19, 3
      %p165 = pnand %p163, %p164
      %p166 = pneg %p165
      // Predicated region
      $region9: #{tpu_custom_call.1} parent=5 // pred_check
        _
      $region10: #{tpu_custom_call.1} parent=5 // pred_check_branch
        %168 = sbr.rel (%p165) target = $region12
      $region11: #{tpu_custom_call.1} parent=5 // pred_region
        %s169 = ssub.s32 %s19, 1
        // Predicated region
        $region13: #{tpu_custom_call.1} parent=11 // pred_check
          %p170 = pneg %p66
        $region14: #{tpu_custom_call.1} parent=11 // pred_check_branch
          %172 = sbr.rel (%p170) target = $region16
        $region15: #{tpu_custom_call.1} parent=11 // pred_region
          %s174 = ssub.s32 6144, 6144
          %175 = vsyncadd [#allocation6], %s174
          %s176 = sshll.u32 [#allocation5], 4
          %s177 = int_to_ptr.vmem [resolvable:$true] %s176
          %182 = dma.hbm_to_vmem [thread:$0]  %s1, 6144, %s177, [#allocation6], 384, 384, 24
        $region16: #{tpu_custom_call.1} parent=11 // pred_fallthru
          _
        // Predicated region
        $region17: #{tpu_custom_call.1} parent=11 // pred_check
          %p183 = pneg %p87
        $region18: #{tpu_custom_call.1} parent=11 // pred_check_branch
          %185 = sbr.rel (%p183) target = $region20
        $region19: #{tpu_custom_call.1} parent=11 // pred_region
          %s187 = ssub.s32 2048, 2048
          %188 = vsyncadd [#allocation6], %s187
          %s189 = sshll.u32 [#allocation7], 4
          %s190 = int_to_ptr.vmem [resolvable:$true] %s189
          %195 = dma.hbm_to_vmem [thread:$0]  %s2, 2048, %s190, [#allocation6], 64, 64, 4
        $region20: #{tpu_custom_call.1} parent=11 // pred_fallthru
          _
        // Predicated region
        $region21: #{tpu_custom_call.1} parent=11 // pred_check
          %p196 = pneg %p108
        $region22: #{tpu_custom_call.1} parent=11 // pred_check_branch
          %198 = sbr.rel (%p196) target = $region24
        $region23: #{tpu_custom_call.1} parent=11 // pred_region
          _
        $region24: #{tpu_custom_call.1} parent=11 // pred_fallthru
          _
        // Predicated region
        $region25: #{tpu_custom_call.1} parent=11 // pred_check
          %p199 = pneg %p129
        $region26: #{tpu_custom_call.1} parent=11 // pred_check_branch
          %201 = sbr.rel (%p199) target = $region28
        $region27: #{tpu_custom_call.1} parent=11 // pred_region
          %s203 = ssub.s32 2048, 2048
          %204 = vsyncadd [#allocation9], %s203
          %s205 = sshll.u32 [#allocation8], 4
          %s206 = int_to_ptr.vmem [resolvable:$true] %s205
          %211 = dma.hbm_to_vmem [thread:$0]  %s4, 2048, %s206, [#allocation9], 128, 128, 8
        $region28: #{tpu_custom_call.1} parent=11 // pred_fallthru
          _
      $region12: #{tpu_custom_call.1} parent=5 // pred_fallthru
        _
      %p212 = scmp.lt.s32.totalorder %s19, 2
      // Predicated region
      $region29: #{tpu_custom_call.1} parent=5 // pred_check
        %p213 = pneg %p212
      $region30: #{tpu_custom_call.1} parent=5 // pred_check_branch
        %215 = sbr.rel (%p213) target = $region32
      $region31: #{tpu_custom_call.1} parent=5 // pred_region
        // Predicated region
        $region33: #{tpu_custom_call.1} parent=31 // pred_check
          %p216 = pneg %p39
        $region34: #{tpu_custom_call.1} parent=31 // pred_check_branch
          %218 = sbr.rel (%p216) target = $region36
        $region35: #{tpu_custom_call.1} parent=31 // pred_region
          #allocation12 [shape = 'u32[6]{0}', space=smem, size = 0x18, scoped, tag = 'DMA stride descriptor']
          %s219 = sand.u32 %s29, 1
          %s220 = scalar_lea.sflag [#allocation3], %s219
          %s221 = sand.u32 %s29, 1
          %s222 = smul.addr %s221, 256
          %s223 = scalar_lea.vmem [#allocation2], %s222
          %s224 = smul.u32 16, %s19
          %s226 = ssub.s32 4096, 4096
          %227 = vsyncadd %s220, %s226
          %s228 = smul.addr %s224, 128
          %s229 = scalar_lea.hbm %s0, %s228
          %s231 = sshll.u32 1, 14
          %s232 = sxor.u32 4294967295, %s231
          %s234 = sld [smem:[#allocation0]]
          %s235 = sadd.s32 2, %s234
          %s237 = sshll.u32 7, 26
          %s238 = sxor.u32 4294967295, %s237
          %s239 = sand.u32 0, %s238
          %s240 = sshll.u32 %s235, 26
          %s241 = sor.u32 %s239, %s240
          %s242 = sshll.u32 %s223, 4
          %s243 = int_to_ptr.vmem [resolvable:$true] %s242
          %249 = sst [smem:[#allocation12]] 4096
          %s250 = scalar_lea.smem [#allocation12], 1
          %251 = sst [smem:[%s250]] 2048
          %s252 = scalar_lea.smem [#allocation12], 2
          %253 = sst [smem:[%s252]] 16
          %s254 = scalar_lea.smem [#allocation12], 3
          %255 = sst [smem:[%s254]] 128
          %s256 = scalar_lea.smem [#allocation12], 4
          %257 = sst [smem:[%s256]] 128
          %s258 = scalar_lea.smem [#allocation12], 5
          %259 = sst [smem:[%s258]] 8
          %261 = dma.general %s229, 4096, %s243, %s220, 131072, [#allocation12], %s241, 0
        $region36: #{tpu_custom_call.1} parent=31 // pred_fallthru
          _
      $region32: #{tpu_custom_call.1} parent=5 // pred_fallthru
        _
      %p262 = scmp.le.s32.totalorder 1, %s19
      %p263 = scmp.lt.s32.totalorder %s19, 3
      %p264 = pnand %p262, %p263
      %p265 = pneg %p264
      // Predicated region
      $region37: #{tpu_custom_call.1} parent=5 // pred_check
        _
      $region38: #{tpu_custom_call.1} parent=5 // pred_check_branch
        %267 = sbr.rel (%p264) target = $region40
      $region39: #{tpu_custom_call.1} parent=5 // pred_region
        %s268 = ssub.s32 %s19, 1
        %s269 = sand.u32 %s32, 1
        %s270 = scalar_lea.sflag [#allocation3], %s269
        %s271 = sand.u32 %s32, 1
        %s272 = smul.addr %s271, 256
        %s273 = scalar_lea.vmem [#allocation2], %s272
        // Predicated region
        $region41: #{tpu_custom_call.1} parent=39 // pred_check
          %p274 = pneg %p45
        $region42: #{tpu_custom_call.1} parent=39 // pred_check_branch
          %276 = sbr.rel (%p274) target = $region44
        $region43: #{tpu_custom_call.1} parent=39 // pred_region
          %277 = dma.done %s270, 4096
        $region44: #{tpu_custom_call.1} parent=39 // pred_fallthru
          _
        // Predicated region
        $region45: #{tpu_custom_call.1} parent=39 // pred_check
          %p278 = pneg %p66
        $region46: #{tpu_custom_call.1} parent=39 // pred_check_branch
          %280 = sbr.rel (%p278) target = $region48
        $region47: #{tpu_custom_call.1} parent=39 // pred_region
          %281 = dma.done [#allocation6], 6144
        $region48: #{tpu_custom_call.1} parent=39 // pred_fallthru
          _
        // Predicated region
        $region49: #{tpu_custom_call.1} parent=39 // pred_check
          %p282 = pneg %p87
        $region50: #{tpu_custom_call.1} parent=39 // pred_check_branch
          %284 = sbr.rel (%p282) target = $region52
        $region51: #{tpu_custom_call.1} parent=39 // pred_region
          %285 = dma.done [#allocation6], 2048
        $region52: #{tpu_custom_call.1} parent=39 // pred_fallthru
          _
        // Predicated region
        $region53: #{tpu_custom_call.1} parent=39 // pred_check
          %p286 = pneg %p129
        $region54: #{tpu_custom_call.1} parent=39 // pred_check_branch
          %288 = sbr.rel (%p286) target = $region56
        $region55: #{tpu_custom_call.1} parent=39 // pred_region
          %289 = dma.done [#allocation9], 2048
        $region56: #{tpu_custom_call.1} parent=39 // pred_fallthru
          _
        %s290 = sand.u32 %s32, 1
        %s291 = scalar_lea.sflag [#allocation3], %s290
        %s292 = sand.u32 %s32, 1
        %s293 = smul.addr %s292, 256
        %s294 = scalar_lea.vmem [#allocation2], %s293
        %p295 = pneg %p45
        %p296 = pneg %p42
        %p297 = pneg %p66
        %p298 = pneg %p63
        %p299 = pneg %p87
        %p300 = pneg %p84
        %p301 = pneg %p108
        %p302 = pneg %p105
        %p303 = pneg %p129
        %p304 = pneg %p126
        %p305 = pneg %p155
        %p306 = pneg %p152
        %s307 = sand.u32 %s142, 1
        %s308 = scalar_lea.sflag [#allocation4], %s307
        %s309 = sand.u32 %s142, 1
        %s310 = smul.addr %s309, 256
        %s311 = scalar_lea.vmem [#allocation10], %s310
        %s312 = smul.u32 16, %s24
        %s313 = smul.u32 16, %s24
        %v315 = vld [vmem:[%s273] sm:$0xff]
        %v316 = vld [vmem:[%s273 + $0x8] sm:$0xff]
        %v317 = vld [vmem:[%s273 + $0x10] sm:$0xff]
        %v318 = vld [vmem:[%s273 + $0x18] sm:$0xff]
        %v319 = vld [vmem:[%s273 + $0x20] sm:$0xff]
        %v320 = vld [vmem:[%s273 + $0x28] sm:$0xff]
        %v321 = vld [vmem:[%s273 + $0x30] sm:$0xff]
        %v322 = vld [vmem:[%s273 + $0x38] sm:$0xff]
        %v323 = vld [vmem:[%s273 + $0x40] sm:$0xff]
        %v324 = vld [vmem:[%s273 + $0x48] sm:$0xff]
        %v325 = vld [vmem:[%s273 + $0x50] sm:$0xff]
        %v326 = vld [vmem:[%s273 + $0x58] sm:$0xff]
        %v327 = vld [vmem:[%s273 + $0x60] sm:$0xff]
        %v328 = vld [vmem:[%s273 + $0x68] sm:$0xff]
        %v329 = vld [vmem:[%s273 + $0x70] sm:$0xff]
        %v330 = vld [vmem:[%s273 + $0x78] sm:$0xff]
        %v331 = vld [vmem:[%s273 + $0x80] sm:$0xff]
        %v332 = vld [vmem:[%s273 + $0x88] sm:$0xff]
        %v333 = vld [vmem:[%s273 + $0x90] sm:$0xff]
        %v334 = vld [vmem:[%s273 + $0x98] sm:$0xff]
        %v335 = vld [vmem:[%s273 + $0xa0] sm:$0xff]
        %v336 = vld [vmem:[%s273 + $0xa8] sm:$0xff]
        %v337 = vld [vmem:[%s273 + $0xb0] sm:$0xff]
        %v338 = vld [vmem:[%s273 + $0xb8] sm:$0xff]
        %v339 = vld [vmem:[%s273 + $0xc0] sm:$0xff]
        %v340 = vld [vmem:[%s273 + $0xc8] sm:$0xff]
        %v341 = vld [vmem:[%s273 + $0xd0] sm:$0xff]
        %v342 = vld [vmem:[%s273 + $0xd8] sm:$0xff]
        %v343 = vld [vmem:[%s273 + $0xe0] sm:$0xff]
        %v344 = vld [vmem:[%s273 + $0xe8] sm:$0xff]
        %v345 = vld [vmem:[%s273 + $0xf0] sm:$0xff]
        %v346 = vld [vmem:[%s273 + $0xf8] sm:$0xff]
        %v347 = vpack.c.bf16 %v316, %v315
        %v348 = vpack.c.bf16 %v318, %v317
        %v349 = vpack.c.bf16 %v320, %v319
        %v350 = vpack.c.bf16 %v322, %v321
        %v351 = vpack.c.bf16 %v324, %v323
        %v352 = vpack.c.bf16 %v326, %v325
        %v353 = vpack.c.bf16 %v328, %v327
        %v354 = vpack.c.bf16 %v330, %v329
        %v355 = vpack.c.bf16 %v332, %v331
        %v356 = vpack.c.bf16 %v334, %v333
        %v357 = vpack.c.bf16 %v336, %v335
        %v358 = vpack.c.bf16 %v338, %v337
        %v359 = vpack.c.bf16 %v340, %v339
        %v360 = vpack.c.bf16 %v342, %v341
        %v361 = vpack.c.bf16 %v344, %v343
        %v362 = vpack.c.bf16 %v346, %v345
        %v363 = vld [vmem:[#allocation5] sm:$0xff]
        %v364 = vld [vmem:[#allocation5 + $0x8] sm:$0xff]
        %v365 = vld [vmem:[#allocation5 + $0x10] sm:$0xff]
        %v366 = vld [vmem:[#allocation5 + $0x18] sm:$0xff]
        %v367 = vld [vmem:[#allocation5 + $0x20] sm:$0xff]
        %v368 = vld [vmem:[#allocation5 + $0x28] sm:$0xff]
        %v369 = vld [vmem:[#allocation5 + $0x30] sm:$0xff]
        %v370 = vld [vmem:[#allocation5 + $0x38] sm:$0xff]
        %v371 = vld [vmem:[#allocation5 + $0x40] sm:$0xff]
        %v372 = vld [vmem:[#allocation5 + $0x48] sm:$0xff]
        %v373 = vld [vmem:[#allocation5 + $0x50] sm:$0xff]
        %v374 = vld [vmem:[#allocation5 + $0x58] sm:$0xff]
        %v375 = vld [vmem:[#allocation5 + $0x60] sm:$0xff]
        %v376 = vld [vmem:[#allocation5 + $0x68] sm:$0xff]
        %v377 = vld [vmem:[#allocation5 + $0x70] sm:$0xff]
        %v378 = vld [vmem:[#allocation5 + $0x78] sm:$0xff]
        %v379 = vld [vmem:[#allocation5 + $0x80] sm:$0xff]
        %v380 = vld [vmem:[#allocation5 + $0x88] sm:$0xff]
        %v381 = vld [vmem:[#allocation5 + $0x90] sm:$0xff]
        %v382 = vld [vmem:[#allocation5 + $0x98] sm:$0xff]
        %v383 = vld [vmem:[#allocation5 + $0xa0] sm:$0xff]
        %v384 = vld [vmem:[#allocation5 + $0xa8] sm:$0xff]
        %v385 = vld [vmem:[#allocation5 + $0xb0] sm:$0xff]
        %v386 = vld [vmem:[#allocation5 + $0xb8] sm:$0xff]
        %v387 = vld [vmem:[#allocation5 + $0xc0] sm:$0xff]
        %v388 = vld [vmem:[#allocation5 + $0xc8] sm:$0xff]
        %v389 = vld [vmem:[#allocation5 + $0xd0] sm:$0xff]
        %v390 = vld [vmem:[#allocation5 + $0xd8] sm:$0xff]
        %v391 = vld [vmem:[#allocation5 + $0xe0] sm:$0xff]
        %v392 = vld [vmem:[#allocation5 + $0xe8] sm:$0xff]
        %v393 = vld [vmem:[#allocation5 + $0xf0] sm:$0xff]
        %v394 = vld [vmem:[#allocation5 + $0xf8] sm:$0xff]
        %v395 = vld [vmem:[#allocation5 + $0x100] sm:$0xff]
        %v396 = vld [vmem:[#allocation5 + $0x108] sm:$0xff]
        %v397 = vld [vmem:[#allocation5 + $0x110] sm:$0xff]
        %v398 = vld [vmem:[#allocation5 + $0x118] sm:$0xff]
        %v399 = vld [vmem:[#allocation5 + $0x120] sm:$0xff]
        %v400 = vld [vmem:[#allocation5 + $0x128] sm:$0xff]
        %v401 = vld [vmem:[#allocation5 + $0x130] sm:$0xff]
        %v402 = vld [vmem:[#allocation5 + $0x138] sm:$0xff]
        %v403 = vld [vmem:[#allocation5 + $0x140] sm:$0xff]
        %v404 = vld [vmem:[#allocation5 + $0x148] sm:$0xff]
        %v405 = vld [vmem:[#allocation5 + $0x150] sm:$0xff]
        %v406 = vld [vmem:[#allocation5 + $0x158] sm:$0xff]
        %v407 = vld [vmem:[#allocation5 + $0x160] sm:$0xff]
        %v408 = vld [vmem:[#allocation5 + $0x168] sm:$0xff]
        %v409 = vld [vmem:[#allocation5 + $0x170] sm:$0xff]
        %v410 = vld [vmem:[#allocation5 + $0x178] sm:$0xff]
        %v459 = vunpack.c.l.b16 %v363
        %v460 = vunpack.c.h.b16 %v363
        %v461 = vunpack.c.l.b16 %v364
        %v462 = vunpack.c.h.b16 %v364
        %v463 = vunpack.c.l.b16 %v365
        %v464 = vunpack.c.h.b16 %v365
        %v465 = vunpack.c.l.b16 %v366
        %v466 = vunpack.c.h.b16 %v366
        %v467 = vunpack.c.l.b16 %v367
        %v468 = vunpack.c.h.b16 %v367
        %v469 = vunpack.c.l.b16 %v368
        %v470 = vunpack.c.h.b16 %v368
        %v471 = vunpack.c.l.b16 %v369
        %v472 = vunpack.c.h.b16 %v369
        %v473 = vunpack.c.l.b16 %v370
        %v474 = vunpack.c.h.b16 %v370
        %v475 = vunpack.c.l.b16 %v371
        %v476 = vunpack.c.h.b16 %v371
        %v477 = vunpack.c.l.b16 %v372
        %v478 = vunpack.c.h.b16 %v372
        %v479 = vunpack.c.l.b16 %v373
        %v480 = vunpack.c.h.b16 %v373
        %v481 = vunpack.c.l.b16 %v374
        %v482 = vunpack.c.h.b16 %v374
        %v483 = vunpack.c.l.b16 %v375
        %v484 = vunpack.c.h.b16 %v375
        %v485 = vunpack.c.l.b16 %v376
        %v486 = vunpack.c.h.b16 %v376
        %v487 = vunpack.c.l.b16 %v377
        %v488 = vunpack.c.h.b16 %v377
        %v489 = vunpack.c.l.b16 %v378
        %v490 = vunpack.c.h.b16 %v378
        %v491 = vunpack.c.l.b16 %v379
        %v492 = vunpack.c.h.b16 %v379
        %v493 = vunpack.c.l.b16 %v380
        %v494 = vunpack.c.h.b16 %v380
        %v495 = vunpack.c.l.b16 %v381
        %v496 = vunpack.c.h.b16 %v381
        %v497 = vunpack.c.l.b16 %v382
        %v498 = vunpack.c.h.b16 %v382
        %v499 = vunpack.c.l.b16 %v383
        %v500 = vunpack.c.h.b16 %v383
        %v501 = vunpack.c.l.b16 %v384
        %v502 = vunpack.c.h.b16 %v384
        %v503 = vunpack.c.l.b16 %v385
        %v504 = vunpack.c.h.b16 %v385
        %v505 = vunpack.c.l.b16 %v386
        %v506 = vunpack.c.h.b16 %v386
        %v507 = vunpack.c.l.b16 %v387
        %v508 = vunpack.c.h.b16 %v387
        %v509 = vunpack.c.l.b16 %v388
        %v510 = vunpack.c.h.b16 %v388
        %v511 = vunpack.c.l.b16 %v389
        %v512 = vunpack.c.h.b16 %v389
        %v513 = vunpack.c.l.b16 %v390
        %v514 = vunpack.c.h.b16 %v390
        %v515 = vunpack.c.l.b16 %v391
        %v516 = vunpack.c.h.b16 %v391
        %v517 = vunpack.c.l.b16 %v392
        %v518 = vunpack.c.h.b16 %v392
        %v519 = vunpack.c.l.b16 %v393
        %v520 = vunpack.c.h.b16 %v393
        %v521 = vunpack.c.l.b16 %v394
        %v522 = vunpack.c.h.b16 %v394
        %v523 = vunpack.c.l.b16 %v395
        %v524 = vunpack.c.h.b16 %v395
        %v525 = vunpack.c.l.b16 %v396
        %v526 = vunpack.c.h.b16 %v396
        %v527 = vunpack.c.l.b16 %v397
        %v528 = vunpack.c.h.b16 %v397
        %v529 = vunpack.c.l.b16 %v398
        %v530 = vunpack.c.h.b16 %v398
        %v531 = vunpack.c.l.b16 %v399
        %v532 = vunpack.c.h.b16 %v399
        %v533 = vunpack.c.l.b16 %v400
        %v534 = vunpack.c.h.b16 %v400
        %v535 = vunpack.c.l.b16 %v401
        %v536 = vunpack.c.h.b16 %v401
        %v537 = vunpack.c.l.b16 %v402
        %v538 = vunpack.c.h.b16 %v402
        %v539 = vunpack.c.l.b16 %v403
        %v540 = vunpack.c.h.b16 %v403
        %v541 = vunpack.c.l.b16 %v404
        %v542 = vunpack.c.h.b16 %v404
        %v543 = vunpack.c.l.b16 %v405
        %v544 = vunpack.c.h.b16 %v405
        %v545 = vunpack.c.l.b16 %v406
        %v546 = vunpack.c.h.b16 %v406
        %v547 = vunpack.c.l.b16 %v407
        %v548 = vunpack.c.h.b16 %v407
        %v549 = vunpack.c.l.b16 %v408
        %v550 = vunpack.c.h.b16 %v408
        %v551 = vunpack.c.l.b16 %v409
        %v552 = vunpack.c.h.b16 %v409
        %v553 = vunpack.c.l.b16 %v410
        %v554 = vunpack.c.h.b16 %v410
        %v555 = vpack.c.b16 %v465, %v459
        %v556 = vpack.c.b16 %v466, %v460
        %v557 = vpack.c.b16 %v467, %v461
        %v558 = vpack.c.b16 %v468, %v462
        %v559 = vpack.c.b16 %v469, %v463
        %v560 = vpack.c.b16 %v470, %v464
        %v561 = vpack.c.b16 %v477, %v471
        %v562 = vpack.c.b16 %v478, %v472
        %v563 = vpack.c.b16 %v479, %v473
        %v564 = vpack.c.b16 %v480, %v474
        %v565 = vpack.c.b16 %v481, %v475
        %v566 = vpack.c.b16 %v482, %v476
        %v567 = vpack.c.b16 %v489, %v483
        %v568 = vpack.c.b16 %v490, %v484
        %v569 = vpack.c.b16 %v491, %v485
        %v570 = vpack.c.b16 %v492, %v486
        %v571 = vpack.c.b16 %v493, %v487
        %v572 = vpack.c.b16 %v494, %v488
        %v573 = vpack.c.b16 %v501, %v495
        %v574 = vpack.c.b16 %v502, %v496
        %v575 = vpack.c.b16 %v503, %v497
        %v576 = vpack.c.b16 %v504, %v498
        %v577 = vpack.c.b16 %v505, %v499
        %v578 = vpack.c.b16 %v506, %v500
        %v579 = vpack.c.b16 %v513, %v507
        %v580 = vpack.c.b16 %v514, %v508
        %v581 = vpack.c.b16 %v515, %v509
        %v582 = vpack.c.b16 %v516, %v510
        %v583 = vpack.c.b16 %v517, %v511
        %v584 = vpack.c.b16 %v518, %v512
        %v585 = vpack.c.b16 %v525, %v519
        %v586 = vpack.c.b16 %v526, %v520
        %v587 = vpack.c.b16 %v527, %v521
        %v588 = vpack.c.b16 %v528, %v522
        %v589 = vpack.c.b16 %v529, %v523
        %v590 = vpack.c.b16 %v530, %v524
        %v591 = vpack.c.b16 %v537, %v531
        %v592 = vpack.c.b16 %v538, %v532
        %v593 = vpack.c.b16 %v539, %v533
        %v594 = vpack.c.b16 %v540, %v534
        %v595 = vpack.c.b16 %v541, %v535
        %v596 = vpack.c.b16 %v542, %v536
        %v597 = vpack.c.b16 %v549, %v543
        %v598 = vpack.c.b16 %v550, %v544
        %v599 = vpack.c.b16 %v551, %v545
        %v600 = vpack.c.b16 %v552, %v546
        %v601 = vpack.c.b16 %v553, %v547
        %v602 = vpack.c.b16 %v554, %v548
        %651 = vmatprep.subr.bf16.mxu0 %v598
        %652 = vmatpush1.bf16.msra.mxu0 %v597
        %653 = vmatprep.subr.bf16.mxu0 %v592
        %654 = vmatpush1.bf16.msra.mxu0 %v591
        %655 = vmatprep.subr.bf16.mxu0 %v586
        %656 = vmatpush1.bf16.msra.mxu0 %v585
        %657 = vmatprep.subr.bf16.mxu0 %v580
        %658 = vmatpush1.bf16.msra.mxu0 %v579
        %659 = vmatprep.subr.bf16.mxu0 %v574
        %660 = vmatpush1.bf16.msra.mxu0 %v573
        %661 = vmatprep.subr.bf16.mxu0 %v568
        %662 = vmatpush1.bf16.msra.mxu0 %v567
        %663 = vmatprep.subr.bf16.mxu0 %v562
        %664 = vmatpush1.bf16.msra.mxu0 %v561
        %665 = vmatprep.subr.bf16.mxu0 %v556
        %666 = vmatpush1.bf16.msra.mxu0 %v555
        %667 = vmatprep.subr.bf16.mxu0 0
        %668 = vmatpush2.bf16.msra.mxu0 0
        %669 = vmatprep.subr.bf16.mxu0 0
        %670 = vmatpush2.bf16.msra.mxu0 0
        %671 = vmatprep.subr.bf16.mxu0 0
        %672 = vmatpush2.bf16.msra.mxu0 0
        %673 = vmatprep.subr.bf16.mxu0 0
        %674 = vmatpush2.bf16.msra.mxu0 0
        %675 = vmatprep.subr.bf16.mxu0 0
        %676 = vmatpush2.bf16.msra.mxu0 0
        %677 = vmatprep.subr.bf16.mxu0 0
        %678 = vmatpush2.bf16.msra.mxu0 0
        %679 = vmatprep.subr.bf16.mxu0 0
        %680 = vmatpush2.bf16.msra.mxu0 0
        %681 = vmatprep.subr.bf16.mxu0 0
        %682 = vmatpush2.bf16.msra.mxu0 0
        %683 = vmatprep.mubr.bf16.mxu0 0
        %684 = vmatmul.mubr.bf16.gmra.mxu0 %v347
        %v685 = vpop.f32.mrf.mxu0
        %v686 = vadd.f32 0.0, %v685
        %v687 = vpop.f32.mrf.mxu0
        %v688 = vadd.f32 0.0, %v687
        %v689 = vpop.f32.mrf.mxu0
        %v690 = vadd.f32 0.0, %v689
        %v691 = vpop.f32.mrf.mxu0
        %v692 = vadd.f32 0.0, %v691
        %693 = vmatprep.mubr.bf16.mxu0 0
        %694 = vmatmul.mubr.bf16.gmra.mxu0 %v348
        %v695 = vpop.f32.mrf.mxu0
        %v696 = vadd.f32 0.0, %v695
        %v697 = vpop.f32.mrf.mxu0
        %v698 = vadd.f32 0.0, %v697
        %v699 = vpop.f32.mrf.mxu0
        %v700 = vadd.f32 0.0, %v699
        %v701 = vpop.f32.mrf.mxu0
        %v702 = vadd.f32 0.0, %v701
        %703 = vmatprep.mubr.bf16.mxu0 0
        %704 = vmatmul.mubr.bf16.gmra.mxu0 %v349
        %v705 = vpop.f32.mrf.mxu0
        %v706 = vadd.f32 0.0, %v705
        %v707 = vpop.f32.mrf.mxu0
        %v708 = vadd.f32 0.0, %v707
        %v709 = vpop.f32.mrf.mxu0
        %v710 = vadd.f32 0.0, %v709
        %v711 = vpop.f32.mrf.mxu0
        %v712 = vadd.f32 0.0, %v711
        %713 = vmatprep.mubr.bf16.mxu0 0
        %714 = vmatmul.mubr.bf16.gmra.mxu0 %v350
        %v715 = vpop.f32.mrf.mxu0
        %v716 = vadd.f32 0.0, %v715
        %v717 = vpop.f32.mrf.mxu0
        %v718 = vadd.f32 0.0, %v717
        %v719 = vpop.f32.mrf.mxu0
        %v720 = vadd.f32 0.0, %v719
        %v721 = vpop.f32.mrf.mxu0
        %v722 = vadd.f32 0.0, %v721
        %723 = vmatprep.mubr.bf16.mxu0 0
        %724 = vmatmul.mubr.bf16.gmra.mxu0 %v351
        %v725 = vpop.f32.mrf.mxu0
        %v726 = vadd.f32 0.0, %v725
        %v727 = vpop.f32.mrf.mxu0
        %v728 = vadd.f32 0.0, %v727
        %v729 = vpop.f32.mrf.mxu0
        %v730 = vadd.f32 0.0, %v729
        %v731 = vpop.f32.mrf.mxu0
        %v732 = vadd.f32 0.0, %v731
        %733 = vmatprep.mubr.bf16.mxu0 0
        %734 = vmatmul.mubr.bf16.gmra.mxu0 %v352
        %v735 = vpop.f32.mrf.mxu0
        %v736 = vadd.f32 0.0, %v735
        %v737 = vpop.f32.mrf.mxu0
        %v738 = vadd.f32 0.0, %v737
        %v739 = vpop.f32.mrf.mxu0
        %v740 = vadd.f32 0.0, %v739
        %v741 = vpop.f32.mrf.mxu0
        %v742 = vadd.f32 0.0, %v741
        %743 = vmatprep.mubr.bf16.mxu0 0
        %744 = vmatmul.mubr.bf16.gmra.mxu0 %v353
        %v745 = vpop.f32.mrf.mxu0
        %v746 = vadd.f32 0.0, %v745
        %v747 = vpop.f32.mrf.mxu0
        %v748 = vadd.f32 0.0, %v747
        %v749 = vpop.f32.mrf.mxu0
        %v750 = vadd.f32 0.0, %v749
        %v751 = vpop.f32.mrf.mxu0
        %v752 = vadd.f32 0.0, %v751
        %753 = vmatprep.mubr.bf16.mxu0 0
        %754 = vmatmul.mubr.bf16.gmra.mxu0 %v354
        %v755 = vpop.f32.mrf.mxu0
        %v756 = vadd.f32 0.0, %v755
        %v757 = vpop.f32.mrf.mxu0
        %v758 = vadd.f32 0.0, %v757
        %v759 = vpop.f32.mrf.mxu0
        %v760 = vadd.f32 0.0, %v759
        %v761 = vpop.f32.mrf.mxu0
        %v762 = vadd.f32 0.0, %v761
        %763 = vmatprep.mubr.bf16.mxu0 0
        %764 = vmatmul.mubr.bf16.gmra.mxu0 %v355
        %v765 = vpop.f32.mrf.mxu0
        %v766 = vadd.f32 0.0, %v765
        %v767 = vpop.f32.mrf.mxu0
        %v768 = vadd.f32 0.0, %v767
        %v769 = vpop.f32.mrf.mxu0
        %v770 = vadd.f32 0.0, %v769
        %v771 = vpop.f32.mrf.mxu0
        %v772 = vadd.f32 0.0, %v771
        %773 = vmatprep.mubr.bf16.mxu0 0
        %774 = vmatmul.mubr.bf16.gmra.mxu0 %v356
        %v775 = vpop.f32.mrf.mxu0
        %v776 = vadd.f32 0.0, %v775
        %v777 = vpop.f32.mrf.mxu0
        %v778 = vadd.f32 0.0, %v777
        %v779 = vpop.f32.mrf.mxu0
        %v780 = vadd.f32 0.0, %v779
        %v781 = vpop.f32.mrf.mxu0
        %v782 = vadd.f32 0.0, %v781
        %783 = vmatprep.mubr.bf16.mxu0 0
        %784 = vmatmul.mubr.bf16.gmra.mxu0 %v357
        %v785 = vpop.f32.mrf.mxu0
        %v786 = vadd.f32 0.0, %v785
        %v787 = vpop.f32.mrf.mxu0
        %v788 = vadd.f32 0.0, %v787
        %v789 = vpop.f32.mrf.mxu0
        %v790 = vadd.f32 0.0, %v789
        %v791 = vpop.f32.mrf.mxu0
        %v792 = vadd.f32 0.0, %v791
        %793 = vmatprep.mubr.bf16.mxu0 0
        %794 = vmatmul.mubr.bf16.gmra.mxu0 %v358
        %v795 = vpop.f32.mrf.mxu0
        %v796 = vadd.f32 0.0, %v795
        %v797 = vpop.f32.mrf.mxu0
        %v798 = vadd.f32 0.0, %v797
        %v799 = vpop.f32.mrf.mxu0
        %v800 = vadd.f32 0.0, %v799
        %v801 = vpop.f32.mrf.mxu0
        %v802 = vadd.f32 0.0, %v801
        %803 = vmatprep.mubr.bf16.mxu0 0
        %804 = vmatmul.mubr.bf16.gmra.mxu0 %v359
        %v805 = vpop.f32.mrf.mxu0
        %v806 = vadd.f32 0.0, %v805
        %v807 = vpop.f32.mrf.mxu0
        %v808 = vadd.f32 0.0, %v807
        %v809 = vpop.f32.mrf.mxu0
        %v810 = vadd.f32 0.0, %v809
        %v811 = vpop.f32.mrf.mxu0
        %v812 = vadd.f32 0.0, %v811
        %813 = vmatprep.mubr.bf16.mxu0 0
        %814 = vmatmul.mubr.bf16.gmra.mxu0 %v360
        %v815 = vpop.f32.mrf.mxu0
        %v816 = vadd.f32 0.0, %v815
        %v817 = vpop.f32.mrf.mxu0
        %v818 = vadd.f32 0.0, %v817
        %v819 = vpop.f32.mrf.mxu0
        %v820 = vadd.f32 0.0, %v819
        %v821 = vpop.f32.mrf.mxu0
        %v822 = vadd.f32 0.0, %v821
        %823 = vmatprep.mubr.bf16.mxu0 0
        %824 = vmatmul.mubr.bf16.gmra.mxu0 %v361
        %v825 = vpop.f32.mrf.mxu0
        %v826 = vadd.f32 0.0, %v825
        %v827 = vpop.f32.mrf.mxu0
        %v828 = vadd.f32 0.0, %v827
        %v829 = vpop.f32.mrf.mxu0
        %v830 = vadd.f32 0.0, %v829
        %v831 = vpop.f32.mrf.mxu0
        %v832 = vadd.f32 0.0, %v831
        %833 = vmatprep.mubr.bf16.mxu0 0
        %834 = vmatmul.mubr.bf16.gmra.mxu0 %v362
        %v835 = vpop.f32.mrf.mxu0
        %v836 = vadd.f32 0.0, %v835
        %v837 = vpop.f32.mrf.mxu0
        %v838 = vadd.f32 0.0, %v837
        %v839 = vpop.f32.mrf.mxu0
        %v840 = vadd.f32 0.0, %v839
        %v841 = vpop.f32.mrf.mxu0
        %v842 = vadd.f32 0.0, %v841
        %843 = vdwg.mxu0
        %844 = vmatprep.subr.bf16.mxu0 %v600
        %845 = vmatpush1.bf16.msra.mxu0 %v599
        %846 = vmatprep.subr.bf16.mxu0 %v594
        %847 = vmatpush1.bf16.msra.mxu0 %v593
        %848 = vmatprep.subr.bf16.mxu0 %v588
        %849 = vmatpush1.bf16.msra.mxu0 %v587
        %850 = vmatprep.subr.bf16.mxu0 %v582
        %851 = vmatpush1.bf16.msra.mxu0 %v581
        %852 = vmatprep.subr.bf16.mxu0 %v576
        %853 = vmatpush1.bf16.msra.mxu0 %v575
        %854 = vmatprep.subr.bf16.mxu0 %v570
        %855 = vmatpush1.bf16.msra.mxu0 %v569
        %856 = vmatprep.subr.bf16.mxu0 %v564
        %857 = vmatpush1.bf16.msra.mxu0 %v563
        %858 = vmatprep.subr.bf16.mxu0 %v558
        %859 = vmatpush1.bf16.msra.mxu0 %v557
        %860 = vmatprep.subr.bf16.mxu0 0
        %861 = vmatpush2.bf16.msra.mxu0 0
        %862 = vmatprep.subr.bf16.mxu0 0
        %863 = vmatpush2.bf16.msra.mxu0 0
        %864 = vmatprep.subr.bf16.mxu0 0
        %865 = vmatpush2.bf16.msra.mxu0 0
        %866 = vmatprep.subr.bf16.mxu0 0
        %867 = vmatpush2.bf16.msra.mxu0 0
        %868 = vmatprep.subr.bf16.mxu0 0
        %869 = vmatpush2.bf16.msra.mxu0 0
        %870 = vmatprep.subr.bf16.mxu0 0
        %871 = vmatpush2.bf16.msra.mxu0 0
        %872 = vmatprep.subr.bf16.mxu0 0
        %873 = vmatpush2.bf16.msra.mxu0 0
        %874 = vmatprep.subr.bf16.mxu0 0
        %875 = vmatpush2.bf16.msra.mxu0 0
        %876 = vmatprep.mubr.bf16.mxu0 0
        %877 = vmatmul.mubr.bf16.gmra.mxu0 %v347
        %v878 = vpop.f32.mrf.mxu0
        %v879 = vadd.f32 0.0, %v878
        %v880 = vpop.f32.mrf.mxu0
        %v881 = vadd.f32 0.0, %v880
        %v882 = vpop.f32.mrf.mxu0
        %v883 = vadd.f32 0.0, %v882
        %v884 = vpop.f32.mrf.mxu0
        %v885 = vadd.f32 0.0, %v884
        %886 = vmatprep.mubr.bf16.mxu0 0
        %887 = vmatmul.mubr.bf16.gmra.mxu0 %v348
        %v888 = vpop.f32.mrf.mxu0
        %v889 = vadd.f32 0.0, %v888
        %v890 = vpop.f32.mrf.mxu0
        %v891 = vadd.f32 0.0, %v890
        %v892 = vpop.f32.mrf.mxu0
        %v893 = vadd.f32 0.0, %v892
        %v894 = vpop.f32.mrf.mxu0
        %v895 = vadd.f32 0.0, %v894
        %896 = vmatprep.mubr.bf16.mxu0 0
        %897 = vmatmul.mubr.bf16.gmra.mxu0 %v349
        %v898 = vpop.f32.mrf.mxu0
        %v899 = vadd.f32 0.0, %v898
        %v900 = vpop.f32.mrf.mxu0
        %v901 = vadd.f32 0.0, %v900
        %v902 = vpop.f32.mrf.mxu0
        %v903 = vadd.f32 0.0, %v902
        %v904 = vpop.f32.mrf.mxu0
        %v905 = vadd.f32 0.0, %v904
        %906 = vmatprep.mubr.bf16.mxu0 0
        %907 = vmatmul.mubr.bf16.gmra.mxu0 %v350
        %v908 = vpop.f32.mrf.mxu0
        %v909 = vadd.f32 0.0, %v908
        %v910 = vpop.f32.mrf.mxu0
        %v911 = vadd.f32 0.0, %v910
        %v912 = vpop.f32.mrf.mxu0
        %v913 = vadd.f32 0.0, %v912
        %v914 = vpop.f32.mrf.mxu0
        %v915 = vadd.f32 0.0, %v914
        %916 = vmatprep.mubr.bf16.mxu0 0
        %917 = vmatmul.mubr.bf16.gmra.mxu0 %v351
        %v918 = vpop.f32.mrf.mxu0
        %v919 = vadd.f32 0.0, %v918
        %v920 = vpop.f32.mrf.mxu0
        %v921 = vadd.f32 0.0, %v920
        %v922 = vpop.f32.mrf.mxu0
        %v923 = vadd.f32 0.0, %v922
        %v924 = vpop.f32.mrf.mxu0
        %v925 = vadd.f32 0.0, %v924
        %926 = vmatprep.mubr.bf16.mxu0 0
        %927 = vmatmul.mubr.bf16.gmra.mxu0 %v352
        %v928 = vpop.f32.mrf.mxu0
        %v929 = vadd.f32 0.0, %v928
        %v930 = vpop.f32.mrf.mxu0
        %v931 = vadd.f32 0.0, %v930
        %v932 = vpop.f32.mrf.mxu0
        %v933 = vadd.f32 0.0, %v932
        %v934 = vpop.f32.mrf.mxu0
        %v935 = vadd.f32 0.0, %v934
        %936 = vmatprep.mubr.bf16.mxu0 0
        %937 = vmatmul.mubr.bf16.gmra.mxu0 %v353
        %v938 = vpop.f32.mrf.mxu0
        %v939 = vadd.f32 0.0, %v938
        %v940 = vpop.f32.mrf.mxu0
        %v941 = vadd.f32 0.0, %v940
        %v942 = vpop.f32.mrf.mxu0
        %v943 = vadd.f32 0.0, %v942
        %v944 = vpop.f32.mrf.mxu0
        %v945 = vadd.f32 0.0, %v944
        %946 = vmatprep.mubr.bf16.mxu0 0
        %947 = vmatmul.mubr.bf16.gmra.mxu0 %v354
        %v948 = vpop.f32.mrf.mxu0
        %v949 = vadd.f32 0.0, %v948
        %v950 = vpop.f32.mrf.mxu0
        %v951 = vadd.f32 0.0, %v950
        %v952 = vpop.f32.mrf.mxu0
        %v953 = vadd.f32 0.0, %v952
        %v954 = vpop.f32.mrf.mxu0
        %v955 = vadd.f32 0.0, %v954
        %956 = vmatprep.mubr.bf16.mxu0 0
        %957 = vmatmul.mubr.bf16.gmra.mxu0 %v355
        %v958 = vpop.f32.mrf.mxu0
        %v959 = vadd.f32 0.0, %v958
        %v960 = vpop.f32.mrf.mxu0
        %v961 = vadd.f32 0.0, %v960
        %v962 = vpop.f32.mrf.mxu0
        %v963 = vadd.f32 0.0, %v962
        %v964 = vpop.f32.mrf.mxu0
        %v965 = vadd.f32 0.0, %v964
        %966 = vmatprep.mubr.bf16.mxu0 0
        %967 = vmatmul.mubr.bf16.gmra.mxu0 %v356
        %v968 = vpop.f32.mrf.mxu0
        %v969 = vadd.f32 0.0, %v968
        %v970 = vpop.f32.mrf.mxu0
        %v971 = vadd.f32 0.0, %v970
        %v972 = vpop.f32.mrf.mxu0
        %v973 = vadd.f32 0.0, %v972
        %v974 = vpop.f32.mrf.mxu0
        %v975 = vadd.f32 0.0, %v974
        %976 = vmatprep.mubr.bf16.mxu0 0
        %977 = vmatmul.mubr.bf16.gmra.mxu0 %v357
        %v978 = vpop.f32.mrf.mxu0
        %v979 = vadd.f32 0.0, %v978
        %v980 = vpop.f32.mrf.mxu0
        %v981 = vadd.f32 0.0, %v980
        %v982 = vpop.f32.mrf.mxu0
        %v983 = vadd.f32 0.0, %v982
        %v984 = vpop.f32.mrf.mxu0
        %v985 = vadd.f32 0.0, %v984
        %986 = vmatprep.mubr.bf16.mxu0 0
        %987 = vmatmul.mubr.bf16.gmra.mxu0 %v358
        %v988 = vpop.f32.mrf.mxu0
        %v989 = vadd.f32 0.0, %v988
        %v990 = vpop.f32.mrf.mxu0
        %v991 = vadd.f32 0.0, %v990
        %v992 = vpop.f32.mrf.mxu0
        %v993 = vadd.f32 0.0, %v992
        %v994 = vpop.f32.mrf.mxu0
        %v995 = vadd.f32 0.0, %v994
        %996 = vmatprep.mubr.bf16.mxu0 0
        %997 = vmatmul.mubr.bf16.gmra.mxu0 %v359
        %v998 = vpop.f32.mrf.mxu0
        %v999 = vadd.f32 0.0, %v998
        %v1000 = vpop.f32.mrf.mxu0
        %v1001 = vadd.f32 0.0, %v1000
        %v1002 = vpop.f32.mrf.mxu0
        %v1003 = vadd.f32 0.0, %v1002
        %v1004 = vpop.f32.mrf.mxu0
        %v1005 = vadd.f32 0.0, %v1004
        %1006 = vmatprep.mubr.bf16.mxu0 0
        %1007 = vmatmul.mubr.bf16.gmra.mxu0 %v360
        %v1008 = vpop.f32.mrf.mxu0
        %v1009 = vadd.f32 0.0, %v1008
        %v1010 = vpop.f32.mrf.mxu0
        %v1011 = vadd.f32 0.0, %v1010
        %v1012 = vpop.f32.mrf.mxu0
        %v1013 = vadd.f32 0.0, %v1012
        %v1014 = vpop.f32.mrf.mxu0
        %v1015 = vadd.f32 0.0, %v1014
        %1016 = vmatprep.mubr.bf16.mxu0 0
        %1017 = vmatmul.mubr.bf16.gmra.mxu0 %v361
        %v1018 = vpop.f32.mrf.mxu0
        %v1019 = vadd.f32 0.0, %v1018
        %v1020 = vpop.f32.mrf.mxu0
        %v1021 = vadd.f32 0.0, %v1020
        %v1022 = vpop.f32.mrf.mxu0
        %v1023 = vadd.f32 0.0, %v1022
        %v1024 = vpop.f32.mrf.mxu0
        %v1025 = vadd.f32 0.0, %v1024
        %1026 = vmatprep.mubr.bf16.mxu0 0
        %1027 = vmatmul.mubr.bf16.gmra.mxu0 %v362
        %v1028 = vpop.f32.mrf.mxu0
        %v1029 = vadd.f32 0.0, %v1028
        %v1030 = vpop.f32.mrf.mxu0
        %v1031 = vadd.f32 0.0, %v1030
        %v1032 = vpop.f32.mrf.mxu0
        %v1033 = vadd.f32 0.0, %v1032
        %v1034 = vpop.f32.mrf.mxu0
        %v1035 = vadd.f32 0.0, %v1034
        %1036 = vdwg.mxu0
        %1037 = vmatprep.subr.bf16.mxu0 %v602
        %1038 = vmatpush1.bf16.msra.mxu0 %v601
        %1039 = vmatprep.subr.bf16.mxu0 %v596
        %1040 = vmatpush1.bf16.msra.mxu0 %v595
        %1041 = vmatprep.subr.bf16.mxu0 %v590
        %1042 = vmatpush1.bf16.msra.mxu0 %v589
        %1043 = vmatprep.subr.bf16.mxu0 %v584
        %1044 = vmatpush1.bf16.msra.mxu0 %v583
        %1045 = vmatprep.subr.bf16.mxu0 %v578
        %1046 = vmatpush1.bf16.msra.mxu0 %v577
        %1047 = vmatprep.subr.bf16.mxu0 %v572
        %1048 = vmatpush1.bf16.msra.mxu0 %v571
        %1049 = vmatprep.subr.bf16.mxu0 %v566
        %1050 = vmatpush1.bf16.msra.mxu0 %v565
        %1051 = vmatprep.subr.bf16.mxu0 %v560
        %1052 = vmatpush1.bf16.msra.mxu0 %v559
        %1053 = vmatprep.subr.bf16.mxu0 0
        %1054 = vmatpush2.bf16.msra.mxu0 0
        %1055 = vmatprep.subr.bf16.mxu0 0
        %1056 = vmatpush2.bf16.msra.mxu0 0
        %1057 = vmatprep.subr.bf16.mxu0 0
        %1058 = vmatpush2.bf16.msra.mxu0 0
        %1059 = vmatprep.subr.bf16.mxu0 0
        %1060 = vmatpush2.bf16.msra.mxu0 0
        %1061 = vmatprep.subr.bf16.mxu0 0
        %1062 = vmatpush2.bf16.msra.mxu0 0
        %1063 = vmatprep.subr.bf16.mxu0 0
        %1064 = vmatpush2.bf16.msra.mxu0 0
        %1065 = vmatprep.subr.bf16.mxu0 0
        %1066 = vmatpush2.bf16.msra.mxu0 0
        %1067 = vmatprep.subr.bf16.mxu0 0
        %1068 = vmatpush2.bf16.msra.mxu0 0
        %1069 = vmatprep.mubr.bf16.mxu0 0
        %1070 = vmatmul.mubr.bf16.gmra.mxu0 %v347
        %v1071 = vpop.f32.mrf.mxu0
        %v1072 = vadd.f32 0.0, %v1071
        %v1073 = vpop.f32.mrf.mxu0
        %v1074 = vadd.f32 0.0, %v1073
        %v1075 = vpop.f32.mrf.mxu0
        %v1076 = vadd.f32 0.0, %v1075
        %v1077 = vpop.f32.mrf.mxu0
        %v1078 = vadd.f32 0.0, %v1077
        %1079 = vmatprep.mubr.bf16.mxu0 0
        %1080 = vmatmul.mubr.bf16.gmra.mxu0 %v348
        %v1081 = vpop.f32.mrf.mxu0
        %v1082 = vadd.f32 0.0, %v1081
        %v1083 = vpop.f32.mrf.mxu0
        %v1084 = vadd.f32 0.0, %v1083
        %v1085 = vpop.f32.mrf.mxu0
        %v1086 = vadd.f32 0.0, %v1085
        %v1087 = vpop.f32.mrf.mxu0
        %v1088 = vadd.f32 0.0, %v1087
        %1089 = vmatprep.mubr.bf16.mxu0 0
        %1090 = vmatmul.mubr.bf16.gmra.mxu0 %v349
        %v1091 = vpop.f32.mrf.mxu0
        %v1092 = vadd.f32 0.0, %v1091
        %v1093 = vpop.f32.mrf.mxu0
        %v1094 = vadd.f32 0.0, %v1093
        %v1095 = vpop.f32.mrf.mxu0
        %v1096 = vadd.f32 0.0, %v1095
        %v1097 = vpop.f32.mrf.mxu0
        %v1098 = vadd.f32 0.0, %v1097
        %1099 = vmatprep.mubr.bf16.mxu0 0
        %1100 = vmatmul.mubr.bf16.gmra.mxu0 %v350
        %v1101 = vpop.f32.mrf.mxu0
        %v1102 = vadd.f32 0.0, %v1101
        %v1103 = vpop.f32.mrf.mxu0
        %v1104 = vadd.f32 0.0, %v1103
        %v1105 = vpop.f32.mrf.mxu0
        %v1106 = vadd.f32 0.0, %v1105
        %v1107 = vpop.f32.mrf.mxu0
        %v1108 = vadd.f32 0.0, %v1107
        %1109 = vmatprep.mubr.bf16.mxu0 0
        %1110 = vmatmul.mubr.bf16.gmra.mxu0 %v351
        %v1111 = vpop.f32.mrf.mxu0
        %v1112 = vadd.f32 0.0, %v1111
        %v1113 = vpop.f32.mrf.mxu0
        %v1114 = vadd.f32 0.0, %v1113
        %v1115 = vpop.f32.mrf.mxu0
        %v1116 = vadd.f32 0.0, %v1115
        %v1117 = vpop.f32.mrf.mxu0
        %v1118 = vadd.f32 0.0, %v1117
        %1119 = vmatprep.mubr.bf16.mxu0 0
        %1120 = vmatmul.mubr.bf16.gmra.mxu0 %v352
        %v1121 = vpop.f32.mrf.mxu0
        %v1122 = vadd.f32 0.0, %v1121
        %v1123 = vpop.f32.mrf.mxu0
        %v1124 = vadd.f32 0.0, %v1123
        %v1125 = vpop.f32.mrf.mxu0
        %v1126 = vadd.f32 0.0, %v1125
        %v1127 = vpop.f32.mrf.mxu0
        %v1128 = vadd.f32 0.0, %v1127
        %1129 = vmatprep.mubr.bf16.mxu0 0
        %1130 = vmatmul.mubr.bf16.gmra.mxu0 %v353
        %v1131 = vpop.f32.mrf.mxu0
        %v1132 = vadd.f32 0.0, %v1131
        %v1133 = vpop.f32.mrf.mxu0
        %v1134 = vadd.f32 0.0, %v1133
        %v1135 = vpop.f32.mrf.mxu0
        %v1136 = vadd.f32 0.0, %v1135
        %v1137 = vpop.f32.mrf.mxu0
        %v1138 = vadd.f32 0.0, %v1137
        %1139 = vmatprep.mubr.bf16.mxu0 0
        %1140 = vmatmul.mubr.bf16.gmra.mxu0 %v354
        %v1141 = vpop.f32.mrf.mxu0
        %v1142 = vadd.f32 0.0, %v1141
        %v1143 = vpop.f32.mrf.mxu0
        %v1144 = vadd.f32 0.0, %v1143
        %v1145 = vpop.f32.mrf.mxu0
        %v1146 = vadd.f32 0.0, %v1145
        %v1147 = vpop.f32.mrf.mxu0
        %v1148 = vadd.f32 0.0, %v1147
        %1149 = vmatprep.mubr.bf16.mxu0 0
        %1150 = vmatmul.mubr.bf16.gmra.mxu0 %v355
        %v1151 = vpop.f32.mrf.mxu0
        %v1152 = vadd.f32 0.0, %v1151
        %v1153 = vpop.f32.mrf.mxu0
        %v1154 = vadd.f32 0.0, %v1153
        %v1155 = vpop.f32.mrf.mxu0
        %v1156 = vadd.f32 0.0, %v1155
        %v1157 = vpop.f32.mrf.mxu0
        %v1158 = vadd.f32 0.0, %v1157
        %1159 = vmatprep.mubr.bf16.mxu0 0
        %1160 = vmatmul.mubr.bf16.gmra.mxu0 %v356
        %v1161 = vpop.f32.mrf.mxu0
        %v1162 = vadd.f32 0.0, %v1161
        %v1163 = vpop.f32.mrf.mxu0
        %v1164 = vadd.f32 0.0, %v1163
        %v1165 = vpop.f32.mrf.mxu0
        %v1166 = vadd.f32 0.0, %v1165
        %v1167 = vpop.f32.mrf.mxu0
        %v1168 = vadd.f32 0.0, %v1167
        %1169 = vmatprep.mubr.bf16.mxu0 0
        %1170 = vmatmul.mubr.bf16.gmra.mxu0 %v357
        %v1171 = vpop.f32.mrf.mxu0
        %v1172 = vadd.f32 0.0, %v1171
        %v1173 = vpop.f32.mrf.mxu0
        %v1174 = vadd.f32 0.0, %v1173
        %v1175 = vpop.f32.mrf.mxu0
        %v1176 = vadd.f32 0.0, %v1175
        %v1177 = vpop.f32.mrf.mxu0
        %v1178 = vadd.f32 0.0, %v1177
        %1179 = vmatprep.mubr.bf16.mxu0 0
        %1180 = vmatmul.mubr.bf16.gmra.mxu0 %v358
        %v1181 = vpop.f32.mrf.mxu0
        %v1182 = vadd.f32 0.0, %v1181
        %v1183 = vpop.f32.mrf.mxu0
        %v1184 = vadd.f32 0.0, %v1183
        %v1185 = vpop.f32.mrf.mxu0
        %v1186 = vadd.f32 0.0, %v1185
        %v1187 = vpop.f32.mrf.mxu0
        %v1188 = vadd.f32 0.0, %v1187
        %1189 = vmatprep.mubr.bf16.mxu0 0
        %1190 = vmatmul.mubr.bf16.gmra.mxu0 %v359
        %v1191 = vpop.f32.mrf.mxu0
        %v1192 = vadd.f32 0.0, %v1191
        %v1193 = vpop.f32.mrf.mxu0
        %v1194 = vadd.f32 0.0, %v1193
        %v1195 = vpop.f32.mrf.mxu0
        %v1196 = vadd.f32 0.0, %v1195
        %v1197 = vpop.f32.mrf.mxu0
        %v1198 = vadd.f32 0.0, %v1197
        %1199 = vmatprep.mubr.bf16.mxu0 0
        %1200 = vmatmul.mubr.bf16.gmra.mxu0 %v360
        %v1201 = vpop.f32.mrf.mxu0
        %v1202 = vadd.f32 0.0, %v1201
        %v1203 = vpop.f32.mrf.mxu0
        %v1204 = vadd.f32 0.0, %v1203
        %v1205 = vpop.f32.mrf.mxu0
        %v1206 = vadd.f32 0.0, %v1205
        %v1207 = vpop.f32.mrf.mxu0
        %v1208 = vadd.f32 0.0, %v1207
        %1209 = vmatprep.mubr.bf16.mxu0 0
        %1210 = vmatmul.mubr.bf16.gmra.mxu0 %v361
        %v1211 = vpop.f32.mrf.mxu0
        %v1212 = vadd.f32 0.0, %v1211
        %v1213 = vpop.f32.mrf.mxu0
        %v1214 = vadd.f32 0.0, %v1213
        %v1215 = vpop.f32.mrf.mxu0
        %v1216 = vadd.f32 0.0, %v1215
        %v1217 = vpop.f32.mrf.mxu0
        %v1218 = vadd.f32 0.0, %v1217
        %1219 = vmatprep.mubr.bf16.mxu0 0
        %1220 = vmatmul.mubr.bf16.gmra.mxu0 %v362
        %v1221 = vpop.f32.mrf.mxu0
        %v1222 = vadd.f32 0.0, %v1221
        %v1223 = vpop.f32.mrf.mxu0
        %v1224 = vadd.f32 0.0, %v1223
        %v1225 = vpop.f32.mrf.mxu0
        %v1226 = vadd.f32 0.0, %v1225
        %v1227 = vpop.f32.mrf.mxu0
        %v1228 = vadd.f32 0.0, %v1227
        %1229 = vdwg.mxu0
        %v1230 = vpack.c.bf16 %v690, %v686
        %v1231 = vpack.c.bf16 %v692, %v688
        %v1232 = vpack.c.bf16 %v700, %v696
        %v1233 = vpack.c.bf16 %v702, %v698
        %v1234 = vpack.c.bf16 %v710, %v706
        %v1235 = vpack.c.bf16 %v712, %v708
        %v1236 = vpack.c.bf16 %v720, %v716
        %v1237 = vpack.c.bf16 %v722, %v718
        %v1238 = vpack.c.bf16 %v730, %v726
        %v1239 = vpack.c.bf16 %v732, %v728
        %v1240 = vpack.c.bf16 %v740, %v736
        %v1241 = vpack.c.bf16 %v742, %v738
        %v1242 = vpack.c.bf16 %v750, %v746
        %v1243 = vpack.c.bf16 %v752, %v748
        %v1244 = vpack.c.bf16 %v760, %v756
        %v1245 = vpack.c.bf16 %v762, %v758
        %v1246 = vpack.c.bf16 %v770, %v766
        %v1247 = vpack.c.bf16 %v772, %v768
        %v1248 = vpack.c.bf16 %v780, %v776
        %v1249 = vpack.c.bf16 %v782, %v778
        %v1250 = vpack.c.bf16 %v790, %v786
        %v1251 = vpack.c.bf16 %v792, %v788
        %v1252 = vpack.c.bf16 %v800, %v796
        %v1253 = vpack.c.bf16 %v802, %v798
        %v1254 = vpack.c.bf16 %v810, %v806
        %v1255 = vpack.c.bf16 %v812, %v808
        %v1256 = vpack.c.bf16 %v820, %v816
        %v1257 = vpack.c.bf16 %v822, %v818
        %v1258 = vpack.c.bf16 %v830, %v826
        %v1259 = vpack.c.bf16 %v832, %v828
        %v1260 = vpack.c.bf16 %v840, %v836
        %v1261 = vpack.c.bf16 %v842, %v838
        %v1294 = vunpack.c.l.b16 %v1230
        %v1295 = vunpack.c.l.b16 %v1231
        %v1296 = vunpack.c.h.b16 %v1230
        %v1297 = vunpack.c.h.b16 %v1231
        %v1298 = vunpack.c.l.b16 %v1232
        %v1299 = vunpack.c.l.b16 %v1233
        %v1300 = vunpack.c.h.b16 %v1232
        %v1301 = vunpack.c.h.b16 %v1233
        %v1302 = vunpack.c.l.b16 %v1234
        %v1303 = vunpack.c.l.b16 %v1235
        %v1304 = vunpack.c.h.b16 %v1234
        %v1305 = vunpack.c.h.b16 %v1235
        %v1306 = vunpack.c.l.b16 %v1236
        %v1307 = vunpack.c.l.b16 %v1237
        %v1308 = vunpack.c.h.b16 %v1236
        %v1309 = vunpack.c.h.b16 %v1237
        %v1310 = vunpack.c.l.b16 %v1238
        %v1311 = vunpack.c.l.b16 %v1239
        %v1312 = vunpack.c.h.b16 %v1238
        %v1313 = vunpack.c.h.b16 %v1239
        %v1314 = vunpack.c.l.b16 %v1240
        %v1315 = vunpack.c.l.b16 %v1241
        %v1316 = vunpack.c.h.b16 %v1240
        %v1317 = vunpack.c.h.b16 %v1241
        %v1318 = vunpack.c.l.b16 %v1242
        %v1319 = vunpack.c.l.b16 %v1243
        %v1320 = vunpack.c.h.b16 %v1242
        %v1321 = vunpack.c.h.b16 %v1243
        %v1322 = vunpack.c.l.b16 %v1244
        %v1323 = vunpack.c.l.b16 %v1245
        %v1324 = vunpack.c.h.b16 %v1244
        %v1325 = vunpack.c.h.b16 %v1245
        %v1326 = vunpack.c.l.b16 %v1246
        %v1327 = vunpack.c.l.b16 %v1247
        %v1328 = vunpack.c.h.b16 %v1246
        %v1329 = vunpack.c.h.b16 %v1247
        %v1330 = vunpack.c.l.b16 %v1248
        %v1331 = vunpack.c.l.b16 %v1249
        %v1332 = vunpack.c.h.b16 %v1248
        %v1333 = vunpack.c.h.b16 %v1249
        %v1334 = vunpack.c.l.b16 %v1250
        %v1335 = vunpack.c.l.b16 %v1251
        %v1336 = vunpack.c.h.b16 %v1250
        %v1337 = vunpack.c.h.b16 %v1251
        %v1338 = vunpack.c.l.b16 %v1252
        %v1339 = vunpack.c.l.b16 %v1253
        %v1340 = vunpack.c.h.b16 %v1252
        %v1341 = vunpack.c.h.b16 %v1253
        %v1342 = vunpack.c.l.b16 %v1254
        %v1343 = vunpack.c.l.b16 %v1255
        %v1344 = vunpack.c.h.b16 %v1254
        %v1345 = vunpack.c.h.b16 %v1255
        %v1346 = vunpack.c.l.b16 %v1256
        %v1347 = vunpack.c.l.b16 %v1257
        %v1348 = vunpack.c.h.b16 %v1256
        %v1349 = vunpack.c.h.b16 %v1257
        %v1350 = vunpack.c.l.b16 %v1258
        %v1351 = vunpack.c.l.b16 %v1259
        %v1352 = vunpack.c.h.b16 %v1258
        %v1353 = vunpack.c.h.b16 %v1259
        %v1354 = vunpack.c.l.b16 %v1260
        %v1355 = vunpack.c.l.b16 %v1261
        %v1356 = vunpack.c.h.b16 %v1260
        %v1357 = vunpack.c.h.b16 %v1261
        %v1358 = vpack.i.b16 %v1295, %v1294
        %v1360 = vpack.i.b16 %v1297, %v1296
        %v1362 = vpack.i.b16 %v1299, %v1298
        %v1364 = vpack.i.b16 %v1301, %v1300
        %v1366 = vpack.i.b16 %v1303, %v1302
        %v1368 = vpack.i.b16 %v1305, %v1304
        %v1370 = vpack.i.b16 %v1307, %v1306
        %v1372 = vpack.i.b16 %v1309, %v1308
        %v1374 = vpack.i.b16 %v1311, %v1310
        %v1376 = vpack.i.b16 %v1313, %v1312
        %v1378 = vpack.i.b16 %v1315, %v1314
        %v1380 = vpack.i.b16 %v1317, %v1316
        %v1382 = vpack.i.b16 %v1319, %v1318
        %v1384 = vpack.i.b16 %v1321, %v1320
        %v1386 = vpack.i.b16 %v1323, %v1322
        %v1388 = vpack.i.b16 %v1325, %v1324
        %v1390 = vpack.i.b16 %v1327, %v1326
        %v1392 = vpack.i.b16 %v1329, %v1328
        %v1394 = vpack.i.b16 %v1331, %v1330
        %v1396 = vpack.i.b16 %v1333, %v1332
        %v1398 = vpack.i.b16 %v1335, %v1334
        %v1400 = vpack.i.b16 %v1337, %v1336
        %v1402 = vpack.i.b16 %v1339, %v1338
        %v1404 = vpack.i.b16 %v1341, %v1340
        %v1406 = vpack.i.b16 %v1343, %v1342
        %v1408 = vpack.i.b16 %v1345, %v1344
        %v1410 = vpack.i.b16 %v1347, %v1346
        %v1412 = vpack.i.b16 %v1349, %v1348
        %v1414 = vpack.i.b16 %v1351, %v1350
        %v1416 = vpack.i.b16 %v1353, %v1352
        %v1418 = vpack.i.b16 %v1355, %v1354
        %v1420 = vpack.i.b16 %v1357, %v1356
        %v1422 = vpack.c.bf16 %v883, %v879
        %v1423 = vpack.c.bf16 %v885, %v881
        %v1424 = vpack.c.bf16 %v893, %v889
        %v1425 = vpack.c.bf16 %v895, %v891
        %v1426 = vpack.c.bf16 %v903, %v899
        %v1427 = vpack.c.bf16 %v905, %v901
        %v1428 = vpack.c.bf16 %v913, %v909
        %v1429 = vpack.c.bf16 %v915, %v911
        %v1430 = vpack.c.bf16 %v923, %v919
        %v1431 = vpack.c.bf16 %v925, %v921
        %v1432 = vpack.c.bf16 %v933, %v929
        %v1433 = vpack.c.bf16 %v935, %v931
        %v1434 = vpack.c.bf16 %v943, %v939
        %v1435 = vpack.c.bf16 %v945, %v941
        %v1436 = vpack.c.bf16 %v953, %v949
        %v1437 = vpack.c.bf16 %v955, %v951
        %v1438 = vpack.c.bf16 %v963, %v959
        %v1439 = vpack.c.bf16 %v965, %v961
        %v1440 = vpack.c.bf16 %v973, %v969
        %v1441 = vpack.c.bf16 %v975, %v971
        %v1442 = vpack.c.bf16 %v983, %v979
        %v1443 = vpack.c.bf16 %v985, %v981
        %v1444 = vpack.c.bf16 %v993, %v989
        %v1445 = vpack.c.bf16 %v995, %v991
        %v1446 = vpack.c.bf16 %v1003, %v999
        %v1447 = vpack.c.bf16 %v1005, %v1001
        %v1448 = vpack.c.bf16 %v1013, %v1009
        %v1449 = vpack.c.bf16 %v1015, %v1011
        %v1450 = vpack.c.bf16 %v1023, %v1019
        %v1451 = vpack.c.bf16 %v1025, %v1021
        %v1452 = vpack.c.bf16 %v1033, %v1029
        %v1453 = vpack.c.bf16 %v1035, %v1031
        %v1486 = vunpack.c.l.b16 %v1422
        %v1487 = vunpack.c.l.b16 %v1423
        %v1488 = vunpack.c.h.b16 %v1422
        %v1489 = vunpack.c.h.b16 %v1423
        %v1490 = vunpack.c.l.b16 %v1424
        %v1491 = vunpack.c.l.b16 %v1425
        %v1492 = vunpack.c.h.b16 %v1424
        %v1493 = vunpack.c.h.b16 %v1425
        %v1494 = vunpack.c.l.b16 %v1426
        %v1495 = vunpack.c.l.b16 %v1427
        %v1496 = vunpack.c.h.b16 %v1426
        %v1497 = vunpack.c.h.b16 %v1427
        %v1498 = vunpack.c.l.b16 %v1428
        %v1499 = vunpack.c.l.b16 %v1429
        %v1500 = vunpack.c.h.b16 %v1428
        %v1501 = vunpack.c.h.b16 %v1429
        %v1502 = vunpack.c.l.b16 %v1430
        %v1503 = vunpack.c.l.b16 %v1431
        %v1504 = vunpack.c.h.b16 %v1430
        %v1505 = vunpack.c.h.b16 %v1431
        %v1506 = vunpack.c.l.b16 %v1432
        %v1507 = vunpack.c.l.b16 %v1433
        %v1508 = vunpack.c.h.b16 %v1432
        %v1509 = vunpack.c.h.b16 %v1433
        %v1510 = vunpack.c.l.b16 %v1434
        %v1511 = vunpack.c.l.b16 %v1435
        %v1512 = vunpack.c.h.b16 %v1434
        %v1513 = vunpack.c.h.b16 %v1435
        %v1514 = vunpack.c.l.b16 %v1436
        %v1515 = vunpack.c.l.b16 %v1437
        %v1516 = vunpack.c.h.b16 %v1436
        %v1517 = vunpack.c.h.b16 %v1437
        %v1518 = vunpack.c.l.b16 %v1438
        %v1519 = vunpack.c.l.b16 %v1439
        %v1520 = vunpack.c.h.b16 %v1438
        %v1521 = vunpack.c.h.b16 %v1439
        %v1522 = vunpack.c.l.b16 %v1440
        %v1523 = vunpack.c.l.b16 %v1441
        %v1524 = vunpack.c.h.b16 %v1440
        %v1525 = vunpack.c.h.b16 %v1441
        %v1526 = vunpack.c.l.b16 %v1442
        %v1527 = vunpack.c.l.b16 %v1443
        %v1528 = vunpack.c.h.b16 %v1442
        %v1529 = vunpack.c.h.b16 %v1443
        %v1530 = vunpack.c.l.b16 %v1444
        %v1531 = vunpack.c.l.b16 %v1445
        %v1532 = vunpack.c.h.b16 %v1444
        %v1533 = vunpack.c.h.b16 %v1445
        %v1534 = vunpack.c.l.b16 %v1446
        %v1535 = vunpack.c.l.b16 %v1447
        %v1536 = vunpack.c.h.b16 %v1446
        %v1537 = vunpack.c.h.b16 %v1447
        %v1538 = vunpack.c.l.b16 %v1448
        %v1539 = vunpack.c.l.b16 %v1449
        %v1540 = vunpack.c.h.b16 %v1448
        %v1541 = vunpack.c.h.b16 %v1449
        %v1542 = vunpack.c.l.b16 %v1450
        %v1543 = vunpack.c.l.b16 %v1451
        %v1544 = vunpack.c.h.b16 %v1450
        %v1545 = vunpack.c.h.b16 %v1451
        %v1546 = vunpack.c.l.b16 %v1452
        %v1547 = vunpack.c.l.b16 %v1453
        %v1548 = vunpack.c.h.b16 %v1452
        %v1549 = vunpack.c.h.b16 %v1453
        %v1550 = vpack.i.b16 %v1487, %v1486
        %v1552 = vpack.i.b16 %v1489, %v1488
        %v1554 = vpack.i.b16 %v1491, %v1490
        %v1556 = vpack.i.b16 %v1493, %v1492
        %v1558 = vpack.i.b16 %v1495, %v1494
        %v1560 = vpack.i.b16 %v1497, %v1496
        %v1562 = vpack.i.b16 %v1499, %v1498
        %v1564 = vpack.i.b16 %v1501, %v1500
        %v1566 = vpack.i.b16 %v1503, %v1502
        %v1568 = vpack.i.b16 %v1505, %v1504
        %v1570 = vpack.i.b16 %v1507, %v1506
        %v1572 = vpack.i.b16 %v1509, %v1508
        %v1574 = vpack.i.b16 %v1511, %v1510
        %v1576 = vpack.i.b16 %v1513, %v1512
        %v1578 = vpack.i.b16 %v1515, %v1514
        %v1580 = vpack.i.b16 %v1517, %v1516
        %v1582 = vpack.i.b16 %v1519, %v1518
        %v1584 = vpack.i.b16 %v1521, %v1520
        %v1586 = vpack.i.b16 %v1523, %v1522
        %v1588 = vpack.i.b16 %v1525, %v1524
        %v1590 = vpack.i.b16 %v1527, %v1526
        %v1592 = vpack.i.b16 %v1529, %v1528
        %v1594 = vpack.i.b16 %v1531, %v1530
        %v1596 = vpack.i.b16 %v1533, %v1532
        %v1598 = vpack.i.b16 %v1535, %v1534
        %v1600 = vpack.i.b16 %v1537, %v1536
        %v1602 = vpack.i.b16 %v1539, %v1538
        %v1604 = vpack.i.b16 %v1541, %v1540
        %v1606 = vpack.i.b16 %v1543, %v1542
        %v1608 = vpack.i.b16 %v1545, %v1544
        %v1610 = vpack.i.b16 %v1547, %v1546
        %v1612 = vpack.i.b16 %v1549, %v1548
        %v1614 = vpack.c.bf16 %v1076, %v1072
        %v1615 = vpack.c.bf16 %v1078, %v1074
        %v1616 = vpack.c.bf16 %v1086, %v1082
        %v1617 = vpack.c.bf16 %v1088, %v1084
        %v1618 = vpack.c.bf16 %v1096, %v1092
        %v1619 = vpack.c.bf16 %v1098, %v1094
        %v1620 = vpack.c.bf16 %v1106, %v1102
        %v1621 = vpack.c.bf16 %v1108, %v1104
        %v1622 = vpack.c.bf16 %v1116, %v1112
        %v1623 = vpack.c.bf16 %v1118, %v1114
        %v1624 = vpack.c.bf16 %v1126, %v1122
        %v1625 = vpack.c.bf16 %v1128, %v1124
        %v1626 = vpack.c.bf16 %v1136, %v1132
        %v1627 = vpack.c.bf16 %v1138, %v1134
        %v1628 = vpack.c.bf16 %v1146, %v1142
        %v1629 = vpack.c.bf16 %v1148, %v1144
        %v1630 = vpack.c.bf16 %v1156, %v1152
        %v1631 = vpack.c.bf16 %v1158, %v1154
        %v1632 = vpack.c.bf16 %v1166, %v1162
        %v1633 = vpack.c.bf16 %v1168, %v1164
        %v1634 = vpack.c.bf16 %v1176, %v1172
        %v1635 = vpack.c.bf16 %v1178, %v1174
        %v1636 = vpack.c.bf16 %v1186, %v1182
        %v1637 = vpack.c.bf16 %v1188, %v1184
        %v1638 = vpack.c.bf16 %v1196, %v1192
        %v1639 = vpack.c.bf16 %v1198, %v1194
        %v1640 = vpack.c.bf16 %v1206, %v1202
        %v1641 = vpack.c.bf16 %v1208, %v1204
        %v1642 = vpack.c.bf16 %v1216, %v1212
        %v1643 = vpack.c.bf16 %v1218, %v1214
        %v1644 = vpack.c.bf16 %v1226, %v1222
        %v1645 = vpack.c.bf16 %v1228, %v1224
        %v1678 = vunpack.c.l.b16 %v1614
        %v1679 = vunpack.c.l.b16 %v1615
        %v1680 = vunpack.c.h.b16 %v1614
        %v1681 = vunpack.c.h.b16 %v1615
        %v1682 = vunpack.c.l.b16 %v1616
        %v1683 = vunpack.c.l.b16 %v1617
        %v1684 = vunpack.c.h.b16 %v1616
        %v1685 = vunpack.c.h.b16 %v1617
        %v1686 = vunpack.c.l.b16 %v1618
        %v1687 = vunpack.c.l.b16 %v1619
        %v1688 = vunpack.c.h.b16 %v1618
        %v1689 = vunpack.c.h.b16 %v1619
        %v1690 = vunpack.c.l.b16 %v1620
        %v1691 = vunpack.c.l.b16 %v1621
        %v1692 = vunpack.c.h.b16 %v1620
        %v1693 = vunpack.c.h.b16 %v1621
        %v1694 = vunpack.c.l.b16 %v1622
        %v1695 = vunpack.c.l.b16 %v1623
        %v1696 = vunpack.c.h.b16 %v1622
        %v1697 = vunpack.c.h.b16 %v1623
        %v1698 = vunpack.c.l.b16 %v1624
        %v1699 = vunpack.c.l.b16 %v1625
        %v1700 = vunpack.c.h.b16 %v1624
        %v1701 = vunpack.c.h.b16 %v1625
        %v1702 = vunpack.c.l.b16 %v1626
        %v1703 = vunpack.c.l.b16 %v1627
        %v1704 = vunpack.c.h.b16 %v1626
        %v1705 = vunpack.c.h.b16 %v1627
        %v1706 = vunpack.c.l.b16 %v1628
        %v1707 = vunpack.c.l.b16 %v1629
        %v1708 = vunpack.c.h.b16 %v1628
        %v1709 = vunpack.c.h.b16 %v1629
        %v1710 = vunpack.c.l.b16 %v1630
        %v1711 = vunpack.c.l.b16 %v1631
        %v1712 = vunpack.c.h.b16 %v1630
        %v1713 = vunpack.c.h.b16 %v1631
        %v1714 = vunpack.c.l.b16 %v1632
        %v1715 = vunpack.c.l.b16 %v1633
        %v1716 = vunpack.c.h.b16 %v1632
        %v1717 = vunpack.c.h.b16 %v1633
        %v1718 = vunpack.c.l.b16 %v1634
        %v1719 = vunpack.c.l.b16 %v1635
        %v1720 = vunpack.c.h.b16 %v1634
        %v1721 = vunpack.c.h.b16 %v1635
        %v1722 = vunpack.c.l.b16 %v1636
        %v1723 = vunpack.c.l.b16 %v1637
        %v1724 = vunpack.c.h.b16 %v1636
        %v1725 = vunpack.c.h.b16 %v1637
        %v1726 = vunpack.c.l.b16 %v1638
        %v1727 = vunpack.c.l.b16 %v1639
        %v1728 = vunpack.c.h.b16 %v1638
        %v1729 = vunpack.c.h.b16 %v1639
        %v1730 = vunpack.c.l.b16 %v1640
        %v1731 = vunpack.c.l.b16 %v1641
        %v1732 = vunpack.c.h.b16 %v1640
        %v1733 = vunpack.c.h.b16 %v1641
        %v1734 = vunpack.c.l.b16 %v1642
        %v1735 = vunpack.c.l.b16 %v1643
        %v1736 = vunpack.c.h.b16 %v1642
        %v1737 = vunpack.c.h.b16 %v1643
        %v1738 = vunpack.c.l.b16 %v1644
        %v1739 = vunpack.c.l.b16 %v1645
        %v1740 = vunpack.c.h.b16 %v1644
        %v1741 = vunpack.c.h.b16 %v1645
        %v1742 = vpack.i.b16 %v1679, %v1678
        %v1744 = vpack.i.b16 %v1681, %v1680
        %v1746 = vpack.i.b16 %v1683, %v1682
        %v1748 = vpack.i.b16 %v1685, %v1684
        %v1750 = vpack.i.b16 %v1687, %v1686
        %v1752 = vpack.i.b16 %v1689, %v1688
        %v1754 = vpack.i.b16 %v1691, %v1690
        %v1756 = vpack.i.b16 %v1693, %v1692
        %v1758 = vpack.i.b16 %v1695, %v1694
        %v1760 = vpack.i.b16 %v1697, %v1696
        %v1762 = vpack.i.b16 %v1699, %v1698
        %v1764 = vpack.i.b16 %v1701, %v1700
        %v1766 = vpack.i.b16 %v1703, %v1702
        %v1768 = vpack.i.b16 %v1705, %v1704
        %v1770 = vpack.i.b16 %v1707, %v1706
        %v1772 = vpack.i.b16 %v1709, %v1708
        %v1774 = vpack.i.b16 %v1711, %v1710
        %v1776 = vpack.i.b16 %v1713, %v1712
        %v1778 = vpack.i.b16 %v1715, %v1714
        %v1780 = vpack.i.b16 %v1717, %v1716
        %v1782 = vpack.i.b16 %v1719, %v1718
        %v1784 = vpack.i.b16 %v1721, %v1720
        %v1786 = vpack.i.b16 %v1723, %v1722
        %v1788 = vpack.i.b16 %v1725, %v1724
        %v1790 = vpack.i.b16 %v1727, %v1726
        %v1792 = vpack.i.b16 %v1729, %v1728
        %v1794 = vpack.i.b16 %v1731, %v1730
        %v1796 = vpack.i.b16 %v1733, %v1732
        %v1798 = vpack.i.b16 %v1735, %v1734
        %v1800 = vpack.i.b16 %v1737, %v1736
        %v1802 = vpack.i.b16 %v1739, %v1738
        %v1804 = vpack.i.b16 %v1741, %v1740
        %v1806 = vld [vmem:[#allocation8] sm:$0xff]
        %v1807 = vld [vmem:[#allocation8 + $0x8] sm:$0xff]
        %v1808 = vld [vmem:[#allocation8 + $0x10] sm:$0xff]
        %v1809 = vld [vmem:[#allocation8 + $0x18] sm:$0xff]
        %v1810 = vld [vmem:[#allocation8 + $0x20] sm:$0xff]
        %v1811 = vld [vmem:[#allocation8 + $0x28] sm:$0xff]
        %v1812 = vld [vmem:[#allocation8 + $0x30] sm:$0xff]
        %v1813 = vld [vmem:[#allocation8 + $0x38] sm:$0xff]
        %v1814 = vld [vmem:[#allocation8 + $0x40] sm:$0xff]
        %v1815 = vld [vmem:[#allocation8 + $0x48] sm:$0xff]
        %v1816 = vld [vmem:[#allocation8 + $0x50] sm:$0xff]
        %v1817 = vld [vmem:[#allocation8 + $0x58] sm:$0xff]
        %v1818 = vld [vmem:[#allocation8 + $0x60] sm:$0xff]
        %v1819 = vld [vmem:[#allocation8 + $0x68] sm:$0xff]
        %v1820 = vld [vmem:[#allocation8 + $0x70] sm:$0xff]
        %v1821 = vld [vmem:[#allocation8 + $0x78] sm:$0xff]
        %1822 = vmatprep.subr.bf16.mxu0 0
        %1823 = vmatpush1.bf16.xpose.msra.mxu0 %v1564
        %1824 = vmatprep.subr.bf16.mxu0 0
        %1825 = vmatpush1.bf16.xpose.msra.mxu0 %v1562
        %1826 = vmatprep.subr.bf16.mxu0 0
        %1827 = vmatpush1.bf16.xpose.msra.mxu0 %v1560
        %1828 = vmatprep.subr.bf16.mxu0 0
        %1829 = vmatpush1.bf16.xpose.msra.mxu0 %v1558
        %1830 = vmatprep.subr.bf16.mxu0 0
        %1831 = vmatpush1.bf16.xpose.msra.mxu0 %v1556
        %1832 = vmatprep.subr.bf16.mxu0 0
        %1833 = vmatpush1.bf16.xpose.msra.mxu0 %v1554
        %1834 = vmatprep.subr.bf16.mxu0 0
        %1835 = vmatpush1.bf16.xpose.msra.mxu0 %v1552
        %1836 = vmatprep.subr.bf16.mxu0 0
        %1837 = vmatpush1.bf16.xpose.msra.mxu0 %v1550
        %1838 = vmatprep.subr.bf16.mxu0 0
        %1839 = vmatpush2.bf16.xpose.msra.mxu0 0
        %1840 = vmatprep.subr.bf16.mxu0 0
        %1841 = vmatpush2.bf16.xpose.msra.mxu0 0
        %1842 = vmatprep.subr.bf16.mxu0 0
        %1843 = vmatpush2.bf16.xpose.msra.mxu0 0
        %1844 = vmatprep.subr.bf16.mxu0 0
        %1845 = vmatpush2.bf16.xpose.msra.mxu0 0
        %1846 = vmatprep.subr.bf16.mxu0 0
        %1847 = vmatpush2.bf16.xpose.msra.mxu0 0
        %1848 = vmatprep.subr.bf16.mxu0 0
        %1849 = vmatpush2.bf16.xpose.msra.mxu0 0
        %1850 = vmatprep.subr.bf16.mxu0 0
        %1851 = vmatpush2.bf16.xpose.msra.mxu0 0
        %1852 = vmatprep.subr.bf16.mxu0 0
        %1853 = vmatpush2.bf16.xpose.msra.mxu0 0
        %1854 = vmatprep.mubr.bf16.mxu0 0
        %1855 = vmatmul.mubr.bf16.gmra.mxu0 %v1358
        %v1856 = vpop.f32.mrf.mxu0
        %v1857 = vadd.f32 %v1806, %v1856
        %v1858 = vpop.f32.mrf.mxu0
        %v1859 = vpop.f32.mrf.mxu0
        %v1860 = vadd.f32 %v1807, %v1859
        %v1861 = vpop.f32.mrf.mxu0
        %1862 = vmatprep.mubr.bf16.mxu0 0
        %1863 = vmatmul.mubr.bf16.gmra.mxu0 %v1360
        %v1864 = vpop.f32.mrf.mxu0
        %v1865 = vadd.f32 %v1808, %v1864
        %v1866 = vpop.f32.mrf.mxu0
        %v1867 = vpop.f32.mrf.mxu0
        %v1868 = vadd.f32 %v1809, %v1867
        %v1869 = vpop.f32.mrf.mxu0
        %1870 = vmatprep.mubr.bf16.mxu0 0
        %1871 = vmatmul.mubr.bf16.gmra.mxu0 %v1362
        %v1872 = vpop.f32.mrf.mxu0
        %v1873 = vadd.f32 %v1810, %v1872
        %v1874 = vpop.f32.mrf.mxu0
        %v1875 = vpop.f32.mrf.mxu0
        %v1876 = vadd.f32 %v1811, %v1875
        %v1877 = vpop.f32.mrf.mxu0
        %1878 = vmatprep.mubr.bf16.mxu0 0
        %1879 = vmatmul.mubr.bf16.gmra.mxu0 %v1364
        %v1880 = vpop.f32.mrf.mxu0
        %v1881 = vadd.f32 %v1812, %v1880
        %v1882 = vpop.f32.mrf.mxu0
        %v1883 = vpop.f32.mrf.mxu0
        %v1884 = vadd.f32 %v1813, %v1883
        %v1885 = vpop.f32.mrf.mxu0
        %1886 = vmatprep.mubr.bf16.mxu0 0
        %1887 = vmatmul.mubr.bf16.gmra.mxu0 %v1366
        %v1888 = vpop.f32.mrf.mxu0
        %v1889 = vadd.f32 %v1814, %v1888
        %v1890 = vpop.f32.mrf.mxu0
        %v1891 = vpop.f32.mrf.mxu0
        %v1892 = vadd.f32 %v1815, %v1891
        %v1893 = vpop.f32.mrf.mxu0
        %1894 = vmatprep.mubr.bf16.mxu0 0
        %1895 = vmatmul.mubr.bf16.gmra.mxu0 %v1368
        %v1896 = vpop.f32.mrf.mxu0
        %v1897 = vadd.f32 %v1816, %v1896
        %v1898 = vpop.f32.mrf.mxu0
        %v1899 = vpop.f32.mrf.mxu0
        %v1900 = vadd.f32 %v1817, %v1899
        %v1901 = vpop.f32.mrf.mxu0
        %1902 = vmatprep.mubr.bf16.mxu0 0
        %1903 = vmatmul.mubr.bf16.gmra.mxu0 %v1370
        %v1904 = vpop.f32.mrf.mxu0
        %v1905 = vadd.f32 %v1818, %v1904
        %v1906 = vpop.f32.mrf.mxu0
        %v1907 = vpop.f32.mrf.mxu0
        %v1908 = vadd.f32 %v1819, %v1907
        %v1909 = vpop.f32.mrf.mxu0
        %1910 = vmatprep.mubr.bf16.mxu0 0
        %1911 = vmatmul.mubr.bf16.gmra.mxu0 %v1372
        %v1912 = vpop.f32.mrf.mxu0
        %v1913 = vadd.f32 %v1820, %v1912
        %v1914 = vpop.f32.mrf.mxu0
        %v1915 = vpop.f32.mrf.mxu0
        %v1916 = vadd.f32 %v1821, %v1915
        %v1917 = vpop.f32.mrf.mxu0
        %1918 = vdwg.mxu0
        %1919 = vmatprep.subr.bf16.mxu0 0
        %1920 = vmatpush1.bf16.xpose.msra.mxu0 %v1580
        %1921 = vmatprep.subr.bf16.mxu0 0
        %1922 = vmatpush1.bf16.xpose.msra.mxu0 %v1578
        %1923 = vmatprep.subr.bf16.mxu0 0
        %1924 = vmatpush1.bf16.xpose.msra.mxu0 %v1576
        %1925 = vmatprep.subr.bf16.mxu0 0
        %1926 = vmatpush1.bf16.xpose.msra.mxu0 %v1574
        %1927 = vmatprep.subr.bf16.mxu0 0
        %1928 = vmatpush1.bf16.xpose.msra.mxu0 %v1572
        %1929 = vmatprep.subr.bf16.mxu0 0
        %1930 = vmatpush1.bf16.xpose.msra.mxu0 %v1570
        %1931 = vmatprep.subr.bf16.mxu0 0
        %1932 = vmatpush1.bf16.xpose.msra.mxu0 %v1568
        %1933 = vmatprep.subr.bf16.mxu0 0
        %1934 = vmatpush1.bf16.xpose.msra.mxu0 %v1566
        %1935 = vmatprep.subr.bf16.mxu0 0
        %1936 = vmatpush2.bf16.xpose.msra.mxu0 0
        %1937 = vmatprep.subr.bf16.mxu0 0
        %1938 = vmatpush2.bf16.xpose.msra.mxu0 0
        %1939 = vmatprep.subr.bf16.mxu0 0
        %1940 = vmatpush2.bf16.xpose.msra.mxu0 0
        %1941 = vmatprep.subr.bf16.mxu0 0
        %1942 = vmatpush2.bf16.xpose.msra.mxu0 0
        %1943 = vmatprep.subr.bf16.mxu0 0
        %1944 = vmatpush2.bf16.xpose.msra.mxu0 0
        %1945 = vmatprep.subr.bf16.mxu0 0
        %1946 = vmatpush2.bf16.xpose.msra.mxu0 0
        %1947 = vmatprep.subr.bf16.mxu0 0
        %1948 = vmatpush2.bf16.xpose.msra.mxu0 0
        %1949 = vmatprep.subr.bf16.mxu0 0
        %1950 = vmatpush2.bf16.xpose.msra.mxu0 0
        %1951 = vmatprep.mubr.bf16.mxu0 0
        %1952 = vmatmul.mubr.bf16.gmra.mxu0 %v1374
        %v1953 = vpop.f32.mrf.mxu0
        %v1954 = vadd.f32 %v1806, %v1953
        %v1955 = vpop.f32.mrf.mxu0
        %v1956 = vpop.f32.mrf.mxu0
        %v1957 = vadd.f32 %v1807, %v1956
        %v1958 = vpop.f32.mrf.mxu0
        %1959 = vmatprep.mubr.bf16.mxu0 0
        %1960 = vmatmul.mubr.bf16.gmra.mxu0 %v1376
        %v1961 = vpop.f32.mrf.mxu0
        %v1962 = vadd.f32 %v1808, %v1961
        %v1963 = vpop.f32.mrf.mxu0
        %v1964 = vpop.f32.mrf.mxu0
        %v1965 = vadd.f32 %v1809, %v1964
        %v1966 = vpop.f32.mrf.mxu0
        %1967 = vmatprep.mubr.bf16.mxu0 0
        %1968 = vmatmul.mubr.bf16.gmra.mxu0 %v1378
        %v1969 = vpop.f32.mrf.mxu0
        %v1970 = vadd.f32 %v1810, %v1969
        %v1971 = vpop.f32.mrf.mxu0
        %v1972 = vpop.f32.mrf.mxu0
        %v1973 = vadd.f32 %v1811, %v1972
        %v1974 = vpop.f32.mrf.mxu0
        %1975 = vmatprep.mubr.bf16.mxu0 0
        %1976 = vmatmul.mubr.bf16.gmra.mxu0 %v1380
        %v1977 = vpop.f32.mrf.mxu0
        %v1978 = vadd.f32 %v1812, %v1977
        %v1979 = vpop.f32.mrf.mxu0
        %v1980 = vpop.f32.mrf.mxu0
        %v1981 = vadd.f32 %v1813, %v1980
        %v1982 = vpop.f32.mrf.mxu0
        %1983 = vmatprep.mubr.bf16.mxu0 0
        %1984 = vmatmul.mubr.bf16.gmra.mxu0 %v1382
        %v1985 = vpop.f32.mrf.mxu0
        %v1986 = vadd.f32 %v1814, %v1985
        %v1987 = vpop.f32.mrf.mxu0
        %v1988 = vpop.f32.mrf.mxu0
        %v1989 = vadd.f32 %v1815, %v1988
        %v1990 = vpop.f32.mrf.mxu0
        %1991 = vmatprep.mubr.bf16.mxu0 0
        %1992 = vmatmul.mubr.bf16.gmra.mxu0 %v1384
        %v1993 = vpop.f32.mrf.mxu0
        %v1994 = vadd.f32 %v1816, %v1993
        %v1995 = vpop.f32.mrf.mxu0
        %v1996 = vpop.f32.mrf.mxu0
        %v1997 = vadd.f32 %v1817, %v1996
        %v1998 = vpop.f32.mrf.mxu0
        %1999 = vmatprep.mubr.bf16.mxu0 0
        %2000 = vmatmul.mubr.bf16.gmra.mxu0 %v1386
        %v2001 = vpop.f32.mrf.mxu0
        %v2002 = vadd.f32 %v1818, %v2001
        %v2003 = vpop.f32.mrf.mxu0
        %v2004 = vpop.f32.mrf.mxu0
        %v2005 = vadd.f32 %v1819, %v2004
        %v2006 = vpop.f32.mrf.mxu0
        %2007 = vmatprep.mubr.bf16.mxu0 0
        %2008 = vmatmul.mubr.bf16.gmra.mxu0 %v1388
        %v2009 = vpop.f32.mrf.mxu0
        %v2010 = vadd.f32 %v1820, %v2009
        %v2011 = vpop.f32.mrf.mxu0
        %v2012 = vpop.f32.mrf.mxu0
        %v2013 = vadd.f32 %v1821, %v2012
        %v2014 = vpop.f32.mrf.mxu0
        %2015 = vdwg.mxu0
        %2016 = vmatprep.subr.bf16.mxu0 0
        %2017 = vmatpush1.bf16.xpose.msra.mxu0 %v1596
        %2018 = vmatprep.subr.bf16.mxu0 0
        %2019 = vmatpush1.bf16.xpose.msra.mxu0 %v1594
        %2020 = vmatprep.subr.bf16.mxu0 0
        %2021 = vmatpush1.bf16.xpose.msra.mxu0 %v1592
        %2022 = vmatprep.subr.bf16.mxu0 0
        %2023 = vmatpush1.bf16.xpose.msra.mxu0 %v1590
        %2024 = vmatprep.subr.bf16.mxu0 0
        %2025 = vmatpush1.bf16.xpose.msra.mxu0 %v1588
        %2026 = vmatprep.subr.bf16.mxu0 0
        %2027 = vmatpush1.bf16.xpose.msra.mxu0 %v1586
        %2028 = vmatprep.subr.bf16.mxu0 0
        %2029 = vmatpush1.bf16.xpose.msra.mxu0 %v1584
        %2030 = vmatprep.subr.bf16.mxu0 0
        %2031 = vmatpush1.bf16.xpose.msra.mxu0 %v1582
        %2032 = vmatprep.subr.bf16.mxu0 0
        %2033 = vmatpush2.bf16.xpose.msra.mxu0 0
        %2034 = vmatprep.subr.bf16.mxu0 0
        %2035 = vmatpush2.bf16.xpose.msra.mxu0 0
        %2036 = vmatprep.subr.bf16.mxu0 0
        %2037 = vmatpush2.bf16.xpose.msra.mxu0 0
        %2038 = vmatprep.subr.bf16.mxu0 0
        %2039 = vmatpush2.bf16.xpose.msra.mxu0 0
        %2040 = vmatprep.subr.bf16.mxu0 0
        %2041 = vmatpush2.bf16.xpose.msra.mxu0 0
        %2042 = vmatprep.subr.bf16.mxu0 0
        %2043 = vmatpush2.bf16.xpose.msra.mxu0 0
        %2044 = vmatprep.subr.bf16.mxu0 0
        %2045 = vmatpush2.bf16.xpose.msra.mxu0 0
        %2046 = vmatprep.subr.bf16.mxu0 0
        %2047 = vmatpush2.bf16.xpose.msra.mxu0 0
        %2048 = vmatprep.mubr.bf16.mxu0 0
        %2049 = vmatmul.mubr.bf16.gmra.mxu0 %v1390
        %v2050 = vpop.f32.mrf.mxu0
        %v2051 = vadd.f32 %v1806, %v2050
        %v2052 = vpop.f32.mrf.mxu0
        %v2053 = vpop.f32.mrf.mxu0
        %v2054 = vadd.f32 %v1807, %v2053
        %v2055 = vpop.f32.mrf.mxu0
        %2056 = vmatprep.mubr.bf16.mxu0 0
        %2057 = vmatmul.mubr.bf16.gmra.mxu0 %v1392
        %v2058 = vpop.f32.mrf.mxu0
        %v2059 = vadd.f32 %v1808, %v2058
        %v2060 = vpop.f32.mrf.mxu0
        %v2061 = vpop.f32.mrf.mxu0
        %v2062 = vadd.f32 %v1809, %v2061
        %v2063 = vpop.f32.mrf.mxu0
        %2064 = vmatprep.mubr.bf16.mxu0 0
        %2065 = vmatmul.mubr.bf16.gmra.mxu0 %v1394
        %v2066 = vpop.f32.mrf.mxu0
        %v2067 = vadd.f32 %v1810, %v2066
        %v2068 = vpop.f32.mrf.mxu0
        %v2069 = vpop.f32.mrf.mxu0
        %v2070 = vadd.f32 %v1811, %v2069
        %v2071 = vpop.f32.mrf.mxu0
        %2072 = vmatprep.mubr.bf16.mxu0 0
        %2073 = vmatmul.mubr.bf16.gmra.mxu0 %v1396
        %v2074 = vpop.f32.mrf.mxu0
        %v2075 = vadd.f32 %v1812, %v2074
        %v2076 = vpop.f32.mrf.mxu0
        %v2077 = vpop.f32.mrf.mxu0
        %v2078 = vadd.f32 %v1813, %v2077
        %v2079 = vpop.f32.mrf.mxu0
        %2080 = vmatprep.mubr.bf16.mxu0 0
        %2081 = vmatmul.mubr.bf16.gmra.mxu0 %v1398
        %v2082 = vpop.f32.mrf.mxu0
        %v2083 = vadd.f32 %v1814, %v2082
        %v2084 = vpop.f32.mrf.mxu0
        %v2085 = vpop.f32.mrf.mxu0
        %v2086 = vadd.f32 %v1815, %v2085
        %v2087 = vpop.f32.mrf.mxu0
        %2088 = vmatprep.mubr.bf16.mxu0 0
        %2089 = vmatmul.mubr.bf16.gmra.mxu0 %v1400
        %v2090 = vpop.f32.mrf.mxu0
        %v2091 = vadd.f32 %v1816, %v2090
        %v2092 = vpop.f32.mrf.mxu0
        %v2093 = vpop.f32.mrf.mxu0
        %v2094 = vadd.f32 %v1817, %v2093
        %v2095 = vpop.f32.mrf.mxu0
        %2096 = vmatprep.mubr.bf16.mxu0 0
        %2097 = vmatmul.mubr.bf16.gmra.mxu0 %v1402
        %v2098 = vpop.f32.mrf.mxu0
        %v2099 = vadd.f32 %v1818, %v2098
        %v2100 = vpop.f32.mrf.mxu0
        %v2101 = vpop.f32.mrf.mxu0
        %v2102 = vadd.f32 %v1819, %v2101
        %v2103 = vpop.f32.mrf.mxu0
        %2104 = vmatprep.mubr.bf16.mxu0 0
        %2105 = vmatmul.mubr.bf16.gmra.mxu0 %v1404
        %v2106 = vpop.f32.mrf.mxu0
        %v2107 = vadd.f32 %v1820, %v2106
        %v2108 = vpop.f32.mrf.mxu0
        %v2109 = vpop.f32.mrf.mxu0
        %v2110 = vadd.f32 %v1821, %v2109
        %v2111 = vpop.f32.mrf.mxu0
        %2112 = vdwg.mxu0
        %2113 = vmatprep.subr.bf16.mxu0 0
        %2114 = vmatpush1.bf16.xpose.msra.mxu0 %v1612
        %2115 = vmatprep.subr.bf16.mxu0 0
        %2116 = vmatpush1.bf16.xpose.msra.mxu0 %v1610
        %2117 = vmatprep.subr.bf16.mxu0 0
        %2118 = vmatpush1.bf16.xpose.msra.mxu0 %v1608
        %2119 = vmatprep.subr.bf16.mxu0 0
        %2120 = vmatpush1.bf16.xpose.msra.mxu0 %v1606
        %2121 = vmatprep.subr.bf16.mxu0 0
        %2122 = vmatpush1.bf16.xpose.msra.mxu0 %v1604
        %2123 = vmatprep.subr.bf16.mxu0 0
        %2124 = vmatpush1.bf16.xpose.msra.mxu0 %v1602
        %2125 = vmatprep.subr.bf16.mxu0 0
        %2126 = vmatpush1.bf16.xpose.msra.mxu0 %v1600
        %2127 = vmatprep.subr.bf16.mxu0 0
        %2128 = vmatpush1.bf16.xpose.msra.mxu0 %v1598
        %2129 = vmatprep.subr.bf16.mxu0 0
        %2130 = vmatpush2.bf16.xpose.msra.mxu0 0
        %2131 = vmatprep.subr.bf16.mxu0 0
        %2132 = vmatpush2.bf16.xpose.msra.mxu0 0
        %2133 = vmatprep.subr.bf16.mxu0 0
        %2134 = vmatpush2.bf16.xpose.msra.mxu0 0
        %2135 = vmatprep.subr.bf16.mxu0 0
        %2136 = vmatpush2.bf16.xpose.msra.mxu0 0
        %2137 = vmatprep.subr.bf16.mxu0 0
        %2138 = vmatpush2.bf16.xpose.msra.mxu0 0
        %2139 = vmatprep.subr.bf16.mxu0 0
        %2140 = vmatpush2.bf16.xpose.msra.mxu0 0
        %2141 = vmatprep.subr.bf16.mxu0 0
        %2142 = vmatpush2.bf16.xpose.msra.mxu0 0
        %2143 = vmatprep.subr.bf16.mxu0 0
        %2144 = vmatpush2.bf16.xpose.msra.mxu0 0
        %2145 = vmatprep.mubr.bf16.mxu0 0
        %2146 = vmatmul.mubr.bf16.gmra.mxu0 %v1406
        %v2147 = vpop.f32.mrf.mxu0
        %v2148 = vadd.f32 %v1806, %v2147
        %v2149 = vpop.f32.mrf.mxu0
        %v2150 = vpop.f32.mrf.mxu0
        %v2151 = vadd.f32 %v1807, %v2150
        %v2152 = vpop.f32.mrf.mxu0
        %2153 = vmatprep.mubr.bf16.mxu0 0
        %2154 = vmatmul.mubr.bf16.gmra.mxu0 %v1408
        %v2155 = vpop.f32.mrf.mxu0
        %v2156 = vadd.f32 %v1808, %v2155
        %v2157 = vpop.f32.mrf.mxu0
        %v2158 = vpop.f32.mrf.mxu0
        %v2159 = vadd.f32 %v1809, %v2158
        %v2160 = vpop.f32.mrf.mxu0
        %2161 = vmatprep.mubr.bf16.mxu0 0
        %2162 = vmatmul.mubr.bf16.gmra.mxu0 %v1410
        %v2163 = vpop.f32.mrf.mxu0
        %v2164 = vadd.f32 %v1810, %v2163
        %v2165 = vpop.f32.mrf.mxu0
        %v2166 = vpop.f32.mrf.mxu0
        %v2167 = vadd.f32 %v1811, %v2166
        %v2168 = vpop.f32.mrf.mxu0
        %2169 = vmatprep.mubr.bf16.mxu0 0
        %2170 = vmatmul.mubr.bf16.gmra.mxu0 %v1412
        %v2171 = vpop.f32.mrf.mxu0
        %v2172 = vadd.f32 %v1812, %v2171
        %v2173 = vpop.f32.mrf.mxu0
        %v2174 = vpop.f32.mrf.mxu0
        %v2175 = vadd.f32 %v1813, %v2174
        %v2176 = vpop.f32.mrf.mxu0
        %2177 = vmatprep.mubr.bf16.mxu0 0
        %2178 = vmatmul.mubr.bf16.gmra.mxu0 %v1414
        %v2179 = vpop.f32.mrf.mxu0
        %v2180 = vadd.f32 %v1814, %v2179
        %v2181 = vpop.f32.mrf.mxu0
        %v2182 = vpop.f32.mrf.mxu0
        %v2183 = vadd.f32 %v1815, %v2182
        %v2184 = vpop.f32.mrf.mxu0
        %2185 = vmatprep.mubr.bf16.mxu0 0
        %2186 = vmatmul.mubr.bf16.gmra.mxu0 %v1416
        %v2187 = vpop.f32.mrf.mxu0
        %v2188 = vadd.f32 %v1816, %v2187
        %v2189 = vpop.f32.mrf.mxu0
        %v2190 = vpop.f32.mrf.mxu0
        %v2191 = vadd.f32 %v1817, %v2190
        %v2192 = vpop.f32.mrf.mxu0
        %2193 = vmatprep.mubr.bf16.mxu0 0
        %2194 = vmatmul.mubr.bf16.gmra.mxu0 %v1418
        %v2195 = vpop.f32.mrf.mxu0
        %v2196 = vadd.f32 %v1818, %v2195
        %v2197 = vpop.f32.mrf.mxu0
        %v2198 = vpop.f32.mrf.mxu0
        %v2199 = vadd.f32 %v1819, %v2198
        %v2200 = vpop.f32.mrf.mxu0
        %2201 = vmatprep.mubr.bf16.mxu0 0
        %2202 = vmatmul.mubr.bf16.gmra.mxu0 %v1420
        %v2203 = vpop.f32.mrf.mxu0
        %v2204 = vadd.f32 %v1820, %v2203
        %v2205 = vpop.f32.mrf.mxu0
        %v2206 = vpop.f32.mrf.mxu0
        %v2207 = vadd.f32 %v1821, %v2206
        %v2208 = vpop.f32.mrf.mxu0
        %2209 = vdwg.mxu0
        %2210 = vmax.xlane.f32.xlu0 %v1857
        %v2211 = vpop.xlane.xlu0 %2210
        %2212 = vmax.xlane.f32.xlu0 %v1860
        %v2213 = vpop.xlane.xlu0 %2212
        %2214 = vmax.xlane.f32.xlu0 %v1865
        %v2215 = vpop.xlane.xlu0 %2214
        %2216 = vmax.xlane.f32.xlu0 %v1868
        %v2217 = vpop.xlane.xlu0 %2216
        %2218 = vmax.xlane.f32.xlu0 %v1873
        %v2219 = vpop.xlane.xlu0 %2218
        %2220 = vmax.xlane.f32.xlu0 %v1876
        %v2221 = vpop.xlane.xlu0 %2220
        %2222 = vmax.xlane.f32.xlu0 %v1881
        %v2223 = vpop.xlane.xlu0 %2222
        %2224 = vmax.xlane.f32.xlu0 %v1884
        %v2225 = vpop.xlane.xlu0 %2224
        %2226 = vmax.xlane.f32.xlu0 %v1889
        %v2227 = vpop.xlane.xlu0 %2226
        %2228 = vmax.xlane.f32.xlu0 %v1892
        %v2229 = vpop.xlane.xlu0 %2228
        %2230 = vmax.xlane.f32.xlu0 %v1897
        %v2231 = vpop.xlane.xlu0 %2230
        %2232 = vmax.xlane.f32.xlu0 %v1900
        %v2233 = vpop.xlane.xlu0 %2232
        %2234 = vmax.xlane.f32.xlu0 %v1905
        %v2235 = vpop.xlane.xlu0 %2234
        %2236 = vmax.xlane.f32.xlu0 %v1908
        %v2237 = vpop.xlane.xlu0 %2236
        %2238 = vmax.xlane.f32.xlu0 %v1913
        %v2239 = vpop.xlane.xlu0 %2238
        %2240 = vmax.xlane.f32.xlu0 %v1916
        %v2241 = vpop.xlane.xlu0 %2240
        %2242 = vmax.xlane.f32.xlu0 %v1954
        %v2243 = vpop.xlane.xlu0 %2242
        %2244 = vmax.xlane.f32.xlu0 %v1957
        %v2245 = vpop.xlane.xlu0 %2244
        %2246 = vmax.xlane.f32.xlu0 %v1962
        %v2247 = vpop.xlane.xlu0 %2246
        %2248 = vmax.xlane.f32.xlu0 %v1965
        %v2249 = vpop.xlane.xlu0 %2248
        %2250 = vmax.xlane.f32.xlu0 %v1970
        %v2251 = vpop.xlane.xlu0 %2250
        %2252 = vmax.xlane.f32.xlu0 %v1973
        %v2253 = vpop.xlane.xlu0 %2252
        %2254 = vmax.xlane.f32.xlu0 %v1978
        %v2255 = vpop.xlane.xlu0 %2254
        %2256 = vmax.xlane.f32.xlu0 %v1981
        %v2257 = vpop.xlane.xlu0 %2256
        %2258 = vmax.xlane.f32.xlu0 %v1986
        %v2259 = vpop.xlane.xlu0 %2258
        %2260 = vmax.xlane.f32.xlu0 %v1989
        %v2261 = vpop.xlane.xlu0 %2260
        %2262 = vmax.xlane.f32.xlu0 %v1994
        %v2263 = vpop.xlane.xlu0 %2262
        %2264 = vmax.xlane.f32.xlu0 %v1997
        %v2265 = vpop.xlane.xlu0 %2264
        %2266 = vmax.xlane.f32.xlu0 %v2002
        %v2267 = vpop.xlane.xlu0 %2266
        %2268 = vmax.xlane.f32.xlu0 %v2005
        %v2269 = vpop.xlane.xlu0 %2268
        %2270 = vmax.xlane.f32.xlu0 %v2010
        %v2271 = vpop.xlane.xlu0 %2270
        %2272 = vmax.xlane.f32.xlu0 %v2013
        %v2273 = vpop.xlane.xlu0 %2272
        %2274 = vmax.xlane.f32.xlu0 %v2051
        %v2275 = vpop.xlane.xlu0 %2274
        %2276 = vmax.xlane.f32.xlu0 %v2054
        %v2277 = vpop.xlane.xlu0 %2276
        %2278 = vmax.xlane.f32.xlu0 %v2059
        %v2279 = vpop.xlane.xlu0 %2278
        %2280 = vmax.xlane.f32.xlu0 %v2062
        %v2281 = vpop.xlane.xlu0 %2280
        %2282 = vmax.xlane.f32.xlu0 %v2067
        %v2283 = vpop.xlane.xlu0 %2282
        %2284 = vmax.xlane.f32.xlu0 %v2070
        %v2285 = vpop.xlane.xlu0 %2284
        %2286 = vmax.xlane.f32.xlu0 %v2075
        %v2287 = vpop.xlane.xlu0 %2286
        %2288 = vmax.xlane.f32.xlu0 %v2078
        %v2289 = vpop.xlane.xlu0 %2288
        %2290 = vmax.xlane.f32.xlu0 %v2083
        %v2291 = vpop.xlane.xlu0 %2290
        %2292 = vmax.xlane.f32.xlu0 %v2086
        %v2293 = vpop.xlane.xlu0 %2292
        %2294 = vmax.xlane.f32.xlu0 %v2091
        %v2295 = vpop.xlane.xlu0 %2294
        %2296 = vmax.xlane.f32.xlu0 %v2094
        %v2297 = vpop.xlane.xlu0 %2296
        %2298 = vmax.xlane.f32.xlu0 %v2099
        %v2299 = vpop.xlane.xlu0 %2298
        %2300 = vmax.xlane.f32.xlu0 %v2102
        %v2301 = vpop.xlane.xlu0 %2300
        %2302 = vmax.xlane.f32.xlu0 %v2107
        %v2303 = vpop.xlane.xlu0 %2302
        %2304 = vmax.xlane.f32.xlu0 %v2110
        %v2305 = vpop.xlane.xlu0 %2304
        %2306 = vmax.xlane.f32.xlu0 %v2148
        %v2307 = vpop.xlane.xlu0 %2306
        %2308 = vmax.xlane.f32.xlu0 %v2151
        %v2309 = vpop.xlane.xlu0 %2308
        %2310 = vmax.xlane.f32.xlu0 %v2156
        %v2311 = vpop.xlane.xlu0 %2310
        %2312 = vmax.xlane.f32.xlu0 %v2159
        %v2313 = vpop.xlane.xlu0 %2312
        %2314 = vmax.xlane.f32.xlu0 %v2164
        %v2315 = vpop.xlane.xlu0 %2314
        %2316 = vmax.xlane.f32.xlu0 %v2167
        %v2317 = vpop.xlane.xlu0 %2316
        %2318 = vmax.xlane.f32.xlu0 %v2172
        %v2319 = vpop.xlane.xlu0 %2318
        %2320 = vmax.xlane.f32.xlu0 %v2175
        %v2321 = vpop.xlane.xlu0 %2320
        %2322 = vmax.xlane.f32.xlu0 %v2180
        %v2323 = vpop.xlane.xlu0 %2322
        %2324 = vmax.xlane.f32.xlu0 %v2183
        %v2325 = vpop.xlane.xlu0 %2324
        %2326 = vmax.xlane.f32.xlu0 %v2188
        %v2327 = vpop.xlane.xlu0 %2326
        %2328 = vmax.xlane.f32.xlu0 %v2191
        %v2329 = vpop.xlane.xlu0 %2328
        %2330 = vmax.xlane.f32.xlu0 %v2196
        %v2331 = vpop.xlane.xlu0 %2330
        %2332 = vmax.xlane.f32.xlu0 %v2199
        %v2333 = vpop.xlane.xlu0 %2332
        %2334 = vmax.xlane.f32.xlu0 %v2204
        %v2335 = vpop.xlane.xlu0 %2334
        %2336 = vmax.xlane.f32.xlu0 %v2207
        %v2337 = vpop.xlane.xlu0 %2336
        %v2338 = vsub.f32 %v1857, %v2211
        %v2339 = vsub.f32 %v1860, %v2213
        %v2340 = vsub.f32 %v1865, %v2215
        %v2341 = vsub.f32 %v1868, %v2217
        %v2342 = vsub.f32 %v1873, %v2219
        %v2343 = vsub.f32 %v1876, %v2221
        %v2344 = vsub.f32 %v1881, %v2223
        %v2345 = vsub.f32 %v1884, %v2225
        %v2346 = vsub.f32 %v1889, %v2227
        %v2347 = vsub.f32 %v1892, %v2229
        %v2348 = vsub.f32 %v1897, %v2231
        %v2349 = vsub.f32 %v1900, %v2233
        %v2350 = vsub.f32 %v1905, %v2235
        %v2351 = vsub.f32 %v1908, %v2237
        %v2352 = vsub.f32 %v1913, %v2239
        %v2353 = vsub.f32 %v1916, %v2241
        %v2354 = vsub.f32 %v1954, %v2243
        %v2355 = vsub.f32 %v1957, %v2245
        %v2356 = vsub.f32 %v1962, %v2247
        %v2357 = vsub.f32 %v1965, %v2249
        %v2358 = vsub.f32 %v1970, %v2251
        %v2359 = vsub.f32 %v1973, %v2253
        %v2360 = vsub.f32 %v1978, %v2255
        %v2361 = vsub.f32 %v1981, %v2257
        %v2362 = vsub.f32 %v1986, %v2259
        %v2363 = vsub.f32 %v1989, %v2261
        %v2364 = vsub.f32 %v1994, %v2263
        %v2365 = vsub.f32 %v1997, %v2265
        %v2366 = vsub.f32 %v2002, %v2267
        %v2367 = vsub.f32 %v2005, %v2269
        %v2368 = vsub.f32 %v2010, %v2271
        %v2369 = vsub.f32 %v2013, %v2273
        %v2370 = vsub.f32 %v2051, %v2275
        %v2371 = vsub.f32 %v2054, %v2277
        %v2372 = vsub.f32 %v2059, %v2279
        %v2373 = vsub.f32 %v2062, %v2281
        %v2374 = vsub.f32 %v2067, %v2283
        %v2375 = vsub.f32 %v2070, %v2285
        %v2376 = vsub.f32 %v2075, %v2287
        %v2377 = vsub.f32 %v2078, %v2289
        %v2378 = vsub.f32 %v2083, %v2291
        %v2379 = vsub.f32 %v2086, %v2293
        %v2380 = vsub.f32 %v2091, %v2295
        %v2381 = vsub.f32 %v2094, %v2297
        %v2382 = vsub.f32 %v2099, %v2299
        %v2383 = vsub.f32 %v2102, %v2301
        %v2384 = vsub.f32 %v2107, %v2303
        %v2385 = vsub.f32 %v2110, %v2305
        %v2386 = vsub.f32 %v2148, %v2307
        %v2387 = vsub.f32 %v2151, %v2309
        %v2388 = vsub.f32 %v2156, %v2311
        %v2389 = vsub.f32 %v2159, %v2313
        %v2390 = vsub.f32 %v2164, %v2315
        %v2391 = vsub.f32 %v2167, %v2317
        %v2392 = vsub.f32 %v2172, %v2319
        %v2393 = vsub.f32 %v2175, %v2321
        %v2394 = vsub.f32 %v2180, %v2323
        %v2395 = vsub.f32 %v2183, %v2325
        %v2396 = vsub.f32 %v2188, %v2327
        %v2397 = vsub.f32 %v2191, %v2329
        %v2398 = vsub.f32 %v2196, %v2331
        %v2399 = vsub.f32 %v2199, %v2333
        %v2400 = vsub.f32 %v2204, %v2335
        %v2401 = vsub.f32 %v2207, %v2337
        %v2402 = vpack.c.bf16 %v2339, %v2338
        %v2403 = vpack.c.bf16 %v2341, %v2340
        %v2404 = vpack.c.bf16 %v2343, %v2342
        %v2405 = vpack.c.bf16 %v2345, %v2344
        %v2406 = vpack.c.bf16 %v2347, %v2346
        %v2407 = vpack.c.bf16 %v2349, %v2348
        %v2408 = vpack.c.bf16 %v2351, %v2350
        %v2409 = vpack.c.bf16 %v2353, %v2352
        %v2410 = vpack.c.bf16 %v2355, %v2354
        %v2411 = vpack.c.bf16 %v2357, %v2356
        %v2412 = vpack.c.bf16 %v2359, %v2358
        %v2413 = vpack.c.bf16 %v2361, %v2360
        %v2414 = vpack.c.bf16 %v2363, %v2362
        %v2415 = vpack.c.bf16 %v2365, %v2364
        %v2416 = vpack.c.bf16 %v2367, %v2366
        %v2417 = vpack.c.bf16 %v2369, %v2368
        %v2418 = vpack.c.bf16 %v2371, %v2370
        %v2419 = vpack.c.bf16 %v2373, %v2372
        %v2420 = vpack.c.bf16 %v2375, %v2374
        %v2421 = vpack.c.bf16 %v2377, %v2376
        %v2422 = vpack.c.bf16 %v2379, %v2378
        %v2423 = vpack.c.bf16 %v2381, %v2380
        %v2424 = vpack.c.bf16 %v2383, %v2382
        %v2425 = vpack.c.bf16 %v2385, %v2384
        %v2426 = vpack.c.bf16 %v2387, %v2386
        %v2427 = vpack.c.bf16 %v2389, %v2388
        %v2428 = vpack.c.bf16 %v2391, %v2390
        %v2429 = vpack.c.bf16 %v2393, %v2392
        %v2430 = vpack.c.bf16 %v2395, %v2394
        %v2431 = vpack.c.bf16 %v2397, %v2396
        %v2432 = vpack.c.bf16 %v2399, %v2398
        %v2433 = vpack.c.bf16 %v2401, %v2400
        %v2435 = vmul.bf16 %v2402, 1069105081
        %v2436 = vpow.bf16.pop %v2435
        %v2438 = vmul.bf16 %v2403, 1069105081
        %v2439 = vpow.bf16.pop %v2438
        %v2441 = vmul.bf16 %v2404, 1069105081
        %v2442 = vpow.bf16.pop %v2441
        %v2444 = vmul.bf16 %v2405, 1069105081
        %v2445 = vpow.bf16.pop %v2444
        %v2447 = vmul.bf16 %v2406, 1069105081
        %v2448 = vpow.bf16.pop %v2447
        %v2450 = vmul.bf16 %v2407, 1069105081
        %v2451 = vpow.bf16.pop %v2450
        %v2453 = vmul.bf16 %v2408, 1069105081
        %v2454 = vpow.bf16.pop %v2453
        %v2456 = vmul.bf16 %v2409, 1069105081
        %v2457 = vpow.bf16.pop %v2456
        %v2459 = vmul.bf16 %v2410, 1069105081
        %v2460 = vpow.bf16.pop %v2459
        %v2462 = vmul.bf16 %v2411, 1069105081
        %v2463 = vpow.bf16.pop %v2462
        %v2465 = vmul.bf16 %v2412, 1069105081
        %v2466 = vpow.bf16.pop %v2465
        %v2468 = vmul.bf16 %v2413, 1069105081
        %v2469 = vpow.bf16.pop %v2468
        %v2471 = vmul.bf16 %v2414, 1069105081
        %v2472 = vpow.bf16.pop %v2471
        %v2474 = vmul.bf16 %v2415, 1069105081
        %v2475 = vpow.bf16.pop %v2474
        %v2477 = vmul.bf16 %v2416, 1069105081
        %v2478 = vpow.bf16.pop %v2477
        %v2480 = vmul.bf16 %v2417, 1069105081
        %v2481 = vpow.bf16.pop %v2480
        %v2483 = vmul.bf16 %v2418, 1069105081
        %v2484 = vpow.bf16.pop %v2483
        %v2486 = vmul.bf16 %v2419, 1069105081
        %v2487 = vpow.bf16.pop %v2486
        %v2489 = vmul.bf16 %v2420, 1069105081
        %v2490 = vpow.bf16.pop %v2489
        %v2492 = vmul.bf16 %v2421, 1069105081
        %v2493 = vpow.bf16.pop %v2492
        %v2495 = vmul.bf16 %v2422, 1069105081
        %v2496 = vpow.bf16.pop %v2495
        %v2498 = vmul.bf16 %v2423, 1069105081
        %v2499 = vpow.bf16.pop %v2498
        %v2501 = vmul.bf16 %v2424, 1069105081
        %v2502 = vpow.bf16.pop %v2501
        %v2504 = vmul.bf16 %v2425, 1069105081
        %v2505 = vpow.bf16.pop %v2504
        %v2507 = vmul.bf16 %v2426, 1069105081
        %v2508 = vpow.bf16.pop %v2507
        %v2510 = vmul.bf16 %v2427, 1069105081
        %v2511 = vpow.bf16.pop %v2510
        %v2513 = vmul.bf16 %v2428, 1069105081
        %v2514 = vpow.bf16.pop %v2513
        %v2516 = vmul.bf16 %v2429, 1069105081
        %v2517 = vpow.bf16.pop %v2516
        %v2519 = vmul.bf16 %v2430, 1069105081
        %v2520 = vpow.bf16.pop %v2519
        %v2522 = vmul.bf16 %v2431, 1069105081
        %v2523 = vpow.bf16.pop %v2522
        %v2525 = vmul.bf16 %v2432, 1069105081
        %v2526 = vpow.bf16.pop %v2525
        %v2528 = vmul.bf16 %v2433, 1069105081
        %v2529 = vpow.bf16.pop %v2528
        %v2530 = vunpack.c.l.bf16 %v2436
        %v2531 = vunpack.c.h.bf16 %v2436
        %v2532 = vunpack.c.l.bf16 %v2439
        %v2533 = vunpack.c.h.bf16 %v2439
        %v2534 = vunpack.c.l.bf16 %v2442
        %v2535 = vunpack.c.h.bf16 %v2442
        %v2536 = vunpack.c.l.bf16 %v2445
        %v2537 = vunpack.c.h.bf16 %v2445
        %v2538 = vunpack.c.l.bf16 %v2448
        %v2539 = vunpack.c.h.bf16 %v2448
        %v2540 = vunpack.c.l.bf16 %v2451
        %v2541 = vunpack.c.h.bf16 %v2451
        %v2542 = vunpack.c.l.bf16 %v2454
        %v2543 = vunpack.c.h.bf16 %v2454
        %v2544 = vunpack.c.l.bf16 %v2457
        %v2545 = vunpack.c.h.bf16 %v2457
        %v2546 = vunpack.c.l.bf16 %v2460
        %v2547 = vunpack.c.h.bf16 %v2460
        %v2548 = vunpack.c.l.bf16 %v2463
        %v2549 = vunpack.c.h.bf16 %v2463
        %v2550 = vunpack.c.l.bf16 %v2466
        %v2551 = vunpack.c.h.bf16 %v2466
        %v2552 = vunpack.c.l.bf16 %v2469
        %v2553 = vunpack.c.h.bf16 %v2469
        %v2554 = vunpack.c.l.bf16 %v2472
        %v2555 = vunpack.c.h.bf16 %v2472
        %v2556 = vunpack.c.l.bf16 %v2475
        %v2557 = vunpack.c.h.bf16 %v2475
        %v2558 = vunpack.c.l.bf16 %v2478
        %v2559 = vunpack.c.h.bf16 %v2478
        %v2560 = vunpack.c.l.bf16 %v2481
        %v2561 = vunpack.c.h.bf16 %v2481
        %v2562 = vunpack.c.l.bf16 %v2484
        %v2563 = vunpack.c.h.bf16 %v2484
        %v2564 = vunpack.c.l.bf16 %v2487
        %v2565 = vunpack.c.h.bf16 %v2487
        %v2566 = vunpack.c.l.bf16 %v2490
        %v2567 = vunpack.c.h.bf16 %v2490
        %v2568 = vunpack.c.l.bf16 %v2493
        %v2569 = vunpack.c.h.bf16 %v2493
        %v2570 = vunpack.c.l.bf16 %v2496
        %v2571 = vunpack.c.h.bf16 %v2496
        %v2572 = vunpack.c.l.bf16 %v2499
        %v2573 = vunpack.c.h.bf16 %v2499
        %v2574 = vunpack.c.l.bf16 %v2502
        %v2575 = vunpack.c.h.bf16 %v2502
        %v2576 = vunpack.c.l.bf16 %v2505
        %v2577 = vunpack.c.h.bf16 %v2505
        %v2578 = vunpack.c.l.bf16 %v2508
        %v2579 = vunpack.c.h.bf16 %v2508
        %v2580 = vunpack.c.l.bf16 %v2511
        %v2581 = vunpack.c.h.bf16 %v2511
        %v2582 = vunpack.c.l.bf16 %v2514
        %v2583 = vunpack.c.h.bf16 %v2514
        %v2584 = vunpack.c.l.bf16 %v2517
        %v2585 = vunpack.c.h.bf16 %v2517
        %v2586 = vunpack.c.l.bf16 %v2520
        %v2587 = vunpack.c.h.bf16 %v2520
        %v2588 = vunpack.c.l.bf16 %v2523
        %v2589 = vunpack.c.h.bf16 %v2523
        %v2590 = vunpack.c.l.bf16 %v2526
        %v2591 = vunpack.c.h.bf16 %v2526
        %v2592 = vunpack.c.l.bf16 %v2529
        %v2593 = vunpack.c.h.bf16 %v2529
        %2594 = vadd.xlane.f32.xlu0 %v2530
        %v2595 = vpop.xlane.xlu0 %2594
        %2596 = vadd.xlane.f32.xlu0 %v2531
        %v2597 = vpop.xlane.xlu0 %2596
        %2598 = vadd.xlane.f32.xlu0 %v2532
        %v2599 = vpop.xlane.xlu0 %2598
        %2600 = vadd.xlane.f32.xlu0 %v2533
        %v2601 = vpop.xlane.xlu0 %2600
        %2602 = vadd.xlane.f32.xlu0 %v2534
        %v2603 = vpop.xlane.xlu0 %2602
        %2604 = vadd.xlane.f32.xlu0 %v2535
        %v2605 = vpop.xlane.xlu0 %2604
        %2606 = vadd.xlane.f32.xlu0 %v2536
        %v2607 = vpop.xlane.xlu0 %2606
        %2608 = vadd.xlane.f32.xlu0 %v2537
        %v2609 = vpop.xlane.xlu0 %2608
        %2610 = vadd.xlane.f32.xlu0 %v2538
        %v2611 = vpop.xlane.xlu0 %2610
        %2612 = vadd.xlane.f32.xlu0 %v2539
        %v2613 = vpop.xlane.xlu0 %2612
        %2614 = vadd.xlane.f32.xlu0 %v2540
        %v2615 = vpop.xlane.xlu0 %2614
        %2616 = vadd.xlane.f32.xlu0 %v2541
        %v2617 = vpop.xlane.xlu0 %2616
        %2618 = vadd.xlane.f32.xlu0 %v2542
        %v2619 = vpop.xlane.xlu0 %2618
        %2620 = vadd.xlane.f32.xlu0 %v2543
        %v2621 = vpop.xlane.xlu0 %2620
        %2622 = vadd.xlane.f32.xlu0 %v2544
        %v2623 = vpop.xlane.xlu0 %2622
        %2624 = vadd.xlane.f32.xlu0 %v2545
        %v2625 = vpop.xlane.xlu0 %2624
        %2626 = vadd.xlane.f32.xlu0 %v2546
        %v2627 = vpop.xlane.xlu0 %2626
        %2628 = vadd.xlane.f32.xlu0 %v2547
        %v2629 = vpop.xlane.xlu0 %2628
        %2630 = vadd.xlane.f32.xlu0 %v2548
        %v2631 = vpop.xlane.xlu0 %2630
        %2632 = vadd.xlane.f32.xlu0 %v2549
        %v2633 = vpop.xlane.xlu0 %2632
        %2634 = vadd.xlane.f32.xlu0 %v2550
        %v2635 = vpop.xlane.xlu0 %2634
        %2636 = vadd.xlane.f32.xlu0 %v2551
        %v2637 = vpop.xlane.xlu0 %2636
        %2638 = vadd.xlane.f32.xlu0 %v2552
        %v2639 = vpop.xlane.xlu0 %2638
        %2640 = vadd.xlane.f32.xlu0 %v2553
        %v2641 = vpop.xlane.xlu0 %2640
        %2642 = vadd.xlane.f32.xlu0 %v2554
        %v2643 = vpop.xlane.xlu0 %2642
        %2644 = vadd.xlane.f32.xlu0 %v2555
        %v2645 = vpop.xlane.xlu0 %2644
        %2646 = vadd.xlane.f32.xlu0 %v2556
        %v2647 = vpop.xlane.xlu0 %2646
        %2648 = vadd.xlane.f32.xlu0 %v2557
        %v2649 = vpop.xlane.xlu0 %2648
        %2650 = vadd.xlane.f32.xlu0 %v2558
        %v2651 = vpop.xlane.xlu0 %2650
        %2652 = vadd.xlane.f32.xlu0 %v2559
        %v2653 = vpop.xlane.xlu0 %2652
        %2654 = vadd.xlane.f32.xlu0 %v2560
        %v2655 = vpop.xlane.xlu0 %2654
        %2656 = vadd.xlane.f32.xlu0 %v2561
        %v2657 = vpop.xlane.xlu0 %2656
        %2658 = vadd.xlane.f32.xlu0 %v2562
        %v2659 = vpop.xlane.xlu0 %2658
        %2660 = vadd.xlane.f32.xlu0 %v2563
        %v2661 = vpop.xlane.xlu0 %2660
        %2662 = vadd.xlane.f32.xlu0 %v2564
        %v2663 = vpop.xlane.xlu0 %2662
        %2664 = vadd.xlane.f32.xlu0 %v2565
        %v2665 = vpop.xlane.xlu0 %2664
        %2666 = vadd.xlane.f32.xlu0 %v2566
        %v2667 = vpop.xlane.xlu0 %2666
        %2668 = vadd.xlane.f32.xlu0 %v2567
        %v2669 = vpop.xlane.xlu0 %2668
        %2670 = vadd.xlane.f32.xlu0 %v2568
        %v2671 = vpop.xlane.xlu0 %2670
        %2672 = vadd.xlane.f32.xlu0 %v2569
        %v2673 = vpop.xlane.xlu0 %2672
        %2674 = vadd.xlane.f32.xlu0 %v2570
        %v2675 = vpop.xlane.xlu0 %2674
        %2676 = vadd.xlane.f32.xlu0 %v2571
        %v2677 = vpop.xlane.xlu0 %2676
        %2678 = vadd.xlane.f32.xlu0 %v2572
        %v2679 = vpop.xlane.xlu0 %2678
        %2680 = vadd.xlane.f32.xlu0 %v2573
        %v2681 = vpop.xlane.xlu0 %2680
        %2682 = vadd.xlane.f32.xlu0 %v2574
        %v2683 = vpop.xlane.xlu0 %2682
        %2684 = vadd.xlane.f32.xlu0 %v2575
        %v2685 = vpop.xlane.xlu0 %2684
        %2686 = vadd.xlane.f32.xlu0 %v2576
        %v2687 = vpop.xlane.xlu0 %2686
        %2688 = vadd.xlane.f32.xlu0 %v2577
        %v2689 = vpop.xlane.xlu0 %2688
        %2690 = vadd.xlane.f32.xlu0 %v2578
        %v2691 = vpop.xlane.xlu0 %2690
        %2692 = vadd.xlane.f32.xlu0 %v2579
        %v2693 = vpop.xlane.xlu0 %2692
        %2694 = vadd.xlane.f32.xlu0 %v2580
        %v2695 = vpop.xlane.xlu0 %2694
        %2696 = vadd.xlane.f32.xlu0 %v2581
        %v2697 = vpop.xlane.xlu0 %2696
        %2698 = vadd.xlane.f32.xlu0 %v2582
        %v2699 = vpop.xlane.xlu0 %2698
        %2700 = vadd.xlane.f32.xlu0 %v2583
        %v2701 = vpop.xlane.xlu0 %2700
        %2702 = vadd.xlane.f32.xlu0 %v2584
        %v2703 = vpop.xlane.xlu0 %2702
        %2704 = vadd.xlane.f32.xlu0 %v2585
        %v2705 = vpop.xlane.xlu0 %2704
        %2706 = vadd.xlane.f32.xlu0 %v2586
        %v2707 = vpop.xlane.xlu0 %2706
        %2708 = vadd.xlane.f32.xlu0 %v2587
        %v2709 = vpop.xlane.xlu0 %2708
        %2710 = vadd.xlane.f32.xlu0 %v2588
        %v2711 = vpop.xlane.xlu0 %2710
        %2712 = vadd.xlane.f32.xlu0 %v2589
        %v2713 = vpop.xlane.xlu0 %2712
        %2714 = vadd.xlane.f32.xlu0 %v2590
        %v2715 = vpop.xlane.xlu0 %2714
        %2716 = vadd.xlane.f32.xlu0 %v2591
        %v2717 = vpop.xlane.xlu0 %2716
        %2718 = vadd.xlane.f32.xlu0 %v2592
        %v2719 = vpop.xlane.xlu0 %2718
        %2720 = vadd.xlane.f32.xlu0 %v2593
        %v2721 = vpop.xlane.xlu0 %2720
        %v2722 = vrcp.pop %v2595
        %v2723 = vrcp.pop %v2597
        %v2724 = vrcp.pop %v2599
        %v2725 = vrcp.pop %v2601
        %v2726 = vrcp.pop %v2603
        %v2727 = vrcp.pop %v2605
        %v2728 = vrcp.pop %v2607
        %v2729 = vrcp.pop %v2609
        %v2730 = vrcp.pop %v2611
        %v2731 = vrcp.pop %v2613
        %v2732 = vrcp.pop %v2615
        %v2733 = vrcp.pop %v2617
        %v2734 = vrcp.pop %v2619
        %v2735 = vrcp.pop %v2621
        %v2736 = vrcp.pop %v2623
        %v2737 = vrcp.pop %v2625
        %v2738 = vrcp.pop %v2627
        %v2739 = vrcp.pop %v2629
        %v2740 = vrcp.pop %v2631
        %v2741 = vrcp.pop %v2633
        %v2742 = vrcp.pop %v2635
        %v2743 = vrcp.pop %v2637
        %v2744 = vrcp.pop %v2639
        %v2745 = vrcp.pop %v2641
        %v2746 = vrcp.pop %v2643
        %v2747 = vrcp.pop %v2645
        %v2748 = vrcp.pop %v2647
        %v2749 = vrcp.pop %v2649
        %v2750 = vrcp.pop %v2651
        %v2751 = vrcp.pop %v2653
        %v2752 = vrcp.pop %v2655
        %v2753 = vrcp.pop %v2657
        %v2754 = vrcp.pop %v2659
        %v2755 = vrcp.pop %v2661
        %v2756 = vrcp.pop %v2663
        %v2757 = vrcp.pop %v2665
        %v2758 = vrcp.pop %v2667
        %v2759 = vrcp.pop %v2669
        %v2760 = vrcp.pop %v2671
        %v2761 = vrcp.pop %v2673
        %v2762 = vrcp.pop %v2675
        %v2763 = vrcp.pop %v2677
        %v2764 = vrcp.pop %v2679
        %v2765 = vrcp.pop %v2681
        %v2766 = vrcp.pop %v2683
        %v2767 = vrcp.pop %v2685
        %v2768 = vrcp.pop %v2687
        %v2769 = vrcp.pop %v2689
        %v2770 = vrcp.pop %v2691
        %v2771 = vrcp.pop %v2693
        %v2772 = vrcp.pop %v2695
        %v2773 = vrcp.pop %v2697
        %v2774 = vrcp.pop %v2699
        %v2775 = vrcp.pop %v2701
        %v2776 = vrcp.pop %v2703
        %v2777 = vrcp.pop %v2705
        %v2778 = vrcp.pop %v2707
        %v2779 = vrcp.pop %v2709
        %v2780 = vrcp.pop %v2711
        %v2781 = vrcp.pop %v2713
        %v2782 = vrcp.pop %v2715
        %v2783 = vrcp.pop %v2717
        %v2784 = vrcp.pop %v2719
        %v2785 = vrcp.pop %v2721
        %v2786 = vpack.c.bf16 %v2723, %v2722
        %v2787 = vpack.c.bf16 %v2725, %v2724
        %v2788 = vpack.c.bf16 %v2727, %v2726
        %v2789 = vpack.c.bf16 %v2729, %v2728
        %v2790 = vpack.c.bf16 %v2731, %v2730
        %v2791 = vpack.c.bf16 %v2733, %v2732
        %v2792 = vpack.c.bf16 %v2735, %v2734
        %v2793 = vpack.c.bf16 %v2737, %v2736
        %v2794 = vpack.c.bf16 %v2739, %v2738
        %v2795 = vpack.c.bf16 %v2741, %v2740
        %v2796 = vpack.c.bf16 %v2743, %v2742
        %v2797 = vpack.c.bf16 %v2745, %v2744
        %v2798 = vpack.c.bf16 %v2747, %v2746
        %v2799 = vpack.c.bf16 %v2749, %v2748
        %v2800 = vpack.c.bf16 %v2751, %v2750
        %v2801 = vpack.c.bf16 %v2753, %v2752
        %v2802 = vpack.c.bf16 %v2755, %v2754
        %v2803 = vpack.c.bf16 %v2757, %v2756
        %v2804 = vpack.c.bf16 %v2759, %v2758
        %v2805 = vpack.c.bf16 %v2761, %v2760
        %v2806 = vpack.c.bf16 %v2763, %v2762
        %v2807 = vpack.c.bf16 %v2765, %v2764
        %v2808 = vpack.c.bf16 %v2767, %v2766
        %v2809 = vpack.c.bf16 %v2769, %v2768
        %v2810 = vpack.c.bf16 %v2771, %v2770
        %v2811 = vpack.c.bf16 %v2773, %v2772
        %v2812 = vpack.c.bf16 %v2775, %v2774
        %v2813 = vpack.c.bf16 %v2777, %v2776
        %v2814 = vpack.c.bf16 %v2779, %v2778
        %v2815 = vpack.c.bf16 %v2781, %v2780
        %v2816 = vpack.c.bf16 %v2783, %v2782
        %v2817 = vpack.c.bf16 %v2785, %v2784
        %v2818 = vmul.bf16 %v2436, %v2786
        %v2819 = vmul.bf16 %v2439, %v2787
        %v2820 = vmul.bf16 %v2442, %v2788
        %v2821 = vmul.bf16 %v2445, %v2789
        %v2822 = vmul.bf16 %v2448, %v2790
        %v2823 = vmul.bf16 %v2451, %v2791
        %v2824 = vmul.bf16 %v2454, %v2792
        %v2825 = vmul.bf16 %v2457, %v2793
        %v2826 = vmul.bf16 %v2460, %v2794
        %v2827 = vmul.bf16 %v2463, %v2795
        %v2828 = vmul.bf16 %v2466, %v2796
        %v2829 = vmul.bf16 %v2469, %v2797
        %v2830 = vmul.bf16 %v2472, %v2798
        %v2831 = vmul.bf16 %v2475, %v2799
        %v2832 = vmul.bf16 %v2478, %v2800
        %v2833 = vmul.bf16 %v2481, %v2801
        %v2834 = vmul.bf16 %v2484, %v2802
        %v2835 = vmul.bf16 %v2487, %v2803
        %v2836 = vmul.bf16 %v2490, %v2804
        %v2837 = vmul.bf16 %v2493, %v2805
        %v2838 = vmul.bf16 %v2496, %v2806
        %v2839 = vmul.bf16 %v2499, %v2807
        %v2840 = vmul.bf16 %v2502, %v2808
        %v2841 = vmul.bf16 %v2505, %v2809
        %v2842 = vmul.bf16 %v2508, %v2810
        %v2843 = vmul.bf16 %v2511, %v2811
        %v2844 = vmul.bf16 %v2514, %v2812
        %v2845 = vmul.bf16 %v2517, %v2813
        %v2846 = vmul.bf16 %v2520, %v2814
        %v2847 = vmul.bf16 %v2523, %v2815
        %v2848 = vmul.bf16 %v2526, %v2816
        %v2849 = vmul.bf16 %v2529, %v2817
        %2850 = vmatprep.subr.bf16.mxu0 0
        %2851 = vmatpush1.bf16.msra.mxu0 %v1756
        %2852 = vmatprep.subr.bf16.mxu0 0
        %2853 = vmatpush1.bf16.msra.mxu0 %v1754
        %2854 = vmatprep.subr.bf16.mxu0 0
        %2855 = vmatpush1.bf16.msra.mxu0 %v1752
        %2856 = vmatprep.subr.bf16.mxu0 0
        %2857 = vmatpush1.bf16.msra.mxu0 %v1750
        %2858 = vmatprep.subr.bf16.mxu0 0
        %2859 = vmatpush1.bf16.msra.mxu0 %v1748
        %2860 = vmatprep.subr.bf16.mxu0 0
        %2861 = vmatpush1.bf16.msra.mxu0 %v1746
        %2862 = vmatprep.subr.bf16.mxu0 0
        %2863 = vmatpush1.bf16.msra.mxu0 %v1744
        %2864 = vmatprep.subr.bf16.mxu0 0
        %2865 = vmatpush1.bf16.msra.mxu0 %v1742
        %2866 = vmatprep.subr.bf16.mxu0 0
        %2867 = vmatpush2.bf16.msra.mxu0 0
        %2868 = vmatprep.subr.bf16.mxu0 0
        %2869 = vmatpush2.bf16.msra.mxu0 0
        %2870 = vmatprep.subr.bf16.mxu0 0
        %2871 = vmatpush2.bf16.msra.mxu0 0
        %2872 = vmatprep.subr.bf16.mxu0 0
        %2873 = vmatpush2.bf16.msra.mxu0 0
        %2874 = vmatprep.subr.bf16.mxu0 0
        %2875 = vmatpush2.bf16.msra.mxu0 0
        %2876 = vmatprep.subr.bf16.mxu0 0
        %2877 = vmatpush2.bf16.msra.mxu0 0
        %2878 = vmatprep.subr.bf16.mxu0 0
        %2879 = vmatpush2.bf16.msra.mxu0 0
        %2880 = vmatprep.subr.bf16.mxu0 0
        %2881 = vmatpush2.bf16.msra.mxu0 0
        %2882 = vmatprep.mubr.bf16.mxu0 0
        %2883 = vmatmul.mubr.bf16.gmra.mxu0 %v2818
        %v2884 = vpop.f32.mrf.mxu0
        %v2885 = vadd.f32 0.0, %v2884
        %v2886 = vpop.f32.mrf.mxu0
        %v2887 = vpop.f32.mrf.mxu0
        %v2888 = vadd.f32 0.0, %v2887
        %v2889 = vpop.f32.mrf.mxu0
        %2890 = vmatprep.mubr.bf16.mxu0 0
        %2891 = vmatmul.mubr.bf16.gmra.mxu0 %v2819
        %v2892 = vpop.f32.mrf.mxu0
        %v2893 = vadd.f32 0.0, %v2892
        %v2894 = vpop.f32.mrf.mxu0
        %v2895 = vpop.f32.mrf.mxu0
        %v2896 = vadd.f32 0.0, %v2895
        %v2897 = vpop.f32.mrf.mxu0
        %2898 = vmatprep.mubr.bf16.mxu0 0
        %2899 = vmatmul.mubr.bf16.gmra.mxu0 %v2820
        %v2900 = vpop.f32.mrf.mxu0
        %v2901 = vadd.f32 0.0, %v2900
        %v2902 = vpop.f32.mrf.mxu0
        %v2903 = vpop.f32.mrf.mxu0
        %v2904 = vadd.f32 0.0, %v2903
        %v2905 = vpop.f32.mrf.mxu0
        %2906 = vmatprep.mubr.bf16.mxu0 0
        %2907 = vmatmul.mubr.bf16.gmra.mxu0 %v2821
        %v2908 = vpop.f32.mrf.mxu0
        %v2909 = vadd.f32 0.0, %v2908
        %v2910 = vpop.f32.mrf.mxu0
        %v2911 = vpop.f32.mrf.mxu0
        %v2912 = vadd.f32 0.0, %v2911
        %v2913 = vpop.f32.mrf.mxu0
        %2914 = vmatprep.mubr.bf16.mxu0 0
        %2915 = vmatmul.mubr.bf16.gmra.mxu0 %v2822
        %v2916 = vpop.f32.mrf.mxu0
        %v2917 = vadd.f32 0.0, %v2916
        %v2918 = vpop.f32.mrf.mxu0
        %v2919 = vpop.f32.mrf.mxu0
        %v2920 = vadd.f32 0.0, %v2919
        %v2921 = vpop.f32.mrf.mxu0
        %2922 = vmatprep.mubr.bf16.mxu0 0
        %2923 = vmatmul.mubr.bf16.gmra.mxu0 %v2823
        %v2924 = vpop.f32.mrf.mxu0
        %v2925 = vadd.f32 0.0, %v2924
        %v2926 = vpop.f32.mrf.mxu0
        %v2927 = vpop.f32.mrf.mxu0
        %v2928 = vadd.f32 0.0, %v2927
        %v2929 = vpop.f32.mrf.mxu0
        %2930 = vmatprep.mubr.bf16.mxu0 0
        %2931 = vmatmul.mubr.bf16.gmra.mxu0 %v2824
        %v2932 = vpop.f32.mrf.mxu0
        %v2933 = vadd.f32 0.0, %v2932
        %v2934 = vpop.f32.mrf.mxu0
        %v2935 = vpop.f32.mrf.mxu0
        %v2936 = vadd.f32 0.0, %v2935
        %v2937 = vpop.f32.mrf.mxu0
        %2938 = vmatprep.mubr.bf16.mxu0 0
        %2939 = vmatmul.mubr.bf16.gmra.mxu0 %v2825
        %v2940 = vpop.f32.mrf.mxu0
        %v2941 = vadd.f32 0.0, %v2940
        %v2942 = vpop.f32.mrf.mxu0
        %v2943 = vpop.f32.mrf.mxu0
        %v2944 = vadd.f32 0.0, %v2943
        %v2945 = vpop.f32.mrf.mxu0
        %2946 = vdwg.mxu0
        %2947 = vmatprep.subr.bf16.mxu0 0
        %2948 = vmatpush1.bf16.msra.mxu0 %v1772
        %2949 = vmatprep.subr.bf16.mxu0 0
        %2950 = vmatpush1.bf16.msra.mxu0 %v1770
        %2951 = vmatprep.subr.bf16.mxu0 0
        %2952 = vmatpush1.bf16.msra.mxu0 %v1768
        %2953 = vmatprep.subr.bf16.mxu0 0
        %2954 = vmatpush1.bf16.msra.mxu0 %v1766
        %2955 = vmatprep.subr.bf16.mxu0 0
        %2956 = vmatpush1.bf16.msra.mxu0 %v1764
        %2957 = vmatprep.subr.bf16.mxu0 0
        %2958 = vmatpush1.bf16.msra.mxu0 %v1762
        %2959 = vmatprep.subr.bf16.mxu0 0
        %2960 = vmatpush1.bf16.msra.mxu0 %v1760
        %2961 = vmatprep.subr.bf16.mxu0 0
        %2962 = vmatpush1.bf16.msra.mxu0 %v1758
        %2963 = vmatprep.subr.bf16.mxu0 0
        %2964 = vmatpush2.bf16.msra.mxu0 0
        %2965 = vmatprep.subr.bf16.mxu0 0
        %2966 = vmatpush2.bf16.msra.mxu0 0
        %2967 = vmatprep.subr.bf16.mxu0 0
        %2968 = vmatpush2.bf16.msra.mxu0 0
        %2969 = vmatprep.subr.bf16.mxu0 0
        %2970 = vmatpush2.bf16.msra.mxu0 0
        %2971 = vmatprep.subr.bf16.mxu0 0
        %2972 = vmatpush2.bf16.msra.mxu0 0
        %2973 = vmatprep.subr.bf16.mxu0 0
        %2974 = vmatpush2.bf16.msra.mxu0 0
        %2975 = vmatprep.subr.bf16.mxu0 0
        %2976 = vmatpush2.bf16.msra.mxu0 0
        %2977 = vmatprep.subr.bf16.mxu0 0
        %2978 = vmatpush2.bf16.msra.mxu0 0
        %2979 = vmatprep.mubr.bf16.mxu0 0
        %2980 = vmatmul.mubr.bf16.gmra.mxu0 %v2826
        %v2981 = vpop.f32.mrf.mxu0
        %v2982 = vadd.f32 0.0, %v2981
        %v2983 = vpop.f32.mrf.mxu0
        %v2984 = vpop.f32.mrf.mxu0
        %v2985 = vadd.f32 0.0, %v2984
        %v2986 = vpop.f32.mrf.mxu0
        %2987 = vmatprep.mubr.bf16.mxu0 0
        %2988 = vmatmul.mubr.bf16.gmra.mxu0 %v2827
        %v2989 = vpop.f32.mrf.mxu0
        %v2990 = vadd.f32 0.0, %v2989
        %v2991 = vpop.f32.mrf.mxu0
        %v2992 = vpop.f32.mrf.mxu0
        %v2993 = vadd.f32 0.0, %v2992
        %v2994 = vpop.f32.mrf.mxu0
        %2995 = vmatprep.mubr.bf16.mxu0 0
        %2996 = vmatmul.mubr.bf16.gmra.mxu0 %v2828
        %v2997 = vpop.f32.mrf.mxu0
        %v2998 = vadd.f32 0.0, %v2997
        %v2999 = vpop.f32.mrf.mxu0
        %v3000 = vpop.f32.mrf.mxu0
        %v3001 = vadd.f32 0.0, %v3000
        %v3002 = vpop.f32.mrf.mxu0
        %3003 = vmatprep.mubr.bf16.mxu0 0
        %3004 = vmatmul.mubr.bf16.gmra.mxu0 %v2829
        %v3005 = vpop.f32.mrf.mxu0
        %v3006 = vadd.f32 0.0, %v3005
        %v3007 = vpop.f32.mrf.mxu0
        %v3008 = vpop.f32.mrf.mxu0
        %v3009 = vadd.f32 0.0, %v3008
        %v3010 = vpop.f32.mrf.mxu0
        %3011 = vmatprep.mubr.bf16.mxu0 0
        %3012 = vmatmul.mubr.bf16.gmra.mxu0 %v2830
        %v3013 = vpop.f32.mrf.mxu0
        %v3014 = vadd.f32 0.0, %v3013
        %v3015 = vpop.f32.mrf.mxu0
        %v3016 = vpop.f32.mrf.mxu0
        %v3017 = vadd.f32 0.0, %v3016
        %v3018 = vpop.f32.mrf.mxu0
        %3019 = vmatprep.mubr.bf16.mxu0 0
        %3020 = vmatmul.mubr.bf16.gmra.mxu0 %v2831
        %v3021 = vpop.f32.mrf.mxu0
        %v3022 = vadd.f32 0.0, %v3021
        %v3023 = vpop.f32.mrf.mxu0
        %v3024 = vpop.f32.mrf.mxu0
        %v3025 = vadd.f32 0.0, %v3024
        %v3026 = vpop.f32.mrf.mxu0
        %3027 = vmatprep.mubr.bf16.mxu0 0
        %3028 = vmatmul.mubr.bf16.gmra.mxu0 %v2832
        %v3029 = vpop.f32.mrf.mxu0
        %v3030 = vadd.f32 0.0, %v3029
        %v3031 = vpop.f32.mrf.mxu0
        %v3032 = vpop.f32.mrf.mxu0
        %v3033 = vadd.f32 0.0, %v3032
        %v3034 = vpop.f32.mrf.mxu0
        %3035 = vmatprep.mubr.bf16.mxu0 0
        %3036 = vmatmul.mubr.bf16.gmra.mxu0 %v2833
        %v3037 = vpop.f32.mrf.mxu0
        %v3038 = vadd.f32 0.0, %v3037
        %v3039 = vpop.f32.mrf.mxu0
        %v3040 = vpop.f32.mrf.mxu0
        %v3041 = vadd.f32 0.0, %v3040
        %v3042 = vpop.f32.mrf.mxu0
        %3043 = vdwg.mxu0
        %3044 = vmatprep.subr.bf16.mxu0 0
        %3045 = vmatpush1.bf16.msra.mxu0 %v1788
        %3046 = vmatprep.subr.bf16.mxu0 0
        %3047 = vmatpush1.bf16.msra.mxu0 %v1786
        %3048 = vmatprep.subr.bf16.mxu0 0
        %3049 = vmatpush1.bf16.msra.mxu0 %v1784
        %3050 = vmatprep.subr.bf16.mxu0 0
        %3051 = vmatpush1.bf16.msra.mxu0 %v1782
        %3052 = vmatprep.subr.bf16.mxu0 0
        %3053 = vmatpush1.bf16.msra.mxu0 %v1780
        %3054 = vmatprep.subr.bf16.mxu0 0
        %3055 = vmatpush1.bf16.msra.mxu0 %v1778
        %3056 = vmatprep.subr.bf16.mxu0 0
        %3057 = vmatpush1.bf16.msra.mxu0 %v1776
        %3058 = vmatprep.subr.bf16.mxu0 0
        %3059 = vmatpush1.bf16.msra.mxu0 %v1774
        %3060 = vmatprep.subr.bf16.mxu0 0
        %3061 = vmatpush2.bf16.msra.mxu0 0
        %3062 = vmatprep.subr.bf16.mxu0 0
        %3063 = vmatpush2.bf16.msra.mxu0 0
        %3064 = vmatprep.subr.bf16.mxu0 0
        %3065 = vmatpush2.bf16.msra.mxu0 0
        %3066 = vmatprep.subr.bf16.mxu0 0
        %3067 = vmatpush2.bf16.msra.mxu0 0
        %3068 = vmatprep.subr.bf16.mxu0 0
        %3069 = vmatpush2.bf16.msra.mxu0 0
        %3070 = vmatprep.subr.bf16.mxu0 0
        %3071 = vmatpush2.bf16.msra.mxu0 0
        %3072 = vmatprep.subr.bf16.mxu0 0
        %3073 = vmatpush2.bf16.msra.mxu0 0
        %3074 = vmatprep.subr.bf16.mxu0 0
        %3075 = vmatpush2.bf16.msra.mxu0 0
        %3076 = vmatprep.mubr.bf16.mxu0 0
        %3077 = vmatmul.mubr.bf16.gmra.mxu0 %v2834
        %v3078 = vpop.f32.mrf.mxu0
        %v3079 = vadd.f32 0.0, %v3078
        %v3080 = vpop.f32.mrf.mxu0
        %v3081 = vpop.f32.mrf.mxu0
        %v3082 = vadd.f32 0.0, %v3081
        %v3083 = vpop.f32.mrf.mxu0
        %3084 = vmatprep.mubr.bf16.mxu0 0
        %3085 = vmatmul.mubr.bf16.gmra.mxu0 %v2835
        %v3086 = vpop.f32.mrf.mxu0
        %v3087 = vadd.f32 0.0, %v3086
        %v3088 = vpop.f32.mrf.mxu0
        %v3089 = vpop.f32.mrf.mxu0
        %v3090 = vadd.f32 0.0, %v3089
        %v3091 = vpop.f32.mrf.mxu0
        %3092 = vmatprep.mubr.bf16.mxu0 0
        %3093 = vmatmul.mubr.bf16.gmra.mxu0 %v2836
        %v3094 = vpop.f32.mrf.mxu0
        %v3095 = vadd.f32 0.0, %v3094
        %v3096 = vpop.f32.mrf.mxu0
        %v3097 = vpop.f32.mrf.mxu0
        %v3098 = vadd.f32 0.0, %v3097
        %v3099 = vpop.f32.mrf.mxu0
        %3100 = vmatprep.mubr.bf16.mxu0 0
        %3101 = vmatmul.mubr.bf16.gmra.mxu0 %v2837
        %v3102 = vpop.f32.mrf.mxu0
        %v3103 = vadd.f32 0.0, %v3102
        %v3104 = vpop.f32.mrf.mxu0
        %v3105 = vpop.f32.mrf.mxu0
        %v3106 = vadd.f32 0.0, %v3105
        %v3107 = vpop.f32.mrf.mxu0
        %3108 = vmatprep.mubr.bf16.mxu0 0
        %3109 = vmatmul.mubr.bf16.gmra.mxu0 %v2838
        %v3110 = vpop.f32.mrf.mxu0
        %v3111 = vadd.f32 0.0, %v3110
        %v3112 = vpop.f32.mrf.mxu0
        %v3113 = vpop.f32.mrf.mxu0
        %v3114 = vadd.f32 0.0, %v3113
        %v3115 = vpop.f32.mrf.mxu0
        %3116 = vmatprep.mubr.bf16.mxu0 0
        %3117 = vmatmul.mubr.bf16.gmra.mxu0 %v2839
        %v3118 = vpop.f32.mrf.mxu0
        %v3119 = vadd.f32 0.0, %v3118
        %v3120 = vpop.f32.mrf.mxu0
        %v3121 = vpop.f32.mrf.mxu0
        %v3122 = vadd.f32 0.0, %v3121
        %v3123 = vpop.f32.mrf.mxu0
        %3124 = vmatprep.mubr.bf16.mxu0 0
        %3125 = vmatmul.mubr.bf16.gmra.mxu0 %v2840
        %v3126 = vpop.f32.mrf.mxu0
        %v3127 = vadd.f32 0.0, %v3126
        %v3128 = vpop.f32.mrf.mxu0
        %v3129 = vpop.f32.mrf.mxu0
        %v3130 = vadd.f32 0.0, %v3129
        %v3131 = vpop.f32.mrf.mxu0
        %3132 = vmatprep.mubr.bf16.mxu0 0
        %3133 = vmatmul.mubr.bf16.gmra.mxu0 %v2841
        %v3134 = vpop.f32.mrf.mxu0
        %v3135 = vadd.f32 0.0, %v3134
        %v3136 = vpop.f32.mrf.mxu0
        %v3137 = vpop.f32.mrf.mxu0
        %v3138 = vadd.f32 0.0, %v3137
        %v3139 = vpop.f32.mrf.mxu0
        %3140 = vdwg.mxu0
        %3141 = vmatprep.subr.bf16.mxu0 0
        %3142 = vmatpush1.bf16.msra.mxu0 %v1804
        %3143 = vmatprep.subr.bf16.mxu0 0
        %3144 = vmatpush1.bf16.msra.mxu0 %v1802
        %3145 = vmatprep.subr.bf16.mxu0 0
        %3146 = vmatpush1.bf16.msra.mxu0 %v1800
        %3147 = vmatprep.subr.bf16.mxu0 0
        %3148 = vmatpush1.bf16.msra.mxu0 %v1798
        %3149 = vmatprep.subr.bf16.mxu0 0
        %3150 = vmatpush1.bf16.msra.mxu0 %v1796
        %3151 = vmatprep.subr.bf16.mxu0 0
        %3152 = vmatpush1.bf16.msra.mxu0 %v1794
        %3153 = vmatprep.subr.bf16.mxu0 0
        %3154 = vmatpush1.bf16.msra.mxu0 %v1792
        %3155 = vmatprep.subr.bf16.mxu0 0
        %3156 = vmatpush1.bf16.msra.mxu0 %v1790
        %3157 = vmatprep.subr.bf16.mxu0 0
        %3158 = vmatpush2.bf16.msra.mxu0 0
        %3159 = vmatprep.subr.bf16.mxu0 0
        %3160 = vmatpush2.bf16.msra.mxu0 0
        %3161 = vmatprep.subr.bf16.mxu0 0
        %3162 = vmatpush2.bf16.msra.mxu0 0
        %3163 = vmatprep.subr.bf16.mxu0 0
        %3164 = vmatpush2.bf16.msra.mxu0 0
        %3165 = vmatprep.subr.bf16.mxu0 0
        %3166 = vmatpush2.bf16.msra.mxu0 0
        %3167 = vmatprep.subr.bf16.mxu0 0
        %3168 = vmatpush2.bf16.msra.mxu0 0
        %3169 = vmatprep.subr.bf16.mxu0 0
        %3170 = vmatpush2.bf16.msra.mxu0 0
        %3171 = vmatprep.subr.bf16.mxu0 0
        %3172 = vmatpush2.bf16.msra.mxu0 0
        %3173 = vmatprep.mubr.bf16.mxu0 0
        %3174 = vmatmul.mubr.bf16.gmra.mxu0 %v2842
        %v3175 = vpop.f32.mrf.mxu0
        %v3176 = vadd.f32 0.0, %v3175
        %v3177 = vpop.f32.mrf.mxu0
        %v3178 = vpop.f32.mrf.mxu0
        %v3179 = vadd.f32 0.0, %v3178
        %v3180 = vpop.f32.mrf.mxu0
        %3181 = vmatprep.mubr.bf16.mxu0 0
        %3182 = vmatmul.mubr.bf16.gmra.mxu0 %v2843
        %v3183 = vpop.f32.mrf.mxu0
        %v3184 = vadd.f32 0.0, %v3183
        %v3185 = vpop.f32.mrf.mxu0
        %v3186 = vpop.f32.mrf.mxu0
        %v3187 = vadd.f32 0.0, %v3186
        %v3188 = vpop.f32.mrf.mxu0
        %3189 = vmatprep.mubr.bf16.mxu0 0
        %3190 = vmatmul.mubr.bf16.gmra.mxu0 %v2844
        %v3191 = vpop.f32.mrf.mxu0
        %v3192 = vadd.f32 0.0, %v3191
        %v3193 = vpop.f32.mrf.mxu0
        %v3194 = vpop.f32.mrf.mxu0
        %v3195 = vadd.f32 0.0, %v3194
        %v3196 = vpop.f32.mrf.mxu0
        %3197 = vmatprep.mubr.bf16.mxu0 0
        %3198 = vmatmul.mubr.bf16.gmra.mxu0 %v2845
        %v3199 = vpop.f32.mrf.mxu0
        %v3200 = vadd.f32 0.0, %v3199
        %v3201 = vpop.f32.mrf.mxu0
        %v3202 = vpop.f32.mrf.mxu0
        %v3203 = vadd.f32 0.0, %v3202
        %v3204 = vpop.f32.mrf.mxu0
        %3205 = vmatprep.mubr.bf16.mxu0 0
        %3206 = vmatmul.mubr.bf16.gmra.mxu0 %v2846
        %v3207 = vpop.f32.mrf.mxu0
        %v3208 = vadd.f32 0.0, %v3207
        %v3209 = vpop.f32.mrf.mxu0
        %v3210 = vpop.f32.mrf.mxu0
        %v3211 = vadd.f32 0.0, %v3210
        %v3212 = vpop.f32.mrf.mxu0
        %3213 = vmatprep.mubr.bf16.mxu0 0
        %3214 = vmatmul.mubr.bf16.gmra.mxu0 %v2847
        %v3215 = vpop.f32.mrf.mxu0
        %v3216 = vadd.f32 0.0, %v3215
        %v3217 = vpop.f32.mrf.mxu0
        %v3218 = vpop.f32.mrf.mxu0
        %v3219 = vadd.f32 0.0, %v3218
        %v3220 = vpop.f32.mrf.mxu0
        %3221 = vmatprep.mubr.bf16.mxu0 0
        %3222 = vmatmul.mubr.bf16.gmra.mxu0 %v2848
        %v3223 = vpop.f32.mrf.mxu0
        %v3224 = vadd.f32 0.0, %v3223
        %v3225 = vpop.f32.mrf.mxu0
        %v3226 = vpop.f32.mrf.mxu0
        %v3227 = vadd.f32 0.0, %v3226
        %v3228 = vpop.f32.mrf.mxu0
        %3229 = vmatprep.mubr.bf16.mxu0 0
        %3230 = vmatmul.mubr.bf16.gmra.mxu0 %v2849
        %v3231 = vpop.f32.mrf.mxu0
        %v3232 = vadd.f32 0.0, %v3231
        %v3233 = vpop.f32.mrf.mxu0
        %v3234 = vpop.f32.mrf.mxu0
        %v3235 = vadd.f32 0.0, %v3234
        %v3236 = vpop.f32.mrf.mxu0
        %3237 = vdwg.mxu0
        %v3238 = vld [vmem:[%s3] sm:$0x3]
        %v3241 = vunpack.c.l.s4 1966171168
        %v3242 = vunpack.c.0.s8 %v3241
        %v3243 = vlaneseq
        %v3244 = vshrl.u32 %v3243, 7
        %v3245 = vsub.s32 %v3242, %v3244
        %v3246 = vrot.slane %v3238, %v3245
        %v3247 = vcombine.high %v3246, %v3246
        %v3249 = vunpack.c.l.s4 1966171168
        %v3250 = vunpack.c.0.s8 %v3249
        %v3251 = vlaneseq
        %v3252 = vshrl.u32 %v3251, 7
        %v3253 = vsub.s32 %v3250, %v3252
        %v3254 = vrot.slane %v3246, %v3253
        %v3256 = vunpack.c.l.s4 1966171168
        %v3257 = vunpack.c.0.s8 %v3256
        %v3258 = vlaneseq
        %v3259 = vshrl.u32 %v3258, 7
        %v3260 = vsub.s32 %v3257, %v3259
        %v3261 = vrot.slane %v3247, %v3260
        %v3262 = vlaneseq
        %v3263 = vshrl.u32 %v3262, 7
        %v3264 = vsub.s32 0, %v3263
        %v3265 = vrot.slane %v3254, %v3264
        %v3266 = vlaneseq
        %v3267 = vshrl.u32 %v3266, 7
        %v3268 = vsub.s32 0, %v3267
        %v3269 = vrot.slane %v3261, %v3268
        %v3272 = vmul.f32 %v2885, %v3265
        %v3273 = vmul.f32 %v2888, %v3265
        %v3274 = vmul.f32 %v2893, %v3269
        %v3275 = vmul.f32 %v2896, %v3269
        %v3276 = vmul.f32 %v2901, %v3265
        %v3277 = vmul.f32 %v2904, %v3265
        %v3278 = vmul.f32 %v2909, %v3269
        %v3279 = vmul.f32 %v2912, %v3269
        %v3280 = vmul.f32 %v2917, %v3265
        %v3281 = vmul.f32 %v2920, %v3265
        %v3282 = vmul.f32 %v2925, %v3269
        %v3283 = vmul.f32 %v2928, %v3269
        %v3284 = vmul.f32 %v2933, %v3265
        %v3285 = vmul.f32 %v2936, %v3265
        %v3286 = vmul.f32 %v2941, %v3269
        %v3287 = vmul.f32 %v2944, %v3269
        %v3288 = vmul.f32 %v2982, %v3265
        %v3289 = vmul.f32 %v2985, %v3265
        %v3290 = vmul.f32 %v2990, %v3269
        %v3291 = vmul.f32 %v2993, %v3269
        %v3292 = vmul.f32 %v2998, %v3265
        %v3293 = vmul.f32 %v3001, %v3265
        %v3294 = vmul.f32 %v3006, %v3269
        %v3295 = vmul.f32 %v3009, %v3269
        %v3296 = vmul.f32 %v3014, %v3265
        %v3297 = vmul.f32 %v3017, %v3265
        %v3298 = vmul.f32 %v3022, %v3269
        %v3299 = vmul.f32 %v3025, %v3269
        %v3300 = vmul.f32 %v3030, %v3265
        %v3301 = vmul.f32 %v3033, %v3265
        %v3302 = vmul.f32 %v3038, %v3269
        %v3303 = vmul.f32 %v3041, %v3269
        %v3304 = vmul.f32 %v3079, %v3265
        %v3305 = vmul.f32 %v3082, %v3265
        %v3306 = vmul.f32 %v3087, %v3269
        %v3307 = vmul.f32 %v3090, %v3269
        %v3308 = vmul.f32 %v3095, %v3265
        %v3309 = vmul.f32 %v3098, %v3265
        %v3310 = vmul.f32 %v3103, %v3269
        %v3311 = vmul.f32 %v3106, %v3269
        %v3312 = vmul.f32 %v3111, %v3265
        %v3313 = vmul.f32 %v3114, %v3265
        %v3314 = vmul.f32 %v3119, %v3269
        %v3315 = vmul.f32 %v3122, %v3269
        %v3316 = vmul.f32 %v3127, %v3265
        %v3317 = vmul.f32 %v3130, %v3265
        %v3318 = vmul.f32 %v3135, %v3269
        %v3319 = vmul.f32 %v3138, %v3269
        %v3320 = vmul.f32 %v3176, %v3265
        %v3321 = vmul.f32 %v3179, %v3265
        %v3322 = vmul.f32 %v3184, %v3269
        %v3323 = vmul.f32 %v3187, %v3269
        %v3324 = vmul.f32 %v3192, %v3265
        %v3325 = vmul.f32 %v3195, %v3265
        %v3326 = vmul.f32 %v3200, %v3269
        %v3327 = vmul.f32 %v3203, %v3269
        %v3328 = vmul.f32 %v3208, %v3265
        %v3329 = vmul.f32 %v3211, %v3265
        %v3330 = vmul.f32 %v3216, %v3269
        %v3331 = vmul.f32 %v3219, %v3269
        %v3332 = vmul.f32 %v3224, %v3265
        %v3333 = vmul.f32 %v3227, %v3265
        %v3334 = vmul.f32 %v3232, %v3269
        %v3335 = vmul.f32 %v3235, %v3269
        %v3336 = vpack.c.bf16 %v3273, %v3272
        %v3337 = vpack.c.bf16 %v3275, %v3274
        %v3338 = vpack.c.bf16 %v3277, %v3276
        %v3339 = vpack.c.bf16 %v3279, %v3278
        %v3340 = vpack.c.bf16 %v3281, %v3280
        %v3341 = vpack.c.bf16 %v3283, %v3282
        %v3342 = vpack.c.bf16 %v3285, %v3284
        %v3343 = vpack.c.bf16 %v3287, %v3286
        %v3344 = vpack.c.bf16 %v3289, %v3288
        %v3345 = vpack.c.bf16 %v3291, %v3290
        %v3346 = vpack.c.bf16 %v3293, %v3292
        %v3347 = vpack.c.bf16 %v3295, %v3294
        %v3348 = vpack.c.bf16 %v3297, %v3296
        %v3349 = vpack.c.bf16 %v3299, %v3298
        %v3350 = vpack.c.bf16 %v3301, %v3300
        %v3351 = vpack.c.bf16 %v3303, %v3302
        %v3352 = vpack.c.bf16 %v3305, %v3304
        %v3353 = vpack.c.bf16 %v3307, %v3306
        %v3354 = vpack.c.bf16 %v3309, %v3308
        %v3355 = vpack.c.bf16 %v3311, %v3310
        %v3356 = vpack.c.bf16 %v3313, %v3312
        %v3357 = vpack.c.bf16 %v3315, %v3314
        %v3358 = vpack.c.bf16 %v3317, %v3316
        %v3359 = vpack.c.bf16 %v3319, %v3318
        %v3360 = vpack.c.bf16 %v3321, %v3320
        %v3361 = vpack.c.bf16 %v3323, %v3322
        %v3362 = vpack.c.bf16 %v3325, %v3324
        %v3363 = vpack.c.bf16 %v3327, %v3326
        %v3364 = vpack.c.bf16 %v3329, %v3328
        %v3365 = vpack.c.bf16 %v3331, %v3330
        %v3366 = vpack.c.bf16 %v3333, %v3332
        %v3367 = vpack.c.bf16 %v3335, %v3334
        %v3369 = vunpack.i.l.s16 %v3336
        %v3370 = vunpack.i.h.s16 %v3336
        %v3372 = vunpack.i.l.s16 %v3337
        %v3373 = vunpack.i.h.s16 %v3337
        %v3375 = vunpack.i.l.s16 %v3338
        %v3376 = vunpack.i.h.s16 %v3338
        %v3378 = vunpack.i.l.s16 %v3339
        %v3379 = vunpack.i.h.s16 %v3339
        %v3381 = vunpack.i.l.s16 %v3340
        %v3382 = vunpack.i.h.s16 %v3340
        %v3384 = vunpack.i.l.s16 %v3341
        %v3385 = vunpack.i.h.s16 %v3341
        %v3387 = vunpack.i.l.s16 %v3342
        %v3388 = vunpack.i.h.s16 %v3342
        %v3390 = vunpack.i.l.s16 %v3343
        %v3391 = vunpack.i.h.s16 %v3343
        %v3393 = vunpack.i.l.s16 %v3344
        %v3394 = vunpack.i.h.s16 %v3344
        %v3396 = vunpack.i.l.s16 %v3345
        %v3397 = vunpack.i.h.s16 %v3345
        %v3399 = vunpack.i.l.s16 %v3346
        %v3400 = vunpack.i.h.s16 %v3346
        %v3402 = vunpack.i.l.s16 %v3347
        %v3403 = vunpack.i.h.s16 %v3347
        %v3405 = vunpack.i.l.s16 %v3348
        %v3406 = vunpack.i.h.s16 %v3348
        %v3408 = vunpack.i.l.s16 %v3349
        %v3409 = vunpack.i.h.s16 %v3349
        %v3411 = vunpack.i.l.s16 %v3350
        %v3412 = vunpack.i.h.s16 %v3350
        %v3414 = vunpack.i.l.s16 %v3351
        %v3415 = vunpack.i.h.s16 %v3351
        %v3417 = vunpack.i.l.s16 %v3352
        %v3418 = vunpack.i.h.s16 %v3352
        %v3420 = vunpack.i.l.s16 %v3353
        %v3421 = vunpack.i.h.s16 %v3353
        %v3423 = vunpack.i.l.s16 %v3354
        %v3424 = vunpack.i.h.s16 %v3354
        %v3426 = vunpack.i.l.s16 %v3355
        %v3427 = vunpack.i.h.s16 %v3355
        %v3429 = vunpack.i.l.s16 %v3356
        %v3430 = vunpack.i.h.s16 %v3356
        %v3432 = vunpack.i.l.s16 %v3357
        %v3433 = vunpack.i.h.s16 %v3357
        %v3435 = vunpack.i.l.s16 %v3358
        %v3436 = vunpack.i.h.s16 %v3358
        %v3438 = vunpack.i.l.s16 %v3359
        %v3439 = vunpack.i.h.s16 %v3359
        %v3441 = vunpack.i.l.s16 %v3360
        %v3442 = vunpack.i.h.s16 %v3360
        %v3444 = vunpack.i.l.s16 %v3361
        %v3445 = vunpack.i.h.s16 %v3361
        %v3447 = vunpack.i.l.s16 %v3362
        %v3448 = vunpack.i.h.s16 %v3362
        %v3450 = vunpack.i.l.s16 %v3363
        %v3451 = vunpack.i.h.s16 %v3363
        %v3453 = vunpack.i.l.s16 %v3364
        %v3454 = vunpack.i.h.s16 %v3364
        %v3456 = vunpack.i.l.s16 %v3365
        %v3457 = vunpack.i.h.s16 %v3365
        %v3459 = vunpack.i.l.s16 %v3366
        %v3460 = vunpack.i.h.s16 %v3366
        %v3462 = vunpack.i.l.s16 %v3367
        %v3463 = vunpack.i.h.s16 %v3367
        %v3464 = vld [vmem:[#allocation7] sm:$0xf]
        %v3465 = vld [vmem:[#allocation7 + $0x4] sm:$0xf]
        %v3466 = vld [vmem:[#allocation7 + $0x8] sm:$0xf]
        %v3467 = vld [vmem:[#allocation7 + $0xc] sm:$0xf]
        %v3468 = vld [vmem:[#allocation7 + $0x10] sm:$0xf]
        %v3469 = vld [vmem:[#allocation7 + $0x14] sm:$0xf]
        %v3470 = vld [vmem:[#allocation7 + $0x18] sm:$0xf]
        %v3471 = vld [vmem:[#allocation7 + $0x1c] sm:$0xf]
        %v3472 = vld [vmem:[#allocation7 + $0x20] sm:$0xf]
        %v3473 = vld [vmem:[#allocation7 + $0x24] sm:$0xf]
        %v3474 = vld [vmem:[#allocation7 + $0x28] sm:$0xf]
        %v3475 = vld [vmem:[#allocation7 + $0x2c] sm:$0xf]
        %v3476 = vld [vmem:[#allocation7 + $0x30] sm:$0xf]
        %v3477 = vld [vmem:[#allocation7 + $0x34] sm:$0xf]
        %v3478 = vld [vmem:[#allocation7 + $0x38] sm:$0xf]
        %v3479 = vld [vmem:[#allocation7 + $0x3c] sm:$0xf]
        %v3480 = vld [vmem:[#allocation7 + $0x40] sm:$0xf]
        %v3481 = vld [vmem:[#allocation7 + $0x44] sm:$0xf]
        %v3482 = vld [vmem:[#allocation7 + $0x48] sm:$0xf]
        %v3483 = vld [vmem:[#allocation7 + $0x4c] sm:$0xf]
        %v3484 = vld [vmem:[#allocation7 + $0x50] sm:$0xf]
        %v3485 = vld [vmem:[#allocation7 + $0x54] sm:$0xf]
        %v3486 = vld [vmem:[#allocation7 + $0x58] sm:$0xf]
        %v3487 = vld [vmem:[#allocation7 + $0x5c] sm:$0xf]
        %v3488 = vld [vmem:[#allocation7 + $0x60] sm:$0xf]
        %v3489 = vld [vmem:[#allocation7 + $0x64] sm:$0xf]
        %v3490 = vld [vmem:[#allocation7 + $0x68] sm:$0xf]
        %v3491 = vld [vmem:[#allocation7 + $0x6c] sm:$0xf]
        %v3492 = vld [vmem:[#allocation7 + $0x70] sm:$0xf]
        %v3493 = vld [vmem:[#allocation7 + $0x74] sm:$0xf]
        %v3494 = vld [vmem:[#allocation7 + $0x78] sm:$0xf]
        %v3495 = vld [vmem:[#allocation7 + $0x7c] sm:$0xf]
        %v3496 = vpack.c.b16 %v3372, %v3369
        %v3497 = vpack.c.b16 %v3373, %v3370
        %v3498 = vpack.c.b16 %v3378, %v3375
        %v3499 = vpack.c.b16 %v3379, %v3376
        %v3500 = vpack.c.b16 %v3384, %v3381
        %v3501 = vpack.c.b16 %v3385, %v3382
        %v3502 = vpack.c.b16 %v3390, %v3387
        %v3503 = vpack.c.b16 %v3391, %v3388
        %v3504 = vpack.c.b16 %v3396, %v3393
        %v3505 = vpack.c.b16 %v3397, %v3394
        %v3506 = vpack.c.b16 %v3402, %v3399
        %v3507 = vpack.c.b16 %v3403, %v3400
        %v3508 = vpack.c.b16 %v3408, %v3405
        %v3509 = vpack.c.b16 %v3409, %v3406
        %v3510 = vpack.c.b16 %v3414, %v3411
        %v3511 = vpack.c.b16 %v3415, %v3412
        %v3512 = vpack.c.b16 %v3420, %v3417
        %v3513 = vpack.c.b16 %v3421, %v3418
        %v3514 = vpack.c.b16 %v3426, %v3423
        %v3515 = vpack.c.b16 %v3427, %v3424
        %v3516 = vpack.c.b16 %v3432, %v3429
        %v3517 = vpack.c.b16 %v3433, %v3430
        %v3518 = vpack.c.b16 %v3438, %v3435
        %v3519 = vpack.c.b16 %v3439, %v3436
        %v3520 = vpack.c.b16 %v3444, %v3441
        %v3521 = vpack.c.b16 %v3445, %v3442
        %v3522 = vpack.c.b16 %v3450, %v3447
        %v3523 = vpack.c.b16 %v3451, %v3448
        %v3524 = vpack.c.b16 %v3456, %v3453
        %v3525 = vpack.c.b16 %v3457, %v3454
        %v3526 = vpack.c.b16 %v3462, %v3459
        %v3527 = vpack.c.b16 %v3463, %v3460
        %v3592 = vunpack.c.l.b16 %v3464
        %v3593 = vunpack.c.l.b16 %v3465
        %v3594 = vunpack.c.l.b16 %v3466
        %v3595 = vunpack.c.l.b16 %v3467
        %v3596 = vunpack.c.l.b16 %v3468
        %v3597 = vunpack.c.l.b16 %v3469
        %v3598 = vunpack.c.l.b16 %v3470
        %v3599 = vunpack.c.l.b16 %v3471
        %v3600 = vunpack.c.l.b16 %v3472
        %v3601 = vunpack.c.l.b16 %v3473
        %v3602 = vunpack.c.l.b16 %v3474
        %v3603 = vunpack.c.l.b16 %v3475
        %v3604 = vunpack.c.l.b16 %v3476
        %v3605 = vunpack.c.l.b16 %v3477
        %v3606 = vunpack.c.l.b16 %v3478
        %v3607 = vunpack.c.l.b16 %v3479
        %v3608 = vunpack.c.l.b16 %v3480
        %v3609 = vunpack.c.l.b16 %v3481
        %v3610 = vunpack.c.l.b16 %v3482
        %v3611 = vunpack.c.l.b16 %v3483
        %v3612 = vunpack.c.l.b16 %v3484
        %v3613 = vunpack.c.l.b16 %v3485
        %v3614 = vunpack.c.l.b16 %v3486
        %v3615 = vunpack.c.l.b16 %v3487
        %v3616 = vunpack.c.l.b16 %v3488
        %v3617 = vunpack.c.l.b16 %v3489
        %v3618 = vunpack.c.l.b16 %v3490
        %v3619 = vunpack.c.l.b16 %v3491
        %v3620 = vunpack.c.l.b16 %v3492
        %v3621 = vunpack.c.l.b16 %v3493
        %v3622 = vunpack.c.l.b16 %v3494
        %v3623 = vunpack.c.l.b16 %v3495
        %v3624 = vpack.c.b16 %v3593, %v3592
        %v3625 = vpack.c.b16 %v3595, %v3594
        %v3626 = vpack.c.b16 %v3597, %v3596
        %v3627 = vpack.c.b16 %v3599, %v3598
        %v3628 = vpack.c.b16 %v3601, %v3600
        %v3629 = vpack.c.b16 %v3603, %v3602
        %v3630 = vpack.c.b16 %v3605, %v3604
        %v3631 = vpack.c.b16 %v3607, %v3606
        %v3632 = vpack.c.b16 %v3609, %v3608
        %v3633 = vpack.c.b16 %v3611, %v3610
        %v3634 = vpack.c.b16 %v3613, %v3612
        %v3635 = vpack.c.b16 %v3615, %v3614
        %v3636 = vpack.c.b16 %v3617, %v3616
        %v3637 = vpack.c.b16 %v3619, %v3618
        %v3638 = vpack.c.b16 %v3621, %v3620
        %v3639 = vpack.c.b16 %v3623, %v3622
        %3656 = vmatprep.subr.bf16.mxu0 0
        %3657 = vmatpush1.bf16.msra.mxu0 %v3631
        %3658 = vmatprep.subr.bf16.mxu0 0
        %3659 = vmatpush1.bf16.msra.mxu0 %v3630
        %3660 = vmatprep.subr.bf16.mxu0 0
        %3661 = vmatpush1.bf16.msra.mxu0 %v3629
        %3662 = vmatprep.subr.bf16.mxu0 0
        %3663 = vmatpush1.bf16.msra.mxu0 %v3628
        %3664 = vmatprep.subr.bf16.mxu0 0
        %3665 = vmatpush1.bf16.msra.mxu0 %v3627
        %3666 = vmatprep.subr.bf16.mxu0 0
        %3667 = vmatpush1.bf16.msra.mxu0 %v3626
        %3668 = vmatprep.subr.bf16.mxu0 0
        %3669 = vmatpush1.bf16.msra.mxu0 %v3625
        %3670 = vmatprep.subr.bf16.mxu0 0
        %3671 = vmatpush1.bf16.msra.mxu0 %v3624
        %3672 = vmatprep.subr.bf16.mxu0 0
        %3673 = vmatpush2.bf16.msra.mxu0 %v3639
        %3674 = vmatprep.subr.bf16.mxu0 0
        %3675 = vmatpush2.bf16.msra.mxu0 %v3638
        %3676 = vmatprep.subr.bf16.mxu0 0
        %3677 = vmatpush2.bf16.msra.mxu0 %v3637
        %3678 = vmatprep.subr.bf16.mxu0 0
        %3679 = vmatpush2.bf16.msra.mxu0 %v3636
        %3680 = vmatprep.subr.bf16.mxu0 0
        %3681 = vmatpush2.bf16.msra.mxu0 %v3635
        %3682 = vmatprep.subr.bf16.mxu0 0
        %3683 = vmatpush2.bf16.msra.mxu0 %v3634
        %3684 = vmatprep.subr.bf16.mxu0 0
        %3685 = vmatpush2.bf16.msra.mxu0 %v3633
        %3686 = vmatprep.subr.bf16.mxu0 0
        %3687 = vmatpush2.bf16.msra.mxu0 %v3632
        %3688 = vmatprep.mubr.bf16.mxu0 %v3497
        %3689 = vmatmul.mubr.bf16.gmra.mxu0 %v3496
        %v3690 = vpop.f32.mrf.mxu0
        %v3691 = vadd.f32 0.0, %v3690
        %v3692 = vpop.f32.mrf.mxu0
        %v3693 = vpop.f32.mrf.mxu0
        %v3694 = vadd.f32 0.0, %v3693
        %v3695 = vpop.f32.mrf.mxu0
        %3696 = vmatprep.mubr.bf16.mxu0 %v3499
        %3697 = vmatmul.mubr.bf16.gmra.mxu0 %v3498
        %v3698 = vpop.f32.mrf.mxu0
        %v3699 = vadd.f32 0.0, %v3698
        %v3700 = vpop.f32.mrf.mxu0
        %v3701 = vpop.f32.mrf.mxu0
        %v3702 = vadd.f32 0.0, %v3701
        %v3703 = vpop.f32.mrf.mxu0
        %3704 = vmatprep.mubr.bf16.mxu0 %v3501
        %3705 = vmatmul.mubr.bf16.gmra.mxu0 %v3500
        %v3706 = vpop.f32.mrf.mxu0
        %v3707 = vadd.f32 0.0, %v3706
        %v3708 = vpop.f32.mrf.mxu0
        %v3709 = vpop.f32.mrf.mxu0
        %v3710 = vadd.f32 0.0, %v3709
        %v3711 = vpop.f32.mrf.mxu0
        %3712 = vmatprep.mubr.bf16.mxu0 %v3503
        %3713 = vmatmul.mubr.bf16.gmra.mxu0 %v3502
        %v3714 = vpop.f32.mrf.mxu0
        %v3715 = vadd.f32 0.0, %v3714
        %v3716 = vpop.f32.mrf.mxu0
        %v3717 = vpop.f32.mrf.mxu0
        %v3718 = vadd.f32 0.0, %v3717
        %v3719 = vpop.f32.mrf.mxu0
        %3720 = vmatprep.mubr.bf16.mxu0 %v3505
        %3721 = vmatmul.mubr.bf16.gmra.mxu0 %v3504
        %v3722 = vpop.f32.mrf.mxu0
        %v3723 = vadd.f32 0.0, %v3722
        %v3724 = vpop.f32.mrf.mxu0
        %v3725 = vpop.f32.mrf.mxu0
        %v3726 = vadd.f32 0.0, %v3725
        %v3727 = vpop.f32.mrf.mxu0
        %3728 = vmatprep.mubr.bf16.mxu0 %v3507
        %3729 = vmatmul.mubr.bf16.gmra.mxu0 %v3506
        %v3730 = vpop.f32.mrf.mxu0
        %v3731 = vadd.f32 0.0, %v3730
        %v3732 = vpop.f32.mrf.mxu0
        %v3733 = vpop.f32.mrf.mxu0
        %v3734 = vadd.f32 0.0, %v3733
        %v3735 = vpop.f32.mrf.mxu0
        %3736 = vmatprep.mubr.bf16.mxu0 %v3509
        %3737 = vmatmul.mubr.bf16.gmra.mxu0 %v3508
        %v3738 = vpop.f32.mrf.mxu0
        %v3739 = vadd.f32 0.0, %v3738
        %v3740 = vpop.f32.mrf.mxu0
        %v3741 = vpop.f32.mrf.mxu0
        %v3742 = vadd.f32 0.0, %v3741
        %v3743 = vpop.f32.mrf.mxu0
        %3744 = vmatprep.mubr.bf16.mxu0 %v3511
        %3745 = vmatmul.mubr.bf16.gmra.mxu0 %v3510
        %v3746 = vpop.f32.mrf.mxu0
        %v3747 = vadd.f32 0.0, %v3746
        %v3748 = vpop.f32.mrf.mxu0
        %v3749 = vpop.f32.mrf.mxu0
        %v3750 = vadd.f32 0.0, %v3749
        %v3751 = vpop.f32.mrf.mxu0
        %3752 = vmatprep.mubr.bf16.mxu0 %v3513
        %3753 = vmatmul.mubr.bf16.gmra.mxu0 %v3512
        %v3754 = vpop.f32.mrf.mxu0
        %v3755 = vadd.f32 0.0, %v3754
        %v3756 = vpop.f32.mrf.mxu0
        %v3757 = vpop.f32.mrf.mxu0
        %v3758 = vadd.f32 0.0, %v3757
        %v3759 = vpop.f32.mrf.mxu0
        %3760 = vmatprep.mubr.bf16.mxu0 %v3515
        %3761 = vmatmul.mubr.bf16.gmra.mxu0 %v3514
        %v3762 = vpop.f32.mrf.mxu0
        %v3763 = vadd.f32 0.0, %v3762
        %v3764 = vpop.f32.mrf.mxu0
        %v3765 = vpop.f32.mrf.mxu0
        %v3766 = vadd.f32 0.0, %v3765
        %v3767 = vpop.f32.mrf.mxu0
        %3768 = vmatprep.mubr.bf16.mxu0 %v3517
        %3769 = vmatmul.mubr.bf16.gmra.mxu0 %v3516
        %v3770 = vpop.f32.mrf.mxu0
        %v3771 = vadd.f32 0.0, %v3770
        %v3772 = vpop.f32.mrf.mxu0
        %v3773 = vpop.f32.mrf.mxu0
        %v3774 = vadd.f32 0.0, %v3773
        %v3775 = vpop.f32.mrf.mxu0
        %3776 = vmatprep.mubr.bf16.mxu0 %v3519
        %3777 = vmatmul.mubr.bf16.gmra.mxu0 %v3518
        %v3778 = vpop.f32.mrf.mxu0
        %v3779 = vadd.f32 0.0, %v3778
        %v3780 = vpop.f32.mrf.mxu0
        %v3781 = vpop.f32.mrf.mxu0
        %v3782 = vadd.f32 0.0, %v3781
        %v3783 = vpop.f32.mrf.mxu0
        %3784 = vmatprep.mubr.bf16.mxu0 %v3521
        %3785 = vmatmul.mubr.bf16.gmra.mxu0 %v3520
        %v3786 = vpop.f32.mrf.mxu0
        %v3787 = vadd.f32 0.0, %v3786
        %v3788 = vpop.f32.mrf.mxu0
        %v3789 = vpop.f32.mrf.mxu0
        %v3790 = vadd.f32 0.0, %v3789
        %v3791 = vpop.f32.mrf.mxu0
        %3792 = vmatprep.mubr.bf16.mxu0 %v3523
        %3793 = vmatmul.mubr.bf16.gmra.mxu0 %v3522
        %v3794 = vpop.f32.mrf.mxu0
        %v3795 = vadd.f32 0.0, %v3794
        %v3796 = vpop.f32.mrf.mxu0
        %v3797 = vpop.f32.mrf.mxu0
        %v3798 = vadd.f32 0.0, %v3797
        %v3799 = vpop.f32.mrf.mxu0
        %3800 = vmatprep.mubr.bf16.mxu0 %v3525
        %3801 = vmatmul.mubr.bf16.gmra.mxu0 %v3524
        %v3802 = vpop.f32.mrf.mxu0
        %v3803 = vadd.f32 0.0, %v3802
        %v3804 = vpop.f32.mrf.mxu0
        %v3805 = vpop.f32.mrf.mxu0
        %v3806 = vadd.f32 0.0, %v3805
        %v3807 = vpop.f32.mrf.mxu0
        %3808 = vmatprep.mubr.bf16.mxu0 %v3527
        %3809 = vmatmul.mubr.bf16.gmra.mxu0 %v3526
        %v3810 = vpop.f32.mrf.mxu0
        %v3811 = vadd.f32 0.0, %v3810
        %v3812 = vpop.f32.mrf.mxu0
        %v3813 = vpop.f32.mrf.mxu0
        %v3814 = vadd.f32 0.0, %v3813
        %v3815 = vpop.f32.mrf.mxu0
        %3816 = vdwg.mxu0
        %3817 = vst [vmem:[%s311] sm:$0xff] %v3691
        %3818 = vst [vmem:[%s311 + $0x8] sm:$0xff] %v3694
        %3819 = vst [vmem:[%s311 + $0x10] sm:$0xff] %v3699
        %3820 = vst [vmem:[%s311 + $0x18] sm:$0xff] %v3702
        %3821 = vst [vmem:[%s311 + $0x20] sm:$0xff] %v3707
        %3822 = vst [vmem:[%s311 + $0x28] sm:$0xff] %v3710
        %3823 = vst [vmem:[%s311 + $0x30] sm:$0xff] %v3715
        %3824 = vst [vmem:[%s311 + $0x38] sm:$0xff] %v3718
        %3825 = vst [vmem:[%s311 + $0x40] sm:$0xff] %v3723
        %3826 = vst [vmem:[%s311 + $0x48] sm:$0xff] %v3726
        %3827 = vst [vmem:[%s311 + $0x50] sm:$0xff] %v3731
        %3828 = vst [vmem:[%s311 + $0x58] sm:$0xff] %v3734
        %3829 = vst [vmem:[%s311 + $0x60] sm:$0xff] %v3739
        %3830 = vst [vmem:[%s311 + $0x68] sm:$0xff] %v3742
        %3831 = vst [vmem:[%s311 + $0x70] sm:$0xff] %v3747
        %3832 = vst [vmem:[%s311 + $0x78] sm:$0xff] %v3750
        %3833 = vst [vmem:[%s311 + $0x80] sm:$0xff] %v3755
        %3834 = vst [vmem:[%s311 + $0x88] sm:$0xff] %v3758
        %3835 = vst [vmem:[%s311 + $0x90] sm:$0xff] %v3763
        %3836 = vst [vmem:[%s311 + $0x98] sm:$0xff] %v3766
        %3837 = vst [vmem:[%s311 + $0xa0] sm:$0xff] %v3771
        %3838 = vst [vmem:[%s311 + $0xa8] sm:$0xff] %v3774
        %3839 = vst [vmem:[%s311 + $0xb0] sm:$0xff] %v3779
        %3840 = vst [vmem:[%s311 + $0xb8] sm:$0xff] %v3782
        %3841 = vst [vmem:[%s311 + $0xc0] sm:$0xff] %v3787
        %3842 = vst [vmem:[%s311 + $0xc8] sm:$0xff] %v3790
        %3843 = vst [vmem:[%s311 + $0xd0] sm:$0xff] %v3795
        %3844 = vst [vmem:[%s311 + $0xd8] sm:$0xff] %v3798
        %3845 = vst [vmem:[%s311 + $0xe0] sm:$0xff] %v3803
        %3846 = vst [vmem:[%s311 + $0xe8] sm:$0xff] %v3806
        %3847 = vst [vmem:[%s311 + $0xf0] sm:$0xff] %v3811
        %3848 = vst [vmem:[%s311 + $0xf8] sm:$0xff] %v3814
        %s3849 = sand.u32 %s142, 1
        %s3850 = scalar_lea.sflag [#allocation4], %s3849
        %s3851 = sand.u32 %s142, 1
        %s3852 = smul.addr %s3851, 256
        %s3853 = scalar_lea.vmem [#allocation10], %s3852
        // Predicated region
        $region57: #{tpu_custom_call.1} parent=39 // pred_check
          %p3854 = pneg %p152
        $region58: #{tpu_custom_call.1} parent=39 // pred_check_branch
          %3856 = sbr.rel (%p3854) target = $region60
        $region59: #{tpu_custom_call.1} parent=39 // pred_region
          #allocation14 [shape = 'u32[6]{0}', space=smem, size = 0x18, scoped, tag = 'DMA stride descriptor']
          %s3857 = smul.u32 16, %s24
          %s3859 = ssub.s32 4096, 4096
          %3860 = vsyncadd %s3850, %s3859
          %s3861 = smul.addr %s3857, 128
          %s3862 = scalar_lea.hbm %s5, %s3861
          %s3864 = sshll.u32 1, 14
          %s3865 = sxor.u32 4294967295, %s3864
          %s3868 = sshll.u32 7, 18
          %s3869 = sxor.u32 4294967295, %s3868
          %s3870 = sand.u32 0, %s3869
          %s3872 = sor.u32 %s3870, 0
          %s3873 = sshll.u32 %s3853, 4
          %s3874 = int_to_ptr.vmem [resolvable:$true] %s3873
          %3880 = sst [smem:[#allocation14]] 2048
          %s3881 = scalar_lea.smem [#allocation14], 1
          %3882 = sst [smem:[%s3881]] 4096
          %s3883 = scalar_lea.smem [#allocation14], 2
          %3884 = sst [smem:[%s3883]] 16
          %s3885 = scalar_lea.smem [#allocation14], 3
          %3886 = sst [smem:[%s3885]] 128
          %s3887 = scalar_lea.smem [#allocation14], 4
          %3888 = sst [smem:[%s3887]] 128
          %s3889 = scalar_lea.smem [#allocation14], 5
          %3890 = sst [smem:[%s3889]] 8
          %3892 = dma.general %s3874, 4096, %s3862, %s3850, 131072, [#allocation14], %s3872, 0
        $region60: #{tpu_custom_call.1} parent=39 // pred_fallthru
          _
      $region40: #{tpu_custom_call.1} parent=5 // pred_fallthru
        _
      %p3893 = scmp.le.s32.totalorder 2, %s19
      // Predicated region
      $region61: #{tpu_custom_call.1} parent=5 // pred_check
        %p3894 = pneg %p3893
      $region62: #{tpu_custom_call.1} parent=5 // pred_check_branch
        %3896 = sbr.rel (%p3894) target = $region64
      $region63: #{tpu_custom_call.1} parent=5 // pred_region
        %s3897 = ssub.s32 %s19, 2
        // Predicated region
        $region65: #{tpu_custom_call.1} parent=63 // pred_check
          %p3898 = pneg %p158
        $region66: #{tpu_custom_call.1} parent=63 // pred_check_branch
          %3900 = sbr.rel (%p3898) target = $region68
        $region67: #{tpu_custom_call.1} parent=63 // pred_region
          %s3901 = sand.u32 %s143, 1
          %s3902 = scalar_lea.sflag [#allocation4], %s3901
          %s3903 = sand.u32 %s143, 1
          %s3904 = smul.addr %s3903, 256
          %s3905 = scalar_lea.vmem [#allocation10], %s3904
          %3906 = dma.done %s3902, 4096
        $region68: #{tpu_custom_call.1} parent=63 // pred_fallthru
          _
      $region64: #{tpu_custom_call.1} parent=5 // pred_fallthru
        _
    $region6: #{tpu_custom_call.1} parent=1 // loop_footer
      %s23 = sadd.s32 1, %s19
    $region7: #{tpu_custom_call.1} parent=1 // loop_footer_branch
      %18 = sbr.rel target = $region3
    $region8: #{tpu_custom_call.1} parent=1 // loop_exit
      _
    %3907 = vsyncpa [#allocation3], 1
    %s3908 = scalar_lea.sflag [#allocation3], 1
    %3909 = vsyncpa %s3908, 1
    %3910 = vsyncpa [#allocation6], 1
    %3911 = vsyncpa [#allocation9], 1
    %3912 = vsyncpa [#allocation4], 1
    %s3913 = scalar_lea.sflag [#allocation4], 1
    %3914 = vsyncpa %s3913, 1

</llo_original>
